<compile_context>
chip_gen: v6e
topology: v6e:2x2x1
jax: 0.10.0
libtpu: 0.0.40
codegen_flags: <defaults>
</compile_context>

<pallas_src>
import functools
import math

import numpy as np
import jax
import jax.numpy as jnp
from jax.experimental import pallas as pl
from jax.experimental.pallas import tpu as pltpu

# ----------------------------- model hyper-params (small, synthetic) ---------
B = 2                 # batch
C_IN = 3              # image channels (RGB, as the CLIP visual tower expects)
H_IN = W_IN = 20      # raw input spatial size (gets bilinear-resized)
IMG = 16              # clip_model.visual.image_size (synthetic)
PATCH = 8             # patch size
GRID = IMG // PATCH   # 2
T = GRID * GRID + 1   # tokens incl. class token = 5
D = 64                # transformer width
HEADS = 4
DH = D // HEADS       # 16
MLP = 4 * D           # 256
LAYERS = 2
OUT_DIM = 64          # clip_model.visual.output_dim (synthetic)
NUM_CLASSES = 10
LN_EPS = 1e-5
CPP = C_IN * PATCH * PATCH   # 192
BT = B * T                   # 10
OUT_LANES = 128              # lane-dense packed output: [logits | act1 | act2 | pad]


# ----------------------------- Pallas kernels --------------------------------
def _resize_kernel(x_ref, wh_ref, wwT_ref, o_ref, *, planes):
    # Single invocation over all B*C planes; ww.T precomputed on host.
    wh = wh_ref[...]          # (IMG, H_in)   -- loads hoisted out of the loop
    wwT = wwT_ref[...]        # (W_in, IMG)
    for pidx in range(planes):                       # static unroll (6 planes)
        t = jnp.dot(wh, x_ref[pidx], preferred_element_type=jnp.float32)
        o_ref[pidx] = jnp.dot(t, wwT, preferred_element_type=jnp.float32)


def _encoder_head_kernel(
        # --- inputs -----------------------------------------------------------
        patches_ref, embed_ref, patch_w_ref, lnpre_g_ref, lnpre_b_ref,
        ln1_g_ref, ln1_b_ref, qkv_w_ref, qkv_b_ref, out_w_ref, out_b_ref,
        ln2_g_ref, ln2_b_ref, mlp_w1_ref, mlp_b1_ref, mlp_w2_ref, mlp_b2_ref,
        lnpost_g_ref, lnpost_b_ref, proj_ref,
        h1_w_ref, h1_b_ref, h2_w_ref, h2_b_ref, h3_w_ref, h3_b_ref,
        # --- output (lane-dense packed) ----------------------------------------
        out_ref,
        # --- scratch (persists across the LAYERS grid) --------------------------
        x_acc):
    layer = pl.program_id(0)

    def _mm(a, b):
        # bf16 into the MXU, f32 accumulation (v5e/v6e/v7x friendly).
        return jnp.dot(a.astype(jnp.bfloat16), b.astype(jnp.bfloat16),
                       preferred_element_type=jnp.float32)

    def _ln(x, g_ref, b_ref):
        mu = jnp.mean(x, axis=-1, keepdims=True)
        var = jnp.mean((x - mu) ** 2, axis=-1, keepdims=True)
        return (x - mu) * jax.lax.rsqrt(var + LN_EPS) * g_ref[...] + b_ref[...]

    # ---- token embedding: patch matmul + (cls|pos) add + ln_pre (step 0 only)
    @pl.when(layer == 0)
    def _embed():
        tok = _mm(patches_ref[...], patch_w_ref[...]) + embed_ref[...]
        x_acc[...] = _ln(tok, lnpre_g_ref, lnpre_b_ref)

    # ---- transformer block `layer` (residual stream stays in VMEM) ------------
    x = x_acc[...]                                            # (B*T, D) f32
    h = _ln(x, ln1_g_ref, ln1_b_ref)
    qkv = _mm(h, qkv_w_ref[...]) + qkv_b_ref[...]             # (B*T, 3D), in vregs

    scale = 1.0 / math.sqrt(DH)
    attn_rows = []
    for b in range(B):                                        # static unroll
        r0 = b * T
        head_outs = []
        for hd in range(HEADS):
            q_h = qkv[r0:r0 + T, hd * DH:(hd + 1) * DH]                  # (T, DH)
            k_h = qkv[r0:r0 + T, D + hd * DH:D + (hd + 1) * DH]
            v_h = qkv[r0:r0 + T, 2 * D + hd * DH:2 * D + (hd + 1) * DH]
            s = jax.lax.dot_general(
                q_h.astype(jnp.bfloat16), k_h.astype(jnp.bfloat16),
                (((1,), (1,)), ((), ())),
                preferred_element_type=jnp.float32) * scale              # (T, T)
            s = s - jnp.max(s, axis=-1, keepdims=True)
            e = jnp.exp(s)                         # f32 softmax (v5e: no bf16 VPU/EUP)
            p_attn = e * pl.reciprocal(jnp.sum(e, axis=-1, keepdims=True),
                                       approx=True)
            head_outs.append(_mm(p_attn, v_h))                           # (T, DH)
        attn_rows.append(jnp.concatenate(head_outs, axis=-1))            # (T, D)
    attn = jnp.concatenate(attn_rows, axis=0)                            # (B*T, D)

    o = _mm(attn, out_w_ref[...]) + out_b_ref[...]
    x = x + o                                                  # residual 1
    h = _ln(x, ln2_g_ref, ln2_b_ref)
    m = _mm(h, mlp_w1_ref[...]) + mlp_b1_ref[...]
    # TODO(synk): OpenCLIP nn.GELU defaults to exact erf; tanh approximation used here.
    m = jax.nn.gelu(m, approximate=True)
    x = x + _mm(m, mlp_w2_ref[...]) + mlp_b2_ref[...]          # residual 2
    x_acc[...] = x

    # ---- ln_post + projection + MAN head (last step only) ---------------------
    # Applied to all B*T rows (every op is row-wise); class-token rows are
    # selected outside the kernel.  The 5x redundant flops are negligible and
    # keep the kernel free of in-VMEM row gathers.  Results are packed into a
    # single lane-dense (B*T, 128) slab -> one unmasked store.
    @pl.when(layer == LAYERS - 1)
    def _head():
        xc = _ln(x, lnpost_g_ref, lnpost_b_ref)
        feat = _mm(xc, proj_ref[...])                                      # (B*T, OUT_DIM)
        h1 = jnp.maximum(_mm(feat, h1_w_ref[...]) + h1_b_ref[...], 0.0)
        a1 = jnp.mean(h1 * h1, axis=-1, keepdims=True)
        h2 = jnp.maximum(_mm(h1, h2_w_ref[...]) + h2_b_ref[...], 0.0)
        a2 = jnp.mean(h2 * h2, axis=-1, keepdims=True)
        logits = _mm(h2, h3_w_ref[...]) + h3_b_ref[...]                    # (B*T, NUM_CLASSES)
        pad = jnp.zeros((BT, OUT_LANES - NUM_CLASSES - 2), jnp.float32)
        out_ref[...] = jnp.concatenate([logits, a1, a2, pad], axis=-1)     # (B*T, 128)


# ----------------------------- Pallas wrappers --------------------------------
def pallas_resize(x, wh, wwT):
    Bn, Cc, H, W = x.shape
    Ho, Wo = wh.shape[0], wwT.shape[1]
    P = Bn * Cc
    out = pl.pallas_call(
        functools.partial(_resize_kernel, planes=P),
        out_shape=jax.ShapeDtypeStruct((P, Ho, Wo), jnp.float32),
    )(x.reshape(P, H, W), wh, wwT)
    return out.reshape(Bn, Cc, Ho, Wo)


def pallas_encoder_head(patches, embed_add, p):
    def const_spec(*shape):                      # same (whole) block every step
        nd = len(shape)
        return pl.BlockSpec(tuple(shape), lambda l, _n=nd: (0,) * _n)

    def layer_spec(*tail):                       # stacked (LAYERS, ...); squeeze layer dim
        nd = len(tail)
        return pl.BlockSpec((None,) + tuple(tail), lambda l, _n=nd: (l,) + (0,) * _n)

    in_specs = [
        const_spec(BT, CPP),                         # patches (cls rows zero-padded)
        const_spec(BT, D),                           # cls/pos additive embedding
        const_spec(CPP, D),                          # patch_w
        const_spec(1, D), const_spec(1, D),          # ln_pre g/b
        layer_spec(1, D), layer_spec(1, D),          # ln1 g/b
        layer_spec(D, 3 * D), layer_spec(1, 3 * D),  # qkv w/b
        layer_spec(D, D), layer_spec(1, D),          # attn out-proj w/b
        layer_spec(1, D), layer_spec(1, D),          # ln2 g/b
        layer_spec(D, MLP), layer_spec(1, MLP),      # mlp w1/b1
        layer_spec(MLP, D), layer_spec(1, D),        # mlp w2/b2
        const_spec(1, D), const_spec(1, D),          # ln_post g/b
        const_spec(D, OUT_DIM),                      # visual projection
        const_spec(OUT_DIM, 512), const_spec(1, 512),    # MAN head layer1
        const_spec(512, 256), const_spec(1, 256),        # MAN head layer2
        const_spec(256, NUM_CLASSES), const_spec(1, NUM_CLASSES),  # MAN head layer3
    ]
    out_specs = const_spec(BT, OUT_LANES)            # single lane-dense packed output
    out_shape = jax.ShapeDtypeStruct((BT, OUT_LANES), jnp.float32)

    return pl.pallas_call(
        _encoder_head_kernel,
        grid=(LAYERS,),
        in_specs=in_specs,
        out_specs=out_specs,
        out_shape=out_shape,
        scratch_shapes=[pltpu.VMEM((BT, D), jnp.float32)],      # residual stream
        compiler_params=pltpu.CompilerParams(
            dimension_semantics=("arbitrary",)),                # sequential over layers
    )(patches, embed_add, p["patch_w"], p["ln_pre_g"], p["ln_pre_b"],
      p["ln1_g"], p["ln1_b"], p["qkv_w"], p["qkv_b"], p["out_w"], p["out_b"],
      p["ln2_g"], p["ln2_b"], p["mlp_w1"], p["mlp_b1"], p["mlp_w2"], p["mlp_b2"],
      p["ln_post_g"], p["ln_post_b"], p["proj"],
      p["h1_w"], p["h1_b"], p["h2_w"], p["h2_b"], p["h3_w"], p["h3_b"])


# ----------------------------- parameters -------------------------------------
def _bilinear_matrix(in_size, out_size):
    # PyTorch F.interpolate(mode='bilinear', align_corners=False) sampling matrix.
    scale = in_size / out_size
    i = np.arange(out_size)
    src = np.maximum((i + 0.5) * scale - 0.5, 0.0)
    src = np.minimum(src, in_size - 1)
    i0 = np.floor(src).astype(np.int64)
    i1 = np.minimum(i0 + 1, in_size - 1)
    w = (src - i0).astype(np.float32)
    m = np.zeros((out_size, in_size), dtype=np.float32)
    m[i, i0] += 1.0 - w
    m[i, i1] += w
    return jnp.asarray(m)


def init_params(key):
    keys = iter(jax.random.split(key, 64))

    def nrm(shape, scale=0.02, dtype=jnp.bfloat16):
        # matmul weights stored in bf16 (halves weight DMA bytes); f32 elsewhere.
        return (scale * jax.random.normal(next(keys), shape, dtype=jnp.float32)).astype(dtype)

    p = {
        "wh": _bilinear_matrix(H_IN, IMG),
        "wwT": _bilinear_matrix(W_IN, IMG).T,        # transpose precomputed on host
        # patch-embed conv (bias=False in OpenCLIP) as a matmul
        "patch_w": nrm((CPP, D)),
        "cls": nrm((D,), dtype=jnp.float32),
        "pos": nrm((T, D), dtype=jnp.float32),
        "ln_pre_g": jnp.ones((1, D), jnp.float32),
        "ln_pre_b": jnp.zeros((1, D), jnp.float32),
        "ln_post_g": jnp.ones((1, D), jnp.float32),
        "ln_post_b": jnp.zeros((1, D), jnp.float32),
        "proj": nrm((D, OUT_DIM)),
        # MAN head (trainable part of the torch module)
        "h1_w": nrm((OUT_DIM, 512)), "h1_b": jnp.zeros((1, 512), jnp.float32),
        "h2_w": nrm((512, 256)),     "h2_b": jnp.zeros((1, 256), jnp.float32),
        "h3_w": nrm((256, NUM_CLASSES)), "h3_b": jnp.zeros((1, NUM_CLASSES), jnp.float32),
        # transformer block weights, stacked with a leading LAYERS axis
        "ln1_g": jnp.ones((LAYERS, 1, D), jnp.float32),
        "ln1_b": jnp.zeros((LAYERS, 1, D), jnp.float32),
        "qkv_w": nrm((LAYERS, D, 3 * D)),
        "qkv_b": jnp.zeros((LAYERS, 1, 3 * D), jnp.float32),
        "out_w": nrm((LAYERS, D, D)),
        "out_b": jnp.zeros((LAYERS, 1, D), jnp.float32),
        "ln2_g": jnp.ones((LAYERS, 1, D), jnp.float32),
        "ln2_b": jnp.zeros((LAYERS, 1, D), jnp.float32),
        "mlp_w1": nrm((LAYERS, D, MLP)),
        "mlp_b1": jnp.zeros((LAYERS, 1, MLP), jnp.float32),
        "mlp_w2": nrm((LAYERS, MLP, D)),
        "mlp_b2": jnp.zeros((LAYERS, 1, D), jnp.float32),
    }
    return p


# ----------------------------- forward -----------------------------------------
@jax.jit
def openclip_man_forward(x_img, p):
    # torch.no_grad / requires_grad=False on the CLIP tower: stop-grad the frozen params.
    trainable = {"h1_w", "h1_b", "h2_w", "h2_b", "h3_w", "h3_b"}
    p = {k: (v if k in trainable else jax.lax.stop_gradient(v)) for k, v in p.items()}

    # 1) bilinear resize to visual.image_size — one batched Pallas kernel.
    xr = pallas_resize(x_img, p["wh"], p["wwT"])                       # (B, C, IMG, IMG)

    # 2) patchify glue (pure layout) + one zero row per batch for the class-token slot.
    xp = xr.reshape(B, C_IN, GRID, PATCH, GRID, PATCH)
    xp = xp.transpose(0, 2, 4, 1, 3, 5).reshape(B, GRID * GRID, CPP)
    patches = jnp.pad(xp, ((0, 0), (1, 0), (0, 0))).reshape(BT, CPP)   # (B*T, CPP)

    # 3) additive embedding: pos for every token, cls only on class-token rows.
    cls_rows = jnp.zeros((T, D), jnp.float32).at[0].set(p["cls"])
    embed_add = jnp.tile(p["pos"] + cls_rows, (B, 1))                  # (B*T, D)

    # 4) whole encoder + ln_post + projection + MAN head — one fused Pallas kernel
    #    producing a single lane-dense packed slab [logits | act1 | act2 | pad].
    packed = pallas_encoder_head(patches, embed_add, p)                # (B*T, 128)

    # 5) select the class-token rows (0, T, 2T, ...) and unpack.
    cls_out = packed[::T]                                              # (B, 128)
    logits = cls_out[:, :NUM_CLASSES]
    var_list = [cls_out[:, NUM_CLASSES], cls_out[:, NUM_CLASSES + 1]]
    return logits, var_list


# ----------------------------- main --------------------------------------------
if __name__ == "__main__":
    key = jax.random.PRNGKey(0)
    k_x, k_p = jax.random.split(key)
    x = jax.random.normal(k_x, (B, C_IN, H_IN, W_IN), dtype=jnp.float32)  # NCHW
    params = init_params(k_p)

    logits, var_list = openclip_man_forward(x, params)
    jax.block_until_ready(logits)
    jax.block_until_ready(var_list)

    assert logits.shape == (B, NUM_CLASSES)
    assert var_list[0].shape == (B,) and var_list[1].shape == (B,)
    assert jnp.all(jnp.isfinite(logits))
    print("KERNEL_OK")
</pallas_src>

<mosaic_0001>
module attributes {stable_mosaic.version = 11 : i64} {
  func.func @_resize_kernel(%arg0: memref<6x20x20xf32, #tpu.memory_space<vmem>>, %arg1: memref<16x20xf32, #tpu.memory_space<vmem>>, %arg2: memref<20x16xf32, #tpu.memory_space<vmem>>, %arg3: memref<6x16x16xf32, #tpu.memory_space<vmem>>) attributes {dimension_semantics = [], scalar_prefetch = 0 : i64, scratch_operands = 0 : i64, tpu.core_type = #tpu.core_type<tc>} {
    %c0 = arith.constant 0 : index
    %c0_0 = arith.constant 0 : index
    %0 = vector.load %arg1[%c0, %c0_0] : memref<16x20xf32, #tpu.memory_space<vmem>>, vector<16x20xf32>
    %c0_1 = arith.constant 0 : index
    %c0_2 = arith.constant 0 : index
    %1 = vector.load %arg2[%c0_1, %c0_2] : memref<20x16xf32, #tpu.memory_space<vmem>>, vector<20x16xf32>
    %c0_3 = arith.constant 0 : index
    %c0_4 = arith.constant 0 : index
    %c0_5 = arith.constant 0 : index
    %2 = vector.load %arg0[%c0_3, %c0_4, %c0_5] : memref<6x20x20xf32, #tpu.memory_space<vmem>>, vector<1x20x20xf32>
    %3 = vector.shape_cast %2 : vector<1x20x20xf32> to vector<20x20xf32>
    %cst = arith.constant dense<0.000000e+00> : vector<16x20xf32>
    %4 = tpu.matmul %0, %3, %cst {dimension_numbers = #tpu.dot_dimension_numbers<[1], [0], [0], [1], [0, 0, 1, 1], [], []>} : vector<16x20xf32>, vector<20x20xf32>, vector<16x20xf32> -> vector<16x20xf32>
    %cst_6 = arith.constant dense<0.000000e+00> : vector<16x16xf32>
    %5 = tpu.matmul %4, %1, %cst_6 {dimension_numbers = #tpu.dot_dimension_numbers<[1], [0], [0], [1], [0, 0, 1, 1], [], []>} : vector<16x20xf32>, vector<20x16xf32>, vector<16x16xf32> -> vector<16x16xf32>
    %c0_7 = arith.constant 0 : index
    %c0_8 = arith.constant 0 : index
    %c0_9 = arith.constant 0 : index
    %6 = vector.load %arg3[%c0_7, %c0_8, %c0_9] : memref<6x16x16xf32, #tpu.memory_space<vmem>>, vector<1x16x16xf32>
    %7 = vector.shape_cast %6 : vector<1x16x16xf32> to vector<16x16xf32>
    %8 = vector.shape_cast %5 : vector<16x16xf32> to vector<1x16x16xf32>
    tpu.vector_store %arg3[%c0_7, %c0_8, %c0_9], %8 {strides = array<i32>} : memref<6x16x16xf32, #tpu.memory_space<vmem>>, vector<1x16x16xf32>,
    %c1 = arith.constant 1 : index
    %c0_10 = arith.constant 0 : index
    %c0_11 = arith.constant 0 : index
    %9 = vector.load %arg0[%c1, %c0_10, %c0_11] : memref<6x20x20xf32, #tpu.memory_space<vmem>>, vector<1x20x20xf32>
    %10 = vector.shape_cast %9 : vector<1x20x20xf32> to vector<20x20xf32>
    %cst_12 = arith.constant dense<0.000000e+00> : vector<16x20xf32>
    %11 = tpu.matmul %0, %10, %cst_12 {dimension_numbers = #tpu.dot_dimension_numbers<[1], [0], [0], [1], [0, 0, 1, 1], [], []>} : vector<16x20xf32>, vector<20x20xf32>, vector<16x20xf32> -> vector<16x20xf32>
    %cst_13 = arith.constant dense<0.000000e+00> : vector<16x16xf32>
    %12 = tpu.matmul %11, %1, %cst_13 {dimension_numbers = #tpu.dot_dimension_numbers<[1], [0], [0], [1], [0, 0, 1, 1], [], []>} : vector<16x20xf32>, vector<20x16xf32>, vector<16x16xf32> -> vector<16x16xf32>
    %c1_14 = arith.constant 1 : index
    %c0_15 = arith.constant 0 : index
    %c0_16 = arith.constant 0 : index
    %13 = vector.load %arg3[%c1_14, %c0_15, %c0_16] : memref<6x16x16xf32, #tpu.memory_space<vmem>>, vector<1x16x16xf32>
    %14 = vector.shape_cast %13 : vector<1x16x16xf32> to vector<16x16xf32>
    %15 = vector.shape_cast %12 : vector<16x16xf32> to vector<1x16x16xf32>
    tpu.vector_store %arg3[%c1_14, %c0_15, %c0_16], %15 {strides = array<i32>} : memref<6x16x16xf32, #tpu.memory_space<vmem>>, vector<1x16x16xf32>,
    %c2 = arith.constant 2 : index
    %c0_17 = arith.constant 0 : index
    %c0_18 = arith.constant 0 : index
    %16 = vector.load %arg0[%c2, %c0_17, %c0_18] : memref<6x20x20xf32, #tpu.memory_space<vmem>>, vector<1x20x20xf32>
    %17 = vector.shape_cast %16 : vector<1x20x20xf32> to vector<20x20xf32>
    %cst_19 = arith.constant dense<0.000000e+00> : vector<16x20xf32>
    %18 = tpu.matmul %0, %17, %cst_19 {dimension_numbers = #tpu.dot_dimension_numbers<[1], [0], [0], [1], [0, 0, 1, 1], [], []>} : vector<16x20xf32>, vector<20x20xf32>, vector<16x20xf32> -> vector<16x20xf32>
    %cst_20 = arith.constant dense<0.000000e+00> : vector<16x16xf32>
    %19 = tpu.matmul %18, %1, %cst_20 {dimension_numbers = #tpu.dot_dimension_numbers<[1], [0], [0], [1], [0, 0, 1, 1], [], []>} : vector<16x20xf32>, vector<20x16xf32>, vector<16x16xf32> -> vector<16x16xf32>
    %c2_21 = arith.constant 2 : index
    %c0_22 = arith.constant 0 : index
    %c0_23 = arith.constant 0 : index
    %20 = vector.load %arg3[%c2_21, %c0_22, %c0_23] : memref<6x16x16xf32, #tpu.memory_space<vmem>>, vector<1x16x16xf32>
    %21 = vector.shape_cast %20 : vector<1x16x16xf32> to vector<16x16xf32>
    %22 = vector.shape_cast %19 : vector<16x16xf32> to vector<1x16x16xf32>
    tpu.vector_store %arg3[%c2_21, %c0_22, %c0_23], %22 {strides = array<i32>} : memref<6x16x16xf32, #tpu.memory_space<vmem>>, vector<1x16x16xf32>,
    %c3 = arith.constant 3 : index
    %c0_24 = arith.constant 0 : index
    %c0_25 = arith.constant 0 : index
    %23 = vector.load %arg0[%c3, %c0_24, %c0_25] : memref<6x20x20xf32, #tpu.memory_space<vmem>>, vector<1x20x20xf32>
    %24 = vector.shape_cast %23 : vector<1x20x20xf32> to vector<20x20xf32>
    %cst_26 = arith.constant dense<0.000000e+00> : vector<16x20xf32>
    %25 = tpu.matmul %0, %24, %cst_26 {dimension_numbers = #tpu.dot_dimension_numbers<[1], [0], [0], [1], [0, 0, 1, 1], [], []>} : vector<16x20xf32>, vector<20x20xf32>, vector<16x20xf32> -> vector<16x20xf32>
    %cst_27 = arith.constant dense<0.000000e+00> : vector<16x16xf32>
    %26 = tpu.matmul %25, %1, %cst_27 {dimension_numbers = #tpu.dot_dimension_numbers<[1], [0], [0], [1], [0, 0, 1, 1], [], []>} : vector<16x20xf32>, vector<20x16xf32>, vector<16x16xf32> -> vector<16x16xf32>
    %c3_28 = arith.constant 3 : index
    %c0_29 = arith.constant 0 : index
    %c0_30 = arith.constant 0 : index
    %27 = vector.load %arg3[%c3_28, %c0_29, %c0_30] : memref<6x16x16xf32, #tpu.memory_space<vmem>>, vector<1x16x16xf32>
    %28 = vector.shape_cast %27 : vector<1x16x16xf32> to vector<16x16xf32>
    %29 = vector.shape_cast %26 : vector<16x16xf32> to vector<1x16x16xf32>
    tpu.vector_store %arg3[%c3_28, %c0_29, %c0_30], %29 {strides = array<i32>} : memref<6x16x16xf32, #tpu.memory_space<vmem>>, vector<1x16x16xf32>,
    %c4 = arith.constant 4 : index
    %c0_31 = arith.constant 0 : index
    %c0_32 = arith.constant 0 : index
    %30 = vector.load %arg0[%c4, %c0_31, %c0_32] : memref<6x20x20xf32, #tpu.memory_space<vmem>>, vector<1x20x20xf32>
    %31 = vector.shape_cast %30 : vector<1x20x20xf32> to vector<20x20xf32>
    %cst_33 = arith.constant dense<0.000000e+00> : vector<16x20xf32>
    %32 = tpu.matmul %0, %31, %cst_33 {dimension_numbers = #tpu.dot_dimension_numbers<[1], [0], [0], [1], [0, 0, 1, 1], [], []>} : vector<16x20xf32>, vector<20x20xf32>, vector<16x20xf32> -> vector<16x20xf32>
    %cst_34 = arith.constant dense<0.000000e+00> : vector<16x16xf32>
    %33 = tpu.matmul %32, %1, %cst_34 {dimension_numbers = #tpu.dot_dimension_numbers<[1], [0], [0], [1], [0, 0, 1, 1], [], []>} : vector<16x20xf32>, vector<20x16xf32>, vector<16x16xf32> -> vector<16x16xf32>
    %c4_35 = arith.constant 4 : index
    %c0_36 = arith.constant 0 : index
    %c0_37 = arith.constant 0 : index
    %34 = vector.load %arg3[%c4_35, %c0_36, %c0_37] : memref<6x16x16xf32, #tpu.memory_space<vmem>>, vector<1x16x16xf32>
    %35 = vector.shape_cast %34 : vector<1x16x16xf32> to vector<16x16xf32>
    %36 = vector.shape_cast %33 : vector<16x16xf32> to vector<1x16x16xf32>
    tpu.vector_store %arg3[%c4_35, %c0_36, %c0_37], %36 {strides = array<i32>} : memref<6x16x16xf32, #tpu.memory_space<vmem>>, vector<1x16x16xf32>,
    %c5 = arith.constant 5 : index
    %c0_38 = arith.constant 0 : index
    %c0_39 = arith.constant 0 : index
    %37 = vector.load %arg0[%c5, %c0_38, %c0_39] : memref<6x20x20xf32, #tpu.memory_space<vmem>>, vector<1x20x20xf32>
    %38 = vector.shape_cast %37 : vector<1x20x20xf32> to vector<20x20xf32>
    %cst_40 = arith.constant dense<0.000000e+00> : vector<16x20xf32>
    %39 = tpu.matmul %0, %38, %cst_40 {dimension_numbers = #tpu.dot_dimension_numbers<[1], [0], [0], [1], [0, 0, 1, 1], [], []>} : vector<16x20xf32>, vector<20x20xf32>, vector<16x20xf32> -> vector<16x20xf32>
    %cst_41 = arith.constant dense<0.000000e+00> : vector<16x16xf32>
    %40 = tpu.matmul %39, %1, %cst_41 {dimension_numbers = #tpu.dot_dimension_numbers<[1], [0], [0], [1], [0, 0, 1, 1], [], []>} : vector<16x20xf32>, vector<20x16xf32>, vector<16x16xf32> -> vector<16x16xf32>
    %c5_42 = arith.constant 5 : index
    %c0_43 = arith.constant 0 : index
    %c0_44 = arith.constant 0 : index
    %41 = vector.load %arg3[%c5_42, %c0_43, %c0_44] : memref<6x16x16xf32, #tpu.memory_space<vmem>>, vector<1x16x16xf32>
    %42 = vector.shape_cast %41 : vector<1x16x16xf32> to vector<16x16xf32>
    %43 = vector.shape_cast %40 : vector<16x16xf32> to vector<1x16x16xf32>
    tpu.vector_store %arg3[%c5_42, %c0_43, %c0_44], %43 {strides = array<i32>} : memref<6x16x16xf32, #tpu.memory_space<vmem>>, vector<1x16x16xf32>,
    return
  }
}

module attributes {stable_mosaic.version = 11 : i64} {
  func.func @_encoder_head_kernel(%arg0: i32, %arg1: memref<10x192xf32, #tpu.memory_space<vmem>>, %arg2: memref<10x64xf32, #tpu.memory_space<vmem>>, %arg3: memref<192x64xbf16, #tpu.memory_space<vmem>>, %arg4: memref<1x64xf32, #tpu.memory_space<vmem>>, %arg5: memref<1x64xf32, #tpu.memory_space<vmem>>, %arg6: memref<1x1x64xf32, #tpu.memory_space<vmem>>, %arg7: memref<1x1x64xf32, #tpu.memory_space<vmem>>, %arg8: memref<1x64x192xbf16, #tpu.memory_space<vmem>>, %arg9: memref<1x1x192xf32, #tpu.memory_space<vmem>>, %arg10: memref<1x64x64xbf16, #tpu.memory_space<vmem>>, %arg11: memref<1x1x64xf32, #tpu.memory_space<vmem>>, %arg12: memref<1x1x64xf32, #tpu.memory_space<vmem>>, %arg13: memref<1x1x64xf32, #tpu.memory_space<vmem>>, %arg14: memref<1x64x256xbf16, #tpu.memory_space<vmem>>, %arg15: memref<1x1x256xf32, #tpu.memory_space<vmem>>, %arg16: memref<1x256x64xbf16, #tpu.memory_space<vmem>>, %arg17: memref<1x1x64xf32, #tpu.memory_space<vmem>>, %arg18: memref<1x64xf32, #tpu.memory_space<vmem>>, %arg19: memref<1x64xf32, #tpu.memory_space<vmem>>, %arg20: memref<64x64xbf16, #tpu.memory_space<vmem>>, %arg21: memref<64x512xbf16, #tpu.memory_space<vmem>>, %arg22: memref<1x512xf32, #tpu.memory_space<vmem>>, %arg23: memref<512x256xbf16, #tpu.memory_space<vmem>>, %arg24: memref<1x256xf32, #tpu.memory_space<vmem>>, %arg25: memref<256x10xbf16, #tpu.memory_space<vmem>>, %arg26: memref<1x10xf32, #tpu.memory_space<vmem>>, %arg27: memref<10x128xf32, #tpu.memory_space<vmem>>, %arg28: memref<10x64xf32, #tpu.memory_space<vmem>>) attributes {dimension_semantics = [#tpu.dimension_semantics<arbitrary>], iteration_bounds = array<i64: 2>, scalar_prefetch = 0 : i64, scratch_operands = 1 : i64, tpu.core_type = #tpu.core_type<tc>, window_params = [{pipeline_mode = #tpu.pipeline_mode<synchronous>, transform_indices = @transform_0, window_bounds = array<i64: 10, 192>}, {pipeline_mode = #tpu.pipeline_mode<synchronous>, transform_indices = @transform_1, window_bounds = array<i64: 10, 64>}, {pipeline_mode = #tpu.pipeline_mode<synchronous>, transform_indices = @transform_2, window_bounds = array<i64: 192, 64>}, {pipeline_mode = #tpu.pipeline_mode<synchronous>, transform_indices = @transform_3, window_bounds = array<i64: 1, 64>}, {pipeline_mode = #tpu.pipeline_mode<synchronous>, transform_indices = @transform_4, window_bounds = array<i64: 1, 64>}, {transform_indices = @transform_5, window_bounds = array<i64: 1, 1, 64>}, {transform_indices = @transform_6, window_bounds = array<i64: 1, 1, 64>}, {transform_indices = @transform_7, window_bounds = array<i64: 1, 64, 192>}, {transform_indices = @transform_8, window_bounds = array<i64: 1, 1, 192>}, {transform_indices = @transform_9, window_bounds = array<i64: 1, 64, 64>}, {transform_indices = @transform_10, window_bounds = array<i64: 1, 1, 64>}, {transform_indices = @transform_11, window_bounds = array<i64: 1, 1, 64>}, {transform_indices = @transform_12, window_bounds = array<i64: 1, 1, 64>}, {transform_indices = @transform_13, window_bounds = array<i64: 1, 64, 256>}, {transform_indices = @transform_14, window_bounds = array<i64: 1, 1, 256>}, {transform_indices = @transform_15, window_bounds = array<i64: 1, 256, 64>}, {transform_indices = @transform_16, window_bounds = array<i64: 1, 1, 64>}, {pipeline_mode = #tpu.pipeline_mode<synchronous>, transform_indices = @transform_17, window_bounds = array<i64: 1, 64>}, {pipeline_mode = #tpu.pipeline_mode<synchronous>, transform_indices = @transform_18, window_bounds = array<i64: 1, 64>}, {pipeline_mode = #tpu.pipeline_mode<synchronous>, transform_indices = @transform_19, window_bounds = array<i64: 64, 64>}, {pipeline_mode = #tpu.pipeline_mode<synchronous>, transform_indices = @transform_20, window_bounds = array<i64: 64, 512>}, {pipeline_mode = #tpu.pipeline_mode<synchronous>, transform_indices = @transform_21, window_bounds = array<i64: 1, 512>}, {pipeline_mode = #tpu.pipeline_mode<synchronous>, transform_indices = @transform_22, window_bounds = array<i64: 512, 256>}, {pipeline_mode = #tpu.pipeline_mode<synchronous>, transform_indices = @transform_23, window_bounds = array<i64: 1, 256>}, {pipeline_mode = #tpu.pipeline_mode<synchronous>, transform_indices = @transform_24, window_bounds = array<i64: 256, 10>}, {pipeline_mode = #tpu.pipeline_mode<synchronous>, transform_indices = @transform_25, window_bounds = array<i64: 1, 10>}, {pipeline_mode = #tpu.pipeline_mode<synchronous>, transform_indices = @transform_26, window_bounds = array<i64: 10, 128>}]} {
    %c0_i32 = arith.constant 0 : i32
    %0 = arith.cmpi eq, %arg0, %c0_i32 : i32
    %1 = arith.extui %0 : i1 to i32
    %c0_i32_0 = arith.constant 0 : i32
    %2 = arith.cmpi ne, %1, %c0_i32_0 : i32
    scf.if %2 {
      %c0_98 = arith.constant 0 : index
      %c0_99 = arith.constant 0 : index
      %278 = vector.load %arg1[%c0_98, %c0_99] : memref<10x192xf32, #tpu.memory_space<vmem>>, vector<10x192xf32>
      %c0_100 = arith.constant 0 : index
      %c0_101 = arith.constant 0 : index
      %279 = vector.load %arg3[%c0_100, %c0_101] : memref<192x64xbf16, #tpu.memory_space<vmem>>, vector<192x64xbf16>
      %280 = arith.truncf %278 : vector<10x192xf32> to vector<10x192xbf16>
      %cst_102 = arith.constant dense<0.000000e+00> : vector<10x64xf32>
      %281 = tpu.matmul %280, %279, %cst_102 {dimension_numbers = #tpu.dot_dimension_numbers<[1], [0], [0], [1], [0, 0, 1, 1], [], []>} : vector<10x192xbf16>, vector<192x64xbf16>, vector<10x64xf32> -> vector<10x64xf32>
      %c0_103 = arith.constant 0 : index
      %c0_104 = arith.constant 0 : index
      %282 = vector.load %arg2[%c0_103, %c0_104] : memref<10x64xf32, #tpu.memory_space<vmem>>, vector<10x64xf32>
      %283 = arith.addf %281, %282 : vector<10x64xf32>
      %cst_105 = arith.constant dense<0.000000e+00> : vector<10xf32>
      %284 = vector.multi_reduction <add>, %283, %cst_105 [1] : vector<10x64xf32> to vector<10xf32>
      %285 = vector.shape_cast %284 : vector<10xf32> to vector<10x1xf32>
      %cst_106 = arith.constant 6.400000e+01 : f32
      %286 = vector.broadcast %cst_106 : f32 to vector<10x1xf32>
      %287 = arith.divf %285, %286 : vector<10x1xf32>
      %288 = vector.broadcast %287 : vector<10x1xf32> to vector<10x64xf32>
      %289 = arith.subf %283, %288 : vector<10x64xf32>
      %290 = arith.mulf %289, %289 : vector<10x64xf32>
      %cst_107 = arith.constant dense<0.000000e+00> : vector<10xf32>
      %291 = vector.multi_reduction <add>, %290, %cst_107 [1] : vector<10x64xf32> to vector<10xf32>
      %292 = vector.shape_cast %291 : vector<10xf32> to vector<10x1xf32>
      %cst_108 = arith.constant 6.400000e+01 : f32
      %293 = vector.broadcast %cst_108 : f32 to vector<10x1xf32>
      %294 = arith.divf %292, %293 : vector<10x1xf32>
      %295 = vector.broadcast %287 : vector<10x1xf32> to vector<10x64xf32>
      %296 = arith.subf %283, %295 : vector<10x64xf32>
      %cst_109 = arith.constant 9.99999974E-6 : f32
      %297 = vector.broadcast %cst_109 : f32 to vector<10x1xf32>
      %298 = arith.addf %294, %297 : vector<10x1xf32>
      %299 = math.rsqrt %298 : vector<10x1xf32>
      %300 = vector.broadcast %299 : vector<10x1xf32> to vector<10x64xf32>
      %301 = arith.mulf %296, %300 : vector<10x64xf32>
      %c0_110 = arith.constant 0 : index
      %c0_111 = arith.constant 0 : index
      %302 = vector.load %arg4[%c0_110, %c0_111] : memref<1x64xf32, #tpu.memory_space<vmem>>, vector<1x64xf32>
      %303 = vector.broadcast %302 : vector<1x64xf32> to vector<10x64xf32>
      %304 = arith.mulf %301, %303 : vector<10x64xf32>
      %c0_112 = arith.constant 0 : index
      %c0_113 = arith.constant 0 : index
      %305 = vector.load %arg5[%c0_112, %c0_113] : memref<1x64xf32, #tpu.memory_space<vmem>>, vector<1x64xf32>
      %306 = vector.broadcast %305 : vector<1x64xf32> to vector<10x64xf32>
      %307 = arith.addf %304, %306 : vector<10x64xf32>
      %c0_114 = arith.constant 0 : index
      %c0_115 = arith.constant 0 : index
      %308 = vector.load %arg28[%c0_114, %c0_115] : memref<10x64xf32, #tpu.memory_space<vmem>>, vector<10x64xf32>
      tpu.vector_store %arg28[%c0_114, %c0_115], %307 {strides = array<i32>} : memref<10x64xf32, #tpu.memory_space<vmem>>, vector<10x64xf32>,
    } else {
    }
    %c0 = arith.constant 0 : index
    %c0_1 = arith.constant 0 : index
    %3 = vector.load %arg28[%c0, %c0_1] : memref<10x64xf32, #tpu.memory_space<vmem>>, vector<10x64xf32>
    %cst = arith.constant dense<0.000000e+00> : vector<10xf32>
    %4 = vector.multi_reduction <add>, %3, %cst [1] : vector<10x64xf32> to vector<10xf32>
    %5 = vector.shape_cast %4 : vector<10xf32> to vector<10x1xf32>
    %cst_2 = arith.constant 6.400000e+01 : f32
    %6 = vector.broadcast %cst_2 : f32 to vector<10x1xf32>
    %7 = arith.divf %5, %6 : vector<10x1xf32>
    %8 = vector.broadcast %7 : vector<10x1xf32> to vector<10x64xf32>
    %9 = arith.subf %3, %8 : vector<10x64xf32>
    %10 = arith.mulf %9, %9 : vector<10x64xf32>
    %cst_3 = arith.constant dense<0.000000e+00> : vector<10xf32>
    %11 = vector.multi_reduction <add>, %10, %cst_3 [1] : vector<10x64xf32> to vector<10xf32>
    %12 = vector.shape_cast %11 : vector<10xf32> to vector<10x1xf32>
    %cst_4 = arith.constant 6.400000e+01 : f32
    %13 = vector.broadcast %cst_4 : f32 to vector<10x1xf32>
    %14 = arith.divf %12, %13 : vector<10x1xf32>
    %15 = vector.broadcast %7 : vector<10x1xf32> to vector<10x64xf32>
    %16 = arith.subf %3, %15 : vector<10x64xf32>
    %cst_5 = arith.constant 9.99999974E-6 : f32
    %17 = vector.broadcast %cst_5 : f32 to vector<10x1xf32>
    %18 = arith.addf %14, %17 : vector<10x1xf32>
    %19 = math.rsqrt %18 : vector<10x1xf32>
    %20 = vector.broadcast %19 : vector<10x1xf32> to vector<10x64xf32>
    %21 = arith.mulf %16, %20 : vector<10x64xf32>
    %c0_6 = arith.constant 0 : index
    %c0_7 = arith.constant 0 : index
    %c0_8 = arith.constant 0 : index
    %22 = vector.load %arg6[%c0_6, %c0_7, %c0_8] : memref<1x1x64xf32, #tpu.memory_space<vmem>>, vector<1x1x64xf32>
    %23 = vector.shape_cast %22 : vector<1x1x64xf32> to vector<1x64xf32>
    %24 = vector.broadcast %23 : vector<1x64xf32> to vector<10x64xf32>
    %25 = arith.mulf %21, %24 : vector<10x64xf32>
    %c0_9 = arith.constant 0 : index
    %c0_10 = arith.constant 0 : index
    %c0_11 = arith.constant 0 : index
    %26 = vector.load %arg7[%c0_9, %c0_10, %c0_11] : memref<1x1x64xf32, #tpu.memory_space<vmem>>, vector<1x1x64xf32>
    %27 = vector.shape_cast %26 : vector<1x1x64xf32> to vector<1x64xf32>
    %28 = vector.broadcast %27 : vector<1x64xf32> to vector<10x64xf32>
    %29 = arith.addf %25, %28 : vector<10x64xf32>
    %c0_12 = arith.constant 0 : index
    %c0_13 = arith.constant 0 : index
    %c0_14 = arith.constant 0 : index
    %30 = vector.load %arg8[%c0_12, %c0_13, %c0_14] : memref<1x64x192xbf16, #tpu.memory_space<vmem>>, vector<1x64x192xbf16>
    %31 = vector.shape_cast %30 : vector<1x64x192xbf16> to vector<64x192xbf16>
    %32 = arith.truncf %29 : vector<10x64xf32> to vector<10x64xbf16>
    %cst_15 = arith.constant dense<0.000000e+00> : vector<10x192xf32>
    %33 = tpu.matmul %32, %31, %cst_15 {dimension_numbers = #tpu.dot_dimension_numbers<[1], [0], [0], [1], [0, 0, 1, 1], [], []>} : vector<10x64xbf16>, vector<64x192xbf16>, vector<10x192xf32> -> vector<10x192xf32>
    %c0_16 = arith.constant 0 : index
    %c0_17 = arith.constant 0 : index
    %c0_18 = arith.constant 0 : index
    %34 = vector.load %arg9[%c0_16, %c0_17, %c0_18] : memref<1x1x192xf32, #tpu.memory_space<vmem>>, vector<1x1x192xf32>
    %35 = vector.shape_cast %34 : vector<1x1x192xf32> to vector<1x192xf32>
    %36 = vector.broadcast %35 : vector<1x192xf32> to vector<10x192xf32>
    %37 = arith.addf %33, %36 : vector<10x192xf32>
    %38 = vector.extract_strided_slice %37 {offsets = [0, 0], sizes = [5, 16], strides = [1, 1]} : vector<10x192xf32> to vector<5x16xf32>
    %39 = vector.extract_strided_slice %37 {offsets = [0, 64], sizes = [5, 16], strides = [1, 1]} : vector<10x192xf32> to vector<5x16xf32>
    %40 = vector.extract_strided_slice %37 {offsets = [0, 128], sizes = [5, 16], strides = [1, 1]} : vector<10x192xf32> to vector<5x16xf32>
    %41 = arith.truncf %38 : vector<5x16xf32> to vector<5x16xbf16>
    %42 = arith.truncf %39 : vector<5x16xf32> to vector<5x16xbf16>
    %cst_19 = arith.constant dense<0.000000e+00> : vector<5x5xf32>
    %43 = tpu.matmul %41, %42, %cst_19 {dimension_numbers = #tpu.dot_dimension_numbers<[1], [1], [0], [0], [0, 0, 1, 0], [], []>} : vector<5x16xbf16>, vector<5x16xbf16>, vector<5x5xf32> -> vector<5x5xf32>
    %cst_20 = arith.constant 2.500000e-01 : f32
    %44 = vector.broadcast %cst_20 : f32 to vector<5x5xf32>
    %45 = arith.mulf %43, %44 : vector<5x5xf32>
    %cst_21 = arith.constant dense<0xFF800000> : vector<5xf32>
    %46 = vector.multi_reduction <maximumf>, %45, %cst_21 [1] : vector<5x5xf32> to vector<5xf32>
    %47 = vector.shape_cast %46 : vector<5xf32> to vector<5x1xf32>
    %48 = vector.broadcast %47 : vector<5x1xf32> to vector<5x5xf32>
    %49 = arith.subf %45, %48 : vector<5x5xf32>
    %50 = math.exp %49 : vector<5x5xf32>
    %cst_22 = arith.constant dense<0.000000e+00> : vector<5xf32>
    %51 = vector.multi_reduction <add>, %50, %cst_22 [1] : vector<5x5xf32> to vector<5xf32>
    %52 = vector.shape_cast %51 : vector<5xf32> to vector<5x1xf32>
    %53 = tpu.reciprocal %52 {approx = true} : vector<5x1xf32> -> vector<5x1xf32>
    %54 = vector.broadcast %53 : vector<5x1xf32> to vector<5x5xf32>
    %55 = arith.mulf %50, %54 : vector<5x5xf32>
    %56 = arith.truncf %55 : vector<5x5xf32> to vector<5x5xbf16>
    %57 = arith.truncf %40 : vector<5x16xf32> to vector<5x16xbf16>
    %cst_23 = arith.constant dense<0.000000e+00> : vector<5x16xf32>
    %58 = tpu.matmul %56, %57, %cst_23 {dimension_numbers = #tpu.dot_dimension_numbers<[1], [0], [0], [1], [0, 0, 1, 1], [], []>} : vector<5x5xbf16>, vector<5x16xbf16>, vector<5x16xf32> -> vector<5x16xf32>
    %59 = vector.extract_strided_slice %37 {offsets = [0, 16], sizes = [5, 16], strides = [1, 1]} : vector<10x192xf32> to vector<5x16xf32>
    %60 = vector.extract_strided_slice %37 {offsets = [0, 80], sizes = [5, 16], strides = [1, 1]} : vector<10x192xf32> to vector<5x16xf32>
    %61 = vector.extract_strided_slice %37 {offsets = [0, 144], sizes = [5, 16], strides = [1, 1]} : vector<10x192xf32> to vector<5x16xf32>
    %62 = arith.truncf %59 : vector<5x16xf32> to vector<5x16xbf16>
    %63 = arith.truncf %60 : vector<5x16xf32> to vector<5x16xbf16>
    %cst_24 = arith.constant dense<0.000000e+00> : vector<5x5xf32>
    %64 = tpu.matmul %62, %63, %cst_24 {dimension_numbers = #tpu.dot_dimension_numbers<[1], [1], [0], [0], [0, 0, 1, 0], [], []>} : vector<5x16xbf16>, vector<5x16xbf16>, vector<5x5xf32> -> vector<5x5xf32>
    %cst_25 = arith.constant 2.500000e-01 : f32
    %65 = vector.broadcast %cst_25 : f32 to vector<5x5xf32>
    %66 = arith.mulf %64, %65 : vector<5x5xf32>
    %cst_26 = arith.constant dense<0xFF800000> : vector<5xf32>
    %67 = vector.multi_reduction <maximumf>, %66, %cst_26 [1] : vector<5x5xf32> to vector<5xf32>
    %68 = vector.shape_cast %67 : vector<5xf32> to vector<5x1xf32>
    %69 = vector.broadcast %68 : vector<5x1xf32> to vector<5x5xf32>
    %70 = arith.subf %66, %69 : vector<5x5xf32>
    %71 = math.exp %70 : vector<5x5xf32>
    %cst_27 = arith.constant dense<0.000000e+00> : vector<5xf32>
    %72 = vector.multi_reduction <add>, %71, %cst_27 [1] : vector<5x5xf32> to vector<5xf32>
    %73 = vector.shape_cast %72 : vector<5xf32> to vector<5x1xf32>
    %74 = tpu.reciprocal %73 {approx = true} : vector<5x1xf32> -> vector<5x1xf32>
    %75 = vector.broadcast %74 : vector<5x1xf32> to vector<5x5xf32>
    %76 = arith.mulf %71, %75 : vector<5x5xf32>
    %77 = arith.truncf %76 : vector<5x5xf32> to vector<5x5xbf16>
    %78 = arith.truncf %61 : vector<5x16xf32> to vector<5x16xbf16>
    %cst_28 = arith.constant dense<0.000000e+00> : vector<5x16xf32>
    %79 = tpu.matmul %77, %78, %cst_28 {dimension_numbers = #tpu.dot_dimension_numbers<[1], [0], [0], [1], [0, 0, 1, 1], [], []>} : vector<5x5xbf16>, vector<5x16xbf16>, vector<5x16xf32> -> vector<5x16xf32>
    %80 = vector.extract_strided_slice %37 {offsets = [0, 32], sizes = [5, 16], strides = [1, 1]} : vector<10x192xf32> to vector<5x16xf32>
    %81 = vector.extract_strided_slice %37 {offsets = [0, 96], sizes = [5, 16], strides = [1, 1]} : vector<10x192xf32> to vector<5x16xf32>
    %82 = vector.extract_strided_slice %37 {offsets = [0, 160], sizes = [5, 16], strides = [1, 1]} : vector<10x192xf32> to vector<5x16xf32>
    %83 = arith.truncf %80 : vector<5x16xf32> to vector<5x16xbf16>
    %84 = arith.truncf %81 : vector<5x16xf32> to vector<5x16xbf16>
    %cst_29 = arith.constant dense<0.000000e+00> : vector<5x5xf32>
    %85 = tpu.matmul %83, %84, %cst_29 {dimension_numbers = #tpu.dot_dimension_numbers<[1], [1], [0], [0], [0, 0, 1, 0], [], []>} : vector<5x16xbf16>, vector<5x16xbf16>, vector<5x5xf32> -> vector<5x5xf32>
    %cst_30 = arith.constant 2.500000e-01 : f32
    %86 = vector.broadcast %cst_30 : f32 to vector<5x5xf32>
    %87 = arith.mulf %85, %86 : vector<5x5xf32>
    %cst_31 = arith.constant dense<0xFF800000> : vector<5xf32>
    %88 = vector.multi_reduction <maximumf>, %87, %cst_31 [1] : vector<5x5xf32> to vector<5xf32>
    %89 = vector.shape_cast %88 : vector<5xf32> to vector<5x1xf32>
    %90 = vector.broadcast %89 : vector<5x1xf32> to vector<5x5xf32>
    %91 = arith.subf %87, %90 : vector<5x5xf32>
    %92 = math.exp %91 : vector<5x5xf32>
    %cst_32 = arith.constant dense<0.000000e+00> : vector<5xf32>
    %93 = vector.multi_reduction <add>, %92, %cst_32 [1] : vector<5x5xf32> to vector<5xf32>
    %94 = vector.shape_cast %93 : vector<5xf32> to vector<5x1xf32>
    %95 = tpu.reciprocal %94 {approx = true} : vector<5x1xf32> -> vector<5x1xf32>
    %96 = vector.broadcast %95 : vector<5x1xf32> to vector<5x5xf32>
    %97 = arith.mulf %92, %96 : vector<5x5xf32>
    %98 = arith.truncf %97 : vector<5x5xf32> to vector<5x5xbf16>
    %99 = arith.truncf %82 : vector<5x16xf32> to vector<5x16xbf16>
    %cst_33 = arith.constant dense<0.000000e+00> : vector<5x16xf32>
    %100 = tpu.matmul %98, %99, %cst_33 {dimension_numbers = #tpu.dot_dimension_numbers<[1], [0], [0], [1], [0, 0, 1, 1], [], []>} : vector<5x5xbf16>, vector<5x16xbf16>, vector<5x16xf32> -> vector<5x16xf32>
    %101 = vector.extract_strided_slice %37 {offsets = [0, 48], sizes = [5, 16], strides = [1, 1]} : vector<10x192xf32> to vector<5x16xf32>
    %102 = vector.extract_strided_slice %37 {offsets = [0, 112], sizes = [5, 16], strides = [1, 1]} : vector<10x192xf32> to vector<5x16xf32>
    %103 = vector.extract_strided_slice %37 {offsets = [0, 176], sizes = [5, 16], strides = [1, 1]} : vector<10x192xf32> to vector<5x16xf32>
    %104 = arith.truncf %101 : vector<5x16xf32> to vector<5x16xbf16>
    %105 = arith.truncf %102 : vector<5x16xf32> to vector<5x16xbf16>
    %cst_34 = arith.constant dense<0.000000e+00> : vector<5x5xf32>
    %106 = tpu.matmul %104, %105, %cst_34 {dimension_numbers = #tpu.dot_dimension_numbers<[1], [1], [0], [0], [0, 0, 1, 0], [], []>} : vector<5x16xbf16>, vector<5x16xbf16>, vector<5x5xf32> -> vector<5x5xf32>
    %cst_35 = arith.constant 2.500000e-01 : f32
    %107 = vector.broadcast %cst_35 : f32 to vector<5x5xf32>
    %108 = arith.mulf %106, %107 : vector<5x5xf32>
    %cst_36 = arith.constant dense<0xFF800000> : vector<5xf32>
    %109 = vector.multi_reduction <maximumf>, %108, %cst_36 [1] : vector<5x5xf32> to vector<5xf32>
    %110 = vector.shape_cast %109 : vector<5xf32> to vector<5x1xf32>
    %111 = vector.broadcast %110 : vector<5x1xf32> to vector<5x5xf32>
    %112 = arith.subf %108, %111 : vector<5x5xf32>
    %113 = math.exp %112 : vector<5x5xf32>
    %cst_37 = arith.constant dense<0.000000e+00> : vector<5xf32>
    %114 = vector.multi_reduction <add>, %113, %cst_37 [1] : vector<5x5xf32> to vector<5xf32>
    %115 = vector.shape_cast %114 : vector<5xf32> to vector<5x1xf32>
    %116 = tpu.reciprocal %115 {approx = true} : vector<5x1xf32> -> vector<5x1xf32>
    %117 = vector.broadcast %116 : vector<5x1xf32> to vector<5x5xf32>
    %118 = arith.mulf %113, %117 : vector<5x5xf32>
    %119 = arith.truncf %118 : vector<5x5xf32> to vector<5x5xbf16>
    %120 = arith.truncf %103 : vector<5x16xf32> to vector<5x16xbf16>
    %cst_38 = arith.constant dense<0.000000e+00> : vector<5x16xf32>
    %121 = tpu.matmul %119, %120, %cst_38 {dimension_numbers = #tpu.dot_dimension_numbers<[1], [0], [0], [1], [0, 0, 1, 1], [], []>} : vector<5x5xbf16>, vector<5x16xbf16>, vector<5x16xf32> -> vector<5x16xf32>
    %122 = tpu.concatenate %58, %79, %100, %121 in 1 : vector<5x16xf32>, vector<5x16xf32>, vector<5x16xf32>, vector<5x16xf32> -> vector<5x64xf32>
    %123 = vector.extract_strided_slice %37 {offsets = [5, 0], sizes = [5, 16], strides = [1, 1]} : vector<10x192xf32> to vector<5x16xf32>
    %124 = vector.extract_strided_slice %37 {offsets = [5, 64], sizes = [5, 16], strides = [1, 1]} : vector<10x192xf32> to vector<5x16xf32>
    %125 = vector.extract_strided_slice %37 {offsets = [5, 128], sizes = [5, 16], strides = [1, 1]} : vector<10x192xf32> to vector<5x16xf32>
    %126 = arith.truncf %123 : vector<5x16xf32> to vector<5x16xbf16>
    %127 = arith.truncf %124 : vector<5x16xf32> to vector<5x16xbf16>
    %cst_39 = arith.constant dense<0.000000e+00> : vector<5x5xf32>
    %128 = tpu.matmul %126, %127, %cst_39 {dimension_numbers = #tpu.dot_dimension_numbers<[1], [1], [0], [0], [0, 0, 1, 0], [], []>} : vector<5x16xbf16>, vector<5x16xbf16>, vector<5x5xf32> -> vector<5x5xf32>
    %cst_40 = arith.constant 2.500000e-01 : f32
    %129 = vector.broadcast %cst_40 : f32 to vector<5x5xf32>
    %130 = arith.mulf %128, %129 : vector<5x5xf32>
    %cst_41 = arith.constant dense<0xFF800000> : vector<5xf32>
    %131 = vector.multi_reduction <maximumf>, %130, %cst_41 [1] : vector<5x5xf32> to vector<5xf32>
    %132 = vector.shape_cast %131 : vector<5xf32> to vector<5x1xf32>
    %133 = vector.broadcast %132 : vector<5x1xf32> to vector<5x5xf32>
    %134 = arith.subf %130, %133 : vector<5x5xf32>
    %135 = math.exp %134 : vector<5x5xf32>
    %cst_42 = arith.constant dense<0.000000e+00> : vector<5xf32>
    %136 = vector.multi_reduction <add>, %135, %cst_42 [1] : vector<5x5xf32> to vector<5xf32>
    %137 = vector.shape_cast %136 : vector<5xf32> to vector<5x1xf32>
    %138 = tpu.reciprocal %137 {approx = true} : vector<5x1xf32> -> vector<5x1xf32>
    %139 = vector.broadcast %138 : vector<5x1xf32> to vector<5x5xf32>
    %140 = arith.mulf %135, %139 : vector<5x5xf32>
    %141 = arith.truncf %140 : vector<5x5xf32> to vector<5x5xbf16>
    %142 = arith.truncf %125 : vector<5x16xf32> to vector<5x16xbf16>
    %cst_43 = arith.constant dense<0.000000e+00> : vector<5x16xf32>
    %143 = tpu.matmul %141, %142, %cst_43 {dimension_numbers = #tpu.dot_dimension_numbers<[1], [0], [0], [1], [0, 0, 1, 1], [], []>} : vector<5x5xbf16>, vector<5x16xbf16>, vector<5x16xf32> -> vector<5x16xf32>
    %144 = vector.extract_strided_slice %37 {offsets = [5, 16], sizes = [5, 16], strides = [1, 1]} : vector<10x192xf32> to vector<5x16xf32>
    %145 = vector.extract_strided_slice %37 {offsets = [5, 80], sizes = [5, 16], strides = [1, 1]} : vector<10x192xf32> to vector<5x16xf32>
    %146 = vector.extract_strided_slice %37 {offsets = [5, 144], sizes = [5, 16], strides = [1, 1]} : vector<10x192xf32> to vector<5x16xf32>
    %147 = arith.truncf %144 : vector<5x16xf32> to vector<5x16xbf16>
    %148 = arith.truncf %145 : vector<5x16xf32> to vector<5x16xbf16>
    %cst_44 = arith.constant dense<0.000000e+00> : vector<5x5xf32>
    %149 = tpu.matmul %147, %148, %cst_44 {dimension_numbers = #tpu.dot_dimension_numbers<[1], [1], [0], [0], [0, 0, 1, 0], [], []>} : vector<5x16xbf16>, vector<5x16xbf16>, vector<5x5xf32> -> vector<5x5xf32>
    %cst_45 = arith.constant 2.500000e-01 : f32
    %150 = vector.broadcast %cst_45 : f32 to vector<5x5xf32>
    %151 = arith.mulf %149, %150 : vector<5x5xf32>
    %cst_46 = arith.constant dense<0xFF800000> : vector<5xf32>
    %152 = vector.multi_reduction <maximumf>, %151, %cst_46 [1] : vector<5x5xf32> to vector<5xf32>
    %153 = vector.shape_cast %152 : vector<5xf32> to vector<5x1xf32>
    %154 = vector.broadcast %153 : vector<5x1xf32> to vector<5x5xf32>
    %155 = arith.subf %151, %154 : vector<5x5xf32>
    %156 = math.exp %155 : vector<5x5xf32>
    %cst_47 = arith.constant dense<0.000000e+00> : vector<5xf32>
    %157 = vector.multi_reduction <add>, %156, %cst_47 [1] : vector<5x5xf32> to vector<5xf32>
    %158 = vector.shape_cast %157 : vector<5xf32> to vector<5x1xf32>
    %159 = tpu.reciprocal %158 {approx = true} : vector<5x1xf32> -> vector<5x1xf32>
    %160 = vector.broadcast %159 : vector<5x1xf32> to vector<5x5xf32>
    %161 = arith.mulf %156, %160 : vector<5x5xf32>
    %162 = arith.truncf %161 : vector<5x5xf32> to vector<5x5xbf16>
    %163 = arith.truncf %146 : vector<5x16xf32> to vector<5x16xbf16>
    %cst_48 = arith.constant dense<0.000000e+00> : vector<5x16xf32>
    %164 = tpu.matmul %162, %163, %cst_48 {dimension_numbers = #tpu.dot_dimension_numbers<[1], [0], [0], [1], [0, 0, 1, 1], [], []>} : vector<5x5xbf16>, vector<5x16xbf16>, vector<5x16xf32> -> vector<5x16xf32>
    %165 = vector.extract_strided_slice %37 {offsets = [5, 32], sizes = [5, 16], strides = [1, 1]} : vector<10x192xf32> to vector<5x16xf32>
    %166 = vector.extract_strided_slice %37 {offsets = [5, 96], sizes = [5, 16], strides = [1, 1]} : vector<10x192xf32> to vector<5x16xf32>
    %167 = vector.extract_strided_slice %37 {offsets = [5, 160], sizes = [5, 16], strides = [1, 1]} : vector<10x192xf32> to vector<5x16xf32>
    %168 = arith.truncf %165 : vector<5x16xf32> to vector<5x16xbf16>
    %169 = arith.truncf %166 : vector<5x16xf32> to vector<5x16xbf16>
    %cst_49 = arith.constant dense<0.000000e+00> : vector<5x5xf32>
    %170 = tpu.matmul %168, %169, %cst_49 {dimension_numbers = #tpu.dot_dimension_numbers<[1], [1], [0], [0], [0, 0, 1, 0], [], []>} : vector<5x16xbf16>, vector<5x16xbf16>, vector<5x5xf32> -> vector<5x5xf32>
    %cst_50 = arith.constant 2.500000e-01 : f32
    %171 = vector.broadcast %cst_50 : f32 to vector<5x5xf32>
    %172 = arith.mulf %170, %171 : vector<5x5xf32>
    %cst_51 = arith.constant dense<0xFF800000> : vector<5xf32>
    %173 = vector.multi_reduction <maximumf>, %172, %cst_51 [1] : vector<5x5xf32> to vector<5xf32>
    %174 = vector.shape_cast %173 : vector<5xf32> to vector<5x1xf32>
    %175 = vector.broadcast %174 : vector<5x1xf32> to vector<5x5xf32>
    %176 = arith.subf %172, %175 : vector<5x5xf32>
    %177 = math.exp %176 : vector<5x5xf32>
    %cst_52 = arith.constant dense<0.000000e+00> : vector<5xf32>
    %178 = vector.multi_reduction <add>, %177, %cst_52 [1] : vector<5x5xf32> to vector<5xf32>
    %179 = vector.shape_cast %178 : vector<5xf32> to vector<5x1xf32>
    %180 = tpu.reciprocal %179 {approx = true} : vector<5x1xf32> -> vector<5x1xf32>
    %181 = vector.broadcast %180 : vector<5x1xf32> to vector<5x5xf32>
    %182 = arith.mulf %177, %181 : vector<5x5xf32>
    %183 = arith.truncf %182 : vector<5x5xf32> to vector<5x5xbf16>
    %184 = arith.truncf %167 : vector<5x16xf32> to vector<5x16xbf16>
    %cst_53 = arith.constant dense<0.000000e+00> : vector<5x16xf32>
    %185 = tpu.matmul %183, %184, %cst_53 {dimension_numbers = #tpu.dot_dimension_numbers<[1], [0], [0], [1], [0, 0, 1, 1], [], []>} : vector<5x5xbf16>, vector<5x16xbf16>, vector<5x16xf32> -> vector<5x16xf32>
    %186 = vector.extract_strided_slice %37 {offsets = [5, 48], sizes = [5, 16], strides = [1, 1]} : vector<10x192xf32> to vector<5x16xf32>
    %187 = vector.extract_strided_slice %37 {offsets = [5, 112], sizes = [5, 16], strides = [1, 1]} : vector<10x192xf32> to vector<5x16xf32>
    %188 = vector.extract_strided_slice %37 {offsets = [5, 176], sizes = [5, 16], strides = [1, 1]} : vector<10x192xf32> to vector<5x16xf32>
    %189 = arith.truncf %186 : vector<5x16xf32> to vector<5x16xbf16>
    %190 = arith.truncf %187 : vector<5x16xf32> to vector<5x16xbf16>
    %cst_54 = arith.constant dense<0.000000e+00> : vector<5x5xf32>
    %191 = tpu.matmul %189, %190, %cst_54 {dimension_numbers = #tpu.dot_dimension_numbers<[1], [1], [0], [0], [0, 0, 1, 0], [], []>} : vector<5x16xbf16>, vector<5x16xbf16>, vector<5x5xf32> -> vector<5x5xf32>
    %cst_55 = arith.constant 2.500000e-01 : f32
    %192 = vector.broadcast %cst_55 : f32 to vector<5x5xf32>
    %193 = arith.mulf %191, %192 : vector<5x5xf32>
    %cst_56 = arith.constant dense<0xFF800000> : vector<5xf32>
    %194 = vector.multi_reduction <maximumf>, %193, %cst_56 [1] : vector<5x5xf32> to vector<5xf32>
    %195 = vector.shape_cast %194 : vector<5xf32> to vector<5x1xf32>
    %196 = vector.broadcast %195 : vector<5x1xf32> to vector<5x5xf32>
    %197 = arith.subf %193, %196 : vector<5x5xf32>
    %198 = math.exp %197 : vector<5x5xf32>
    %cst_57 = arith.constant dense<0.000000e+00> : vector<5xf32>
    %199 = vector.multi_reduction <add>, %198, %cst_57 [1] : vector<5x5xf32> to vector<5xf32>
    %200 = vector.shape_cast %199 : vector<5xf32> to vector<5x1xf32>
    %201 = tpu.reciprocal %200 {approx = true} : vector<5x1xf32> -> vector<5x1xf32>
    %202 = vector.broadcast %201 : vector<5x1xf32> to vector<5x5xf32>
    %203 = arith.mulf %198, %202 : vector<5x5xf32>
    %204 = arith.truncf %203 : vector<5x5xf32> to vector<5x5xbf16>
    %205 = arith.truncf %188 : vector<5x16xf32> to vector<5x16xbf16>
    %cst_58 = arith.constant dense<0.000000e+00> : vector<5x16xf32>
    %206 = tpu.matmul %204, %205, %cst_58 {dimension_numbers = #tpu.dot_dimension_numbers<[1], [0], [0], [1], [0, 0, 1, 1], [], []>} : vector<5x5xbf16>, vector<5x16xbf16>, vector<5x16xf32> -> vector<5x16xf32>
    %207 = tpu.concatenate %143, %164, %185, %206 in 1 : vector<5x16xf32>, vector<5x16xf32>, vector<5x16xf32>, vector<5x16xf32> -> vector<5x64xf32>
    %208 = tpu.concatenate %122, %207 in 0 : vector<5x64xf32>, vector<5x64xf32> -> vector<10x64xf32>
    %c0_59 = arith.constant 0 : index
    %c0_60 = arith.constant 0 : index
    %c0_61 = arith.constant 0 : index
    %209 = vector.load %arg10[%c0_59, %c0_60, %c0_61] : memref<1x64x64xbf16, #tpu.memory_space<vmem>>, vector<1x64x64xbf16>
    %210 = vector.shape_cast %209 : vector<1x64x64xbf16> to vector<64x64xbf16>
    %211 = arith.truncf %208 : vector<10x64xf32> to vector<10x64xbf16>
    %cst_62 = arith.constant dense<0.000000e+00> : vector<10x64xf32>
    %212 = tpu.matmul %211, %210, %cst_62 {dimension_numbers = #tpu.dot_dimension_numbers<[1], [0], [0], [1], [0, 0, 1, 1], [], []>} : vector<10x64xbf16>, vector<64x64xbf16>, vector<10x64xf32> -> vector<10x64xf32>
    %c0_63 = arith.constant 0 : index
    %c0_64 = arith.constant 0 : index
    %c0_65 = arith.constant 0 : index
    %213 = vector.load %arg11[%c0_63, %c0_64, %c0_65] : memref<1x1x64xf32, #tpu.memory_space<vmem>>, vector<1x1x64xf32>
    %214 = vector.shape_cast %213 : vector<1x1x64xf32> to vector<1x64xf32>
    %215 = vector.broadcast %214 : vector<1x64xf32> to vector<10x64xf32>
    %216 = arith.addf %212, %215 : vector<10x64xf32>
    %217 = arith.addf %3, %216 : vector<10x64xf32>
    %cst_66 = arith.constant dense<0.000000e+00> : vector<10xf32>
    %218 = vector.multi_reduction <add>, %217, %cst_66 [1] : vector<10x64xf32> to vector<10xf32>
    %219 = vector.shape_cast %218 : vector<10xf32> to vector<10x1xf32>
    %cst_67 = arith.constant 6.400000e+01 : f32
    %220 = vector.broadcast %cst_67 : f32 to vector<10x1xf32>
    %221 = arith.divf %219, %220 : vector<10x1xf32>
    %222 = vector.broadcast %221 : vector<10x1xf32> to vector<10x64xf32>
    %223 = arith.subf %217, %222 : vector<10x64xf32>
    %224 = arith.mulf %223, %223 : vector<10x64xf32>
    %cst_68 = arith.constant dense<0.000000e+00> : vector<10xf32>
    %225 = vector.multi_reduction <add>, %224, %cst_68 [1] : vector<10x64xf32> to vector<10xf32>
    %226 = vector.shape_cast %225 : vector<10xf32> to vector<10x1xf32>
    %cst_69 = arith.constant 6.400000e+01 : f32
    %227 = vector.broadcast %cst_69 : f32 to vector<10x1xf32>
    %228 = arith.divf %226, %227 : vector<10x1xf32>
    %229 = vector.broadcast %221 : vector<10x1xf32> to vector<10x64xf32>
    %230 = arith.subf %217, %229 : vector<10x64xf32>
    %cst_70 = arith.constant 9.99999974E-6 : f32
    %231 = vector.broadcast %cst_70 : f32 to vector<10x1xf32>
    %232 = arith.addf %228, %231 : vector<10x1xf32>
    %233 = math.rsqrt %232 : vector<10x1xf32>
    %234 = vector.broadcast %233 : vector<10x1xf32> to vector<10x64xf32>
    %235 = arith.mulf %230, %234 : vector<10x64xf32>
    %c0_71 = arith.constant 0 : index
    %c0_72 = arith.constant 0 : index
    %c0_73 = arith.constant 0 : index
    %236 = vector.load %arg12[%c0_71, %c0_72, %c0_73] : memref<1x1x64xf32, #tpu.memory_space<vmem>>, vector<1x1x64xf32>
    %237 = vector.shape_cast %236 : vector<1x1x64xf32> to vector<1x64xf32>
    %238 = vector.broadcast %237 : vector<1x64xf32> to vector<10x64xf32>
    %239 = arith.mulf %235, %238 : vector<10x64xf32>
    %c0_74 = arith.constant 0 : index
    %c0_75 = arith.constant 0 : index
    %c0_76 = arith.constant 0 : index
    %240 = vector.load %arg13[%c0_74, %c0_75, %c0_76] : memref<1x1x64xf32, #tpu.memory_space<vmem>>, vector<1x1x64xf32>
    %241 = vector.shape_cast %240 : vector<1x1x64xf32> to vector<1x64xf32>
    %242 = vector.broadcast %241 : vector<1x64xf32> to vector<10x64xf32>
    %243 = arith.addf %239, %242 : vector<10x64xf32>
    %c0_77 = arith.constant 0 : index
    %c0_78 = arith.constant 0 : index
    %c0_79 = arith.constant 0 : index
    %244 = vector.load %arg14[%c0_77, %c0_78, %c0_79] : memref<1x64x256xbf16, #tpu.memory_space<vmem>>, vector<1x64x256xbf16>
    %245 = vector.shape_cast %244 : vector<1x64x256xbf16> to vector<64x256xbf16>
    %246 = arith.truncf %243 : vector<10x64xf32> to vector<10x64xbf16>
    %cst_80 = arith.constant dense<0.000000e+00> : vector<10x256xf32>
    %247 = tpu.matmul %246, %245, %cst_80 {dimension_numbers = #tpu.dot_dimension_numbers<[1], [0], [0], [1], [0, 0, 1, 1], [], []>} : vector<10x64xbf16>, vector<64x256xbf16>, vector<10x256xf32> -> vector<10x256xf32>
    %c0_81 = arith.constant 0 : index
    %c0_82 = arith.constant 0 : index
    %c0_83 = arith.constant 0 : index
    %248 = vector.load %arg15[%c0_81, %c0_82, %c0_83] : memref<1x1x256xf32, #tpu.memory_space<vmem>>, vector<1x1x256xf32>
    %249 = vector.shape_cast %248 : vector<1x1x256xf32> to vector<1x256xf32>
    %250 = vector.broadcast %249 : vector<1x256xf32> to vector<10x256xf32>
    %251 = arith.addf %247, %250 : vector<10x256xf32>
    %252 = arith.mulf %251, %251 : vector<10x256xf32>
    %253 = arith.mulf %251, %252 : vector<10x256xf32>
    %cst_84 = arith.constant 4.471500e-02 : f32
    %254 = vector.broadcast %cst_84 : f32 to vector<10x256xf32>
    %255 = arith.mulf %254, %253 : vector<10x256xf32>
    %256 = arith.addf %251, %255 : vector<10x256xf32>
    %cst_85 = arith.constant 0.797884583 : f32
    %257 = vector.broadcast %cst_85 : f32 to vector<10x256xf32>
    %258 = arith.mulf %257, %256 : vector<10x256xf32>
    %259 = math.tanh %258 : vector<10x256xf32>
    %cst_86 = arith.constant 1.000000e+00 : f32
    %260 = vector.broadcast %cst_86 : f32 to vector<10x256xf32>
    %261 = arith.addf %260, %259 : vector<10x256xf32>
    %cst_87 = arith.constant 5.000000e-01 : f32
    %262 = vector.broadcast %cst_87 : f32 to vector<10x256xf32>
    %263 = arith.mulf %262, %261 : vector<10x256xf32>
    %264 = arith.mulf %251, %263 : vector<10x256xf32>
    %c0_88 = arith.constant 0 : index
    %c0_89 = arith.constant 0 : index
    %c0_90 = arith.constant 0 : index
    %265 = vector.load %arg16[%c0_88, %c0_89, %c0_90] : memref<1x256x64xbf16, #tpu.memory_space<vmem>>, vector<1x256x64xbf16>
    %266 = vector.shape_cast %265 : vector<1x256x64xbf16> to vector<256x64xbf16>
    %267 = arith.truncf %264 : vector<10x256xf32> to vector<10x256xbf16>
    %cst_91 = arith.constant dense<0.000000e+00> : vector<10x64xf32>
    %268 = tpu.matmul %267, %266, %cst_91 {dimension_numbers = #tpu.dot_dimension_numbers<[1], [0], [0], [1], [0, 0, 1, 1], [], []>} : vector<10x256xbf16>, vector<256x64xbf16>, vector<10x64xf32> -> vector<10x64xf32>
    %269 = arith.addf %217, %268 : vector<10x64xf32>
    %c0_92 = arith.constant 0 : index
    %c0_93 = arith.constant 0 : index
    %c0_94 = arith.constant 0 : index
    %270 = vector.load %arg17[%c0_92, %c0_93, %c0_94] : memref<1x1x64xf32, #tpu.memory_space<vmem>>, vector<1x1x64xf32>
    %271 = vector.shape_cast %270 : vector<1x1x64xf32> to vector<1x64xf32>
    %272 = vector.broadcast %271 : vector<1x64xf32> to vector<10x64xf32>
    %273 = arith.addf %269, %272 : vector<10x64xf32>
    %c0_95 = arith.constant 0 : index
    %c0_96 = arith.constant 0 : index
    %274 = vector.load %arg28[%c0_95, %c0_96] : memref<10x64xf32, #tpu.memory_space<vmem>>, vector<10x64xf32>
    tpu.vector_store %arg28[%c0_95, %c0_96], %273 {strides = array<i32>} : memref<10x64xf32, #tpu.memory_space<vmem>>, vector<10x64xf32>,
    %c1_i32 = arith.constant 1 : i32
    %275 = arith.cmpi eq, %arg0, %c1_i32 : i32
    %276 = arith.extui %275 : i1 to i32
    %c0_i32_97 = arith.constant 0 : i32
    %277 = arith.cmpi ne, %276, %c0_i32_97 : i32
    scf.if %277 {
      %cst_98 = arith.constant dense<0.000000e+00> : vector<10xf32>
      %278 = vector.multi_reduction <add>, %273, %cst_98 [1] : vector<10x64xf32> to vector<10xf32>
      %279 = vector.shape_cast %278 : vector<10xf32> to vector<10x1xf32>
      %cst_99 = arith.constant 6.400000e+01 : f32
      %280 = vector.broadcast %cst_99 : f32 to vector<10x1xf32>
      %281 = arith.divf %279, %280 : vector<10x1xf32>
      %282 = vector.broadcast %281 : vector<10x1xf32> to vector<10x64xf32>
      %283 = arith.subf %273, %282 : vector<10x64xf32>
      %284 = arith.mulf %283, %283 : vector<10x64xf32>
      %cst_100 = arith.constant dense<0.000000e+00> : vector<10xf32>
      %285 = vector.multi_reduction <add>, %284, %cst_100 [1] : vector<10x64xf32> to vector<10xf32>
      %286 = vector.shape_cast %285 : vector<10xf32> to vector<10x1xf32>
      %cst_101 = arith.constant 6.400000e+01 : f32
      %287 = vector.broadcast %cst_101 : f32 to vector<10x1xf32>
      %288 = arith.divf %286, %287 : vector<10x1xf32>
      %289 = vector.broadcast %281 : vector<10x1xf32> to vector<10x64xf32>
      %290 = arith.subf %273, %289 : vector<10x64xf32>
      %cst_102 = arith.constant 9.99999974E-6 : f32
      %291 = vector.broadcast %cst_102 : f32 to vector<10x1xf32>
      %292 = arith.addf %288, %291 : vector<10x1xf32>
      %293 = math.rsqrt %292 : vector<10x1xf32>
      %294 = vector.broadcast %293 : vector<10x1xf32> to vector<10x64xf32>
      %295 = arith.mulf %290, %294 : vector<10x64xf32>
      %c0_103 = arith.constant 0 : index
      %c0_104 = arith.constant 0 : index
      %296 = vector.load %arg18[%c0_103, %c0_104] : memref<1x64xf32, #tpu.memory_space<vmem>>, vector<1x64xf32>
      %297 = vector.broadcast %296 : vector<1x64xf32> to vector<10x64xf32>
      %298 = arith.mulf %295, %297 : vector<10x64xf32>
      %c0_105 = arith.constant 0 : index
      %c0_106 = arith.constant 0 : index
      %299 = vector.load %arg19[%c0_105, %c0_106] : memref<1x64xf32, #tpu.memory_space<vmem>>, vector<1x64xf32>
      %300 = vector.broadcast %299 : vector<1x64xf32> to vector<10x64xf32>
      %301 = arith.addf %298, %300 : vector<10x64xf32>
      %c0_107 = arith.constant 0 : index
      %c0_108 = arith.constant 0 : index
      %302 = vector.load %arg20[%c0_107, %c0_108] : memref<64x64xbf16, #tpu.memory_space<vmem>>, vector<64x64xbf16>
      %303 = arith.truncf %301 : vector<10x64xf32> to vector<10x64xbf16>
      %cst_109 = arith.constant dense<0.000000e+00> : vector<10x64xf32>
      %304 = tpu.matmul %303, %302, %cst_109 {dimension_numbers = #tpu.dot_dimension_numbers<[1], [0], [0], [1], [0, 0, 1, 1], [], []>} : vector<10x64xbf16>, vector<64x64xbf16>, vector<10x64xf32> -> vector<10x64xf32>
      %c0_110 = arith.constant 0 : index
      %c0_111 = arith.constant 0 : index
      %305 = vector.load %arg21[%c0_110, %c0_111] : memref<64x512xbf16, #tpu.memory_space<vmem>>, vector<64x512xbf16>
      %306 = arith.truncf %304 : vector<10x64xf32> to vector<10x64xbf16>
      %cst_112 = arith.constant dense<0.000000e+00> : vector<10x512xf32>
      %307 = tpu.matmul %306, %305, %cst_112 {dimension_numbers = #tpu.dot_dimension_numbers<[1], [0], [0], [1], [0, 0, 1, 1], [], []>} : vector<10x64xbf16>, vector<64x512xbf16>, vector<10x512xf32> -> vector<10x512xf32>
      %c0_113 = arith.constant 0 : index
      %c0_114 = arith.constant 0 : index
      %308 = vector.load %arg22[%c0_113, %c0_114] : memref<1x512xf32, #tpu.memory_space<vmem>>, vector<1x512xf32>
      %309 = vector.broadcast %308 : vector<1x512xf32> to vector<10x512xf32>
      %310 = arith.addf %307, %309 : vector<10x512xf32>
      %cst_115 = arith.constant 0.000000e+00 : f32
      %311 = vector.broadcast %cst_115 : f32 to vector<10x512xf32>
      %312 = arith.maximumf %310, %311 : vector<10x512xf32>
      %313 = arith.mulf %312, %312 : vector<10x512xf32>
      %cst_116 = arith.constant dense<0.000000e+00> : vector<10xf32>
      %314 = vector.multi_reduction <add>, %313, %cst_116 [1] : vector<10x512xf32> to vector<10xf32>
      %315 = vector.shape_cast %314 : vector<10xf32> to vector<10x1xf32>
      %cst_117 = arith.constant 5.120000e+02 : f32
      %316 = vector.broadcast %cst_117 : f32 to vector<10x1xf32>
      %317 = arith.divf %315, %316 : vector<10x1xf32>
      %c0_118 = arith.constant 0 : index
      %c0_119 = arith.constant 0 : index
      %318 = vector.load %arg23[%c0_118, %c0_119] : memref<512x256xbf16, #tpu.memory_space<vmem>>, vector<512x256xbf16>
      %319 = arith.truncf %312 : vector<10x512xf32> to vector<10x512xbf16>
      %cst_120 = arith.constant dense<0.000000e+00> : vector<10x256xf32>
      %320 = tpu.matmul %319, %318, %cst_120 {dimension_numbers = #tpu.dot_dimension_numbers<[1], [0], [0], [1], [0, 0, 1, 1], [], []>} : vector<10x512xbf16>, vector<512x256xbf16>, vector<10x256xf32> -> vector<10x256xf32>
      %c0_121 = arith.constant 0 : index
      %c0_122 = arith.constant 0 : index
      %321 = vector.load %arg24[%c0_121, %c0_122] : memref<1x256xf32, #tpu.memory_space<vmem>>, vector<1x256xf32>
      %322 = vector.broadcast %321 : vector<1x256xf32> to vector<10x256xf32>
      %323 = arith.addf %320, %322 : vector<10x256xf32>
      %cst_123 = arith.constant 0.000000e+00 : f32
      %324 = vector.broadcast %cst_123 : f32 to vector<10x256xf32>
      %325 = arith.maximumf %323, %324 : vector<10x256xf32>
      %326 = arith.mulf %325, %325 : vector<10x256xf32>
      %cst_124 = arith.constant dense<0.000000e+00> : vector<10xf32>
      %327 = vector.multi_reduction <add>, %326, %cst_124 [1] : vector<10x256xf32> to vector<10xf32>
      %328 = vector.shape_cast %327 : vector<10xf32> to vector<10x1xf32>
      %cst_125 = arith.constant 2.560000e+02 : f32
      %329 = vector.broadcast %cst_125 : f32 to vector<10x1xf32>
      %330 = arith.divf %328, %329 : vector<10x1xf32>
      %c0_126 = arith.constant 0 : index
      %c0_127 = arith.constant 0 : index
      %331 = vector.load %arg25[%c0_126, %c0_127] : memref<256x10xbf16, #tpu.memory_space<vmem>>, vector<256x10xbf16>
      %332 = arith.truncf %325 : vector<10x256xf32> to vector<10x256xbf16>
      %cst_128 = arith.constant dense<0.000000e+00> : vector<10x10xf32>
      %333 = tpu.matmul %332, %331, %cst_128 {dimension_numbers = #tpu.dot_dimension_numbers<[1], [0], [0], [1], [0, 0, 1, 1], [], []>} : vector<10x256xbf16>, vector<256x10xbf16>, vector<10x10xf32> -> vector<10x10xf32>
      %c0_129 = arith.constant 0 : index
      %c0_130 = arith.constant 0 : index
      %334 = vector.load %arg26[%c0_129, %c0_130] : memref<1x10xf32, #tpu.memory_space<vmem>>, vector<1x10xf32>
      %335 = vector.broadcast %334 : vector<1x10xf32> to vector<10x10xf32>
      %336 = arith.addf %333, %335 : vector<10x10xf32>
      %cst_131 = arith.constant 0.000000e+00 : f32
      %337 = vector.broadcast %cst_131 : f32 to vector<10x116xf32>
      %338 = tpu.concatenate %336, %317, %330, %337 in 1 : vector<10x10xf32>, vector<10x1xf32>, vector<10x1xf32>, vector<10x116xf32> -> vector<10x128xf32>
      %c0_132 = arith.constant 0 : index
      %c0_133 = arith.constant 0 : index
      %339 = vector.load %arg27[%c0_132, %c0_133] : memref<10x128xf32, #tpu.memory_space<vmem>>, vector<10x128xf32>
      tpu.vector_store %arg27[%c0_132, %c0_133], %338 {strides = array<i32>} : memref<10x128xf32, #tpu.memory_space<vmem>>, vector<10x128xf32>,
    } else {
    }
    return
  }
  func.func @transform_0(%arg0: i32) -> (i32, i32) {
    %c0_i32 = arith.constant 0 : i32
    %c0_i32_0 = arith.constant 0 : i32
    %c0_i32_1 = arith.constant 0 : i32
    return %c0_i32, %c0_i32_0 : i32, i32
  }
  func.func @transform_1(%arg0: i32) -> (i32, i32) {
    %c0_i32 = arith.constant 0 : i32
    %c0_i32_0 = arith.constant 0 : i32
    %c0_i32_1 = arith.constant 0 : i32
    return %c0_i32, %c0_i32_0 : i32, i32
  }
  func.func @transform_2(%arg0: i32) -> (i32, i32) {
    %c0_i32 = arith.constant 0 : i32
    %c0_i32_0 = arith.constant 0 : i32
    %c0_i32_1 = arith.constant 0 : i32
    return %c0_i32, %c0_i32_0 : i32, i32
  }
  func.func @transform_3(%arg0: i32) -> (i32, i32) {
    %c0_i32 = arith.constant 0 : i32
    %c0_i32_0 = arith.constant 0 : i32
    %c0_i32_1 = arith.constant 0 : i32
    return %c0_i32, %c0_i32_0 : i32, i32
  }
  func.func @transform_4(%arg0: i32) -> (i32, i32) {
    %c0_i32 = arith.constant 0 : i32
    %c0_i32_0 = arith.constant 0 : i32
    %c0_i32_1 = arith.constant 0 : i32
    return %c0_i32, %c0_i32_0 : i32, i32
  }
  func.func @transform_5(%arg0: i32) -> (i32, i32, i32) {
    %c0_i32 = arith.constant 0 : i32
    %c0_i32_0 = arith.constant 0 : i32
    %c0_i32_1 = arith.constant 0 : i32
    return %arg0, %c0_i32, %c0_i32_0 : i32, i32, i32
  }
  func.func @transform_6(%arg0: i32) -> (i32, i32, i32) {
    %c0_i32 = arith.constant 0 : i32
    %c0_i32_0 = arith.constant 0 : i32
    %c0_i32_1 = arith.constant 0 : i32
    return %arg0, %c0_i32, %c0_i32_0 : i32, i32, i32
  }
  func.func @transform_7(%arg0: i32) -> (i32, i32, i32) {
    %c0_i32 = arith.constant 0 : i32
    %c0_i32_0 = arith.constant 0 : i32
    %c0_i32_1 = arith.constant 0 : i32
    return %arg0, %c0_i32, %c0_i32_0 : i32, i32, i32
  }
  func.func @transform_8(%arg0: i32) -> (i32, i32, i32) {
    %c0_i32 = arith.constant 0 : i32
    %c0_i32_0 = arith.constant 0 : i32
    %c0_i32_1 = arith.constant 0 : i32
    return %arg0, %c0_i32, %c0_i32_0 : i32, i32, i32
  }
  func.func @transform_9(%arg0: i32) -> (i32, i32, i32) {
    %c0_i32 = arith.constant 0 : i32
    %c0_i32_0 = arith.constant 0 : i32
    %c0_i32_1 = arith.constant 0 : i32
    return %arg0, %c0_i32, %c0_i32_0 : i32, i32, i32
  }
  func.func @transform_10(%arg0: i32) -> (i32, i32, i32) {
    %c0_i32 = arith.constant 0 : i32
    %c0_i32_0 = arith.constant 0 : i32
    %c0_i32_1 = arith.constant 0 : i32
    return %arg0, %c0_i32, %c0_i32_0 : i32, i32, i32
  }
  func.func @transform_11(%arg0: i32) -> (i32, i32, i32) {
    %c0_i32 = arith.constant 0 : i32
    %c0_i32_0 = arith.constant 0 : i32
    %c0_i32_1 = arith.constant 0 : i32
    return %arg0, %c0_i32, %c0_i32_0 : i32, i32, i32
  }
  func.func @transform_12(%arg0: i32) -> (i32, i32, i32) {
    %c0_i32 = arith.constant 0 : i32
    %c0_i32_0 = arith.constant 0 : i32
    %c0_i32_1 = arith.constant 0 : i32
    return %arg0, %c0_i32, %c0_i32_0 : i32, i32, i32
  }
  func.func @transform_13(%arg0: i32) -> (i32, i32, i32) {
    %c0_i32 = arith.constant 0 : i32
    %c0_i32_0 = arith.constant 0 : i32
    %c0_i32_1 = arith.constant 0 : i32
    return %arg0, %c0_i32, %c0_i32_0 : i32, i32, i32
  }
  func.func @transform_14(%arg0: i32) -> (i32, i32, i32) {
    %c0_i32 = arith.constant 0 : i32
    %c0_i32_0 = arith.constant 0 : i32
    %c0_i32_1 = arith.constant 0 : i32
    return %arg0, %c0_i32, %c0_i32_0 : i32, i32, i32
  }
  func.func @transform_15(%arg0: i32) -> (i32, i32, i32) {
    %c0_i32 = arith.constant 0 : i32
    %c0_i32_0 = arith.constant 0 : i32
    %c0_i32_1 = arith.constant 0 : i32
    return %arg0, %c0_i32, %c0_i32_0 : i32, i32, i32
  }
  func.func @transform_16(%arg0: i32) -> (i32, i32, i32) {
    %c0_i32 = arith.constant 0 : i32
    %c0_i32_0 = arith.constant 0 : i32
    %c0_i32_1 = arith.constant 0 : i32
    return %arg0, %c0_i32, %c0_i32_0 : i32, i32, i32
  }
  func.func @transform_17(%arg0: i32) -> (i32, i32) {
    %c0_i32 = arith.constant 0 : i32
    %c0_i32_0 = arith.constant 0 : i32
    %c0_i32_1 = arith.constant 0 : i32
    return %c0_i32, %c0_i32_0 : i32, i32
  }
  func.func @transform_18(%arg0: i32) -> (i32, i32) {
    %c0_i32 = arith.constant 0 : i32
    %c0_i32_0 = arith.constant 0 : i32
    %c0_i32_1 = arith.constant 0 : i32
    return %c0_i32, %c0_i32_0 : i32, i32
  }
  func.func @transform_19(%arg0: i32) -> (i32, i32) {
    %c0_i32 = arith.constant 0 : i32
    %c0_i32_0 = arith.constant 0 : i32
    %c0_i32_1 = arith.constant 0 : i32
    return %c0_i32, %c0_i32_0 : i32, i32
  }
  func.func @transform_20(%arg0: i32) -> (i32, i32) {
    %c0_i32 = arith.constant 0 : i32
    %c0_i32_0 = arith.constant 0 : i32
    %c0_i32_1 = arith.constant 0 : i32
    return %c0_i32, %c0_i32_0 : i32, i32
  }
  func.func @transform_21(%arg0: i32) -> (i32, i32) {
    %c0_i32 = arith.constant 0 : i32
    %c0_i32_0 = arith.constant 0 : i32
    %c0_i32_1 = arith.constant 0 : i32
    return %c0_i32, %c0_i32_0 : i32, i32
  }
  func.func @transform_22(%arg0: i32) -> (i32, i32) {
    %c0_i32 = arith.constant 0 : i32
    %c0_i32_0 = arith.constant 0 : i32
    %c0_i32_1 = arith.constant 0 : i32
    return %c0_i32, %c0_i32_0 : i32, i32
  }
  func.func @transform_23(%arg0: i32) -> (i32, i32) {
    %c0_i32 = arith.constant 0 : i32
    %c0_i32_0 = arith.constant 0 : i32
    %c0_i32_1 = arith.constant 0 : i32
    return %c0_i32, %c0_i32_0 : i32, i32
  }
  func.func @transform_24(%arg0: i32) -> (i32, i32) {
    %c0_i32 = arith.constant 0 : i32
    %c0_i32_0 = arith.constant 0 : i32
    %c0_i32_1 = arith.constant 0 : i32
    return %c0_i32, %c0_i32_0 : i32, i32
  }
  func.func @transform_25(%arg0: i32) -> (i32, i32) {
    %c0_i32 = arith.constant 0 : i32
    %c0_i32_0 = arith.constant 0 : i32
    %c0_i32_1 = arith.constant 0 : i32
    return %c0_i32, %c0_i32_0 : i32, i32
  }
  func.func @transform_26(%arg0: i32) -> (i32, i32) {
    %c0_i32 = arith.constant 0 : i32
    %c0_i32_0 = arith.constant 0 : i32
    %c0_i32_1 = arith.constant 0 : i32
    return %c0_i32, %c0_i32_0 : i32, i32
  }
}

</mosaic_0001>

<llo_original>
// kernel: tile.9
$region0: #{tile.9}
  %s0 = inlined_call_operand.vmem [shape: f32[2,5,64], index: 0, kind: input, shape index: {}]
  %s1 = inlined_call_operand.vmem [shape: f32[10,64], index: 1, kind: output, shape index: {}]
  %v2 = vld [vmem:[%s0] sm:$0x1f]
  %vm3 = vcmask 523264
  %4 = vst.msk [vmem:[%s1] sm:$0x1f] %vm3, %v2
  %s5 = scalar_lea.vmem %s0, 8
  %v6 = vld [vmem:[%s5] sm:$0x1f]
  %vm7 = vcmask 523264
  %s8 = scalar_lea.vmem %s1, 5
  %9 = vst.msk [vmem:[%s8] sm:$0x1f] %vm7, %v6

// kernel: openclip_man_forward.2
$region0: #{openclip_man_forward.2}
  #allocation0 [shape = 'u32[]', space=smem, size = 0x4, offset = 0x4, fixed_abs, tag = 'smem constant byte address 0x4 - core index']
  #allocation1 [shape = 'u32[144,128]{1,0:T(1,128)}', space=vmem, size = 0x12000, scoped, tag = 'internal scratch']
  %s0 = inlined_call_operand.vmem [shape: f32[6,20,20], index: 0, kind: input, shape index: {}]
  %s1 = inlined_call_operand.vmem [shape: f32[16,20], index: 1, kind: input, shape index: {}]
  %s2 = inlined_call_operand.vmem [shape: f32[20,16], index: 2, kind: input, shape index: {}]
  %s3 = inlined_call_operand.vmem [shape: f32[6,16,16], index: 3, kind: output, shape index: {}]
  %s4 = sld [smem:[#allocation0]]
  $region22: #{openclip_man_forward.2} parent=0
    _
  %s6 = ssub.s32 1, %s4
  %s7 = scalar_select 0, %s6, %s4
  // Predicated region
  $region2: #{openclip_man_forward.2} parent=0 // pred_check
    _
  $region3: #{openclip_man_forward.2} parent=0 // pred_check_branch
    %9 = sbr.rel (0) target = $region5
  $region4: #{openclip_man_forward.2} parent=0 // pred_region
    _
  $region5: #{openclip_man_forward.2} parent=0 // pred_fallthru
    _
  // Predicated region
  $region6: #{openclip_man_forward.2} parent=0 // pred_check
    _
  $region7: #{openclip_man_forward.2} parent=0 // pred_check_branch
    %11 = sbr.rel (0) target = $region9
  $region8: #{openclip_man_forward.2} parent=0 // pred_region
    _
  $region9: #{openclip_man_forward.2} parent=0 // pred_fallthru
    _
  // Predicated region
  $region10: #{openclip_man_forward.2} parent=0 // pred_check
    _
  $region11: #{openclip_man_forward.2} parent=0 // pred_check_branch
    %13 = sbr.rel (0) target = $region13
  $region12: #{openclip_man_forward.2} parent=0 // pred_region
    _
  $region13: #{openclip_man_forward.2} parent=0 // pred_fallthru
    _
  %v14 = vld [vmem:[%s1] sm:$0xff]
  %v15 = vld [vmem:[%s1 + $0x8] sm:$0xff]
  %v16 = vld [vmem:[%s2] sm:$0xff]
  %v17 = vld [vmem:[%s2 + $0x8] sm:$0xff]
  %v18 = vld [vmem:[%s2 + $0x10] sm:$0xf]
  %v19 = vld [vmem:[%s0] sm:$0xff]
  %v20 = vld [vmem:[%s0 + $0x8] sm:$0xff]
  %v21 = vld [vmem:[%s0 + $0x10] sm:$0xf]
  %vm22 = vcmask 162816
  %v24 = vsel %vm22, %v14, 0
  %v27 = vsel %vm22, %v15, 0
  %vm29 = vcmask 1043456
  %v31 = vsel %vm29, %v21, 0
  %33 = vmatprep.subr.mxu0 0.0
  %34 = vmatpush1.msra.mxu0 0.0
  %35 = vmatprep.subr.mxu0 0.0
  %36 = vmatpush1.msra.mxu0 0.0
  %37 = vmatprep.subr.mxu0 0.0
  %38 = vmatpush1.msra.mxu0 0.0
  %39 = vmatprep.subr.mxu0 0.0
  %40 = vmatpush1.msra.mxu0 0.0
  %41 = vmatprep.subr.mxu0 0.0
  %42 = vmatpush1.msra.mxu0 0.0
  %43 = vmatprep.subr.mxu0 0.0
  %44 = vmatpush1.msra.mxu0 0.0
  %45 = vmatprep.subr.mxu0 0.0
  %46 = vmatpush1.msra.mxu0 0.0
  %47 = vmatprep.subr.mxu0 0.0
  %48 = vmatpush1.msra.mxu0 0.0
  %49 = vmatprep.subr.mxu0 0.0
  %50 = vmatpush1.msra.mxu0 0.0
  %51 = vmatprep.subr.mxu0 0.0
  %52 = vmatpush1.msra.mxu0 0.0
  %53 = vmatprep.subr.mxu0 0.0
  %54 = vmatpush1.msra.mxu0 0.0
  %55 = vmatprep.subr.mxu0 0.0
  %56 = vmatpush1.msra.mxu0 0.0
  %57 = vmatprep.subr.mxu0 0.0
  %58 = vmatpush1.msra.mxu0 0.0
  %59 = vmatprep.subr.mxu0 0.0
  %60 = vmatpush1.msra.mxu0 %v31
  %61 = vmatprep.subr.mxu0 0.0
  %62 = vmatpush1.msra.mxu0 %v20
  %63 = vmatprep.subr.mxu0 0.0
  %64 = vmatpush1.msra.mxu0 %v19
  %65 = vmatprep.subr.mxu0 0.0
  %66 = vmatpush2.msra.mxu0 0.0
  %67 = vmatprep.subr.mxu0 0.0
  %68 = vmatpush2.msra.mxu0 0.0
  %69 = vmatprep.subr.mxu0 0.0
  %70 = vmatpush2.msra.mxu0 0.0
  %71 = vmatprep.subr.mxu0 0.0
  %72 = vmatpush2.msra.mxu0 0.0
  %73 = vmatprep.subr.mxu0 0.0
  %74 = vmatpush2.msra.mxu0 0.0
  %75 = vmatprep.subr.mxu0 0.0
  %76 = vmatpush2.msra.mxu0 0.0
  %77 = vmatprep.subr.mxu0 0.0
  %78 = vmatpush2.msra.mxu0 0.0
  %79 = vmatprep.subr.mxu0 0.0
  %80 = vmatpush2.msra.mxu0 0.0
  %81 = vmatprep.subr.mxu0 0.0
  %82 = vmatpush2.msra.mxu0 0.0
  %83 = vmatprep.subr.mxu0 0.0
  %84 = vmatpush2.msra.mxu0 0.0
  %85 = vmatprep.subr.mxu0 0.0
  %86 = vmatpush2.msra.mxu0 0.0
  %87 = vmatprep.subr.mxu0 0.0
  %88 = vmatpush2.msra.mxu0 0.0
  %89 = vmatprep.subr.mxu0 0.0
  %90 = vmatpush2.msra.mxu0 0.0
  %91 = vmatprep.subr.mxu0 0.0
  %92 = vmatpush2.msra.mxu0 0.0
  %93 = vmatprep.subr.mxu0 0.0
  %94 = vmatpush2.msra.mxu0 0.0
  %95 = vmatprep.subr.mxu0 0.0
  %96 = vmatpush2.msra.mxu0 0.0
  %97 = vmatprep.mubr.f32.mxu0 0.0
  %98 = vmatmul.mubr.f32.gmra.mxu0 %v24
  %v99 = vpop.f32.mrf.mxu0
  %v100 = vadd.f32 0.0, %v99
  %v101 = vpop.f32.mrf.mxu0
  %102 = vmatprep.mubr.f32.mxu0 0.0
  %103 = vmatmul.mubr.f32.gmra.mxu0 %v27
  %v104 = vpop.f32.mrf.mxu0
  %v105 = vadd.f32 0.0, %v104
  %v106 = vpop.f32.mrf.mxu0
  %107 = vdwg.mxu0
  %v109 = vsel %vm22, %v100, 0
  %v112 = vsel %vm22, %v105, 0
  %v115 = vsel %vm29, %v18, 0
  %117 = vmatprep.subr.mxu0 0.0
  %118 = vmatpush1.msra.mxu0 0.0
  %119 = vmatprep.subr.mxu0 0.0
  %120 = vmatpush1.msra.mxu0 0.0
  %121 = vmatprep.subr.mxu0 0.0
  %122 = vmatpush1.msra.mxu0 0.0
  %123 = vmatprep.subr.mxu0 0.0
  %124 = vmatpush1.msra.mxu0 0.0
  %125 = vmatprep.subr.mxu0 0.0
  %126 = vmatpush1.msra.mxu0 0.0
  %127 = vmatprep.subr.mxu0 0.0
  %128 = vmatpush1.msra.mxu0 0.0
  %129 = vmatprep.subr.mxu0 0.0
  %130 = vmatpush1.msra.mxu0 0.0
  %131 = vmatprep.subr.mxu0 0.0
  %132 = vmatpush1.msra.mxu0 0.0
  %133 = vmatprep.subr.mxu0 0.0
  %134 = vmatpush1.msra.mxu0 0.0
  %135 = vmatprep.subr.mxu0 0.0
  %136 = vmatpush1.msra.mxu0 0.0
  %137 = vmatprep.subr.mxu0 0.0
  %138 = vmatpush1.msra.mxu0 0.0
  %139 = vmatprep.subr.mxu0 0.0
  %140 = vmatpush1.msra.mxu0 0.0
  %141 = vmatprep.subr.mxu0 0.0
  %142 = vmatpush1.msra.mxu0 0.0
  %143 = vmatprep.subr.mxu0 0.0
  %144 = vmatpush1.msra.mxu0 %v115
  %145 = vmatprep.subr.mxu0 0.0
  %146 = vmatpush1.msra.mxu0 %v17
  %147 = vmatprep.subr.mxu0 0.0
  %148 = vmatpush1.msra.mxu0 %v16
  %149 = vmatprep.subr.mxu0 0.0
  %150 = vmatpush2.msra.mxu0 0.0
  %151 = vmatprep.subr.mxu0 0.0
  %152 = vmatpush2.msra.mxu0 0.0
  %153 = vmatprep.subr.mxu0 0.0
  %154 = vmatpush2.msra.mxu0 0.0
  %155 = vmatprep.subr.mxu0 0.0
  %156 = vmatpush2.msra.mxu0 0.0
  %157 = vmatprep.subr.mxu0 0.0
  %158 = vmatpush2.msra.mxu0 0.0
  %159 = vmatprep.subr.mxu0 0.0
  %160 = vmatpush2.msra.mxu0 0.0
  %161 = vmatprep.subr.mxu0 0.0
  %162 = vmatpush2.msra.mxu0 0.0
  %163 = vmatprep.subr.mxu0 0.0
  %164 = vmatpush2.msra.mxu0 0.0
  %165 = vmatprep.subr.mxu0 0.0
  %166 = vmatpush2.msra.mxu0 0.0
  %167 = vmatprep.subr.mxu0 0.0
  %168 = vmatpush2.msra.mxu0 0.0
  %169 = vmatprep.subr.mxu0 0.0
  %170 = vmatpush2.msra.mxu0 0.0
  %171 = vmatprep.subr.mxu0 0.0
  %172 = vmatpush2.msra.mxu0 0.0
  %173 = vmatprep.subr.mxu0 0.0
  %174 = vmatpush2.msra.mxu0 0.0
  %175 = vmatprep.subr.mxu0 0.0
  %176 = vmatpush2.msra.mxu0 0.0
  %177 = vmatprep.subr.mxu0 0.0
  %178 = vmatpush2.msra.mxu0 0.0
  %179 = vmatprep.subr.mxu0 0.0
  %180 = vmatpush2.msra.mxu0 0.0
  %181 = vmatprep.mubr.f32.mxu0 0.0
  %182 = vmatmul.mubr.f32.gmra.mxu0 %v109
  %v183 = vpop.f32.mrf.mxu0
  %v184 = vadd.f32 0.0, %v183
  %v185 = vpop.f32.mrf.mxu0
  %186 = vmatprep.mubr.f32.mxu0 0.0
  %187 = vmatmul.mubr.f32.gmra.mxu0 %v112
  %v188 = vpop.f32.mrf.mxu0
  %v189 = vadd.f32 0.0, %v188
  %v190 = vpop.f32.mrf.mxu0
  %191 = vdwg.mxu0
  %vm192 = vcmask 130048
  %193 = vst.msk [vmem:[%s3] sm:$0xff] %vm192, %v184
  %194 = vst.msk [vmem:[%s3 + $0x8] sm:$0xff] %vm192, %v189
  %s195 = scalar_lea.vmem %s0, 24
  %v196 = vld [vmem:[%s195] sm:$0xff]
  %v197 = vld [vmem:[%s195 + $0x8] sm:$0xff]
  %v198 = vld [vmem:[%s195 + $0x10] sm:$0xf]
  %v200 = vsel %vm29, %v198, 0
  %202 = vmatprep.subr.mxu0 0.0
  %203 = vmatpush1.msra.mxu0 0.0
  %204 = vmatprep.subr.mxu0 0.0
  %205 = vmatpush1.msra.mxu0 0.0
  %206 = vmatprep.subr.mxu0 0.0
  %207 = vmatpush1.msra.mxu0 0.0
  %208 = vmatprep.subr.mxu0 0.0
  %209 = vmatpush1.msra.mxu0 0.0
  %210 = vmatprep.subr.mxu0 0.0
  %211 = vmatpush1.msra.mxu0 0.0
  %212 = vmatprep.subr.mxu0 0.0
  %213 = vmatpush1.msra.mxu0 0.0
  %214 = vmatprep.subr.mxu0 0.0
  %215 = vmatpush1.msra.mxu0 0.0
  %216 = vmatprep.subr.mxu0 0.0
  %217 = vmatpush1.msra.mxu0 0.0
  %218 = vmatprep.subr.mxu0 0.0
  %219 = vmatpush1.msra.mxu0 0.0
  %220 = vmatprep.subr.mxu0 0.0
  %221 = vmatpush1.msra.mxu0 0.0
  %222 = vmatprep.subr.mxu0 0.0
  %223 = vmatpush1.msra.mxu0 0.0
  %224 = vmatprep.subr.mxu0 0.0
  %225 = vmatpush1.msra.mxu0 0.0
  %226 = vmatprep.subr.mxu0 0.0
  %227 = vmatpush1.msra.mxu0 0.0
  %228 = vmatprep.subr.mxu0 0.0
  %229 = vmatpush1.msra.mxu0 %v200
  %230 = vmatprep.subr.mxu0 0.0
  %231 = vmatpush1.msra.mxu0 %v197
  %232 = vmatprep.subr.mxu0 0.0
  %233 = vmatpush1.msra.mxu0 %v196
  %234 = vmatprep.subr.mxu0 0.0
  %235 = vmatpush2.msra.mxu0 0.0
  %236 = vmatprep.subr.mxu0 0.0
  %237 = vmatpush2.msra.mxu0 0.0
  %238 = vmatprep.subr.mxu0 0.0
  %239 = vmatpush2.msra.mxu0 0.0
  %240 = vmatprep.subr.mxu0 0.0
  %241 = vmatpush2.msra.mxu0 0.0
  %242 = vmatprep.subr.mxu0 0.0
  %243 = vmatpush2.msra.mxu0 0.0
  %244 = vmatprep.subr.mxu0 0.0
  %245 = vmatpush2.msra.mxu0 0.0
  %246 = vmatprep.subr.mxu0 0.0
  %247 = vmatpush2.msra.mxu0 0.0
  %248 = vmatprep.subr.mxu0 0.0
  %249 = vmatpush2.msra.mxu0 0.0
  %250 = vmatprep.subr.mxu0 0.0
  %251 = vmatpush2.msra.mxu0 0.0
  %252 = vmatprep.subr.mxu0 0.0
  %253 = vmatpush2.msra.mxu0 0.0
  %254 = vmatprep.subr.mxu0 0.0
  %255 = vmatpush2.msra.mxu0 0.0
  %256 = vmatprep.subr.mxu0 0.0
  %257 = vmatpush2.msra.mxu0 0.0
  %258 = vmatprep.subr.mxu0 0.0
  %259 = vmatpush2.msra.mxu0 0.0
  %260 = vmatprep.subr.mxu0 0.0
  %261 = vmatpush2.msra.mxu0 0.0
  %262 = vmatprep.subr.mxu0 0.0
  %263 = vmatpush2.msra.mxu0 0.0
  %264 = vmatprep.subr.mxu0 0.0
  %265 = vmatpush2.msra.mxu0 0.0
  %266 = vmatprep.mubr.f32.mxu0 0.0
  %267 = vmatmul.mubr.f32.gmra.mxu0 %v24
  %v268 = vpop.f32.mrf.mxu0
  %v269 = vadd.f32 0.0, %v268
  %v270 = vpop.f32.mrf.mxu0
  %271 = vmatprep.mubr.f32.mxu0 0.0
  %272 = vmatmul.mubr.f32.gmra.mxu0 %v27
  %v273 = vpop.f32.mrf.mxu0
  %v274 = vadd.f32 0.0, %v273
  %v275 = vpop.f32.mrf.mxu0
  %276 = vdwg.mxu0
  %v278 = vsel %vm22, %v269, 0
  %v281 = vsel %vm22, %v274, 0
  %283 = vmatprep.subr.mxu0 0.0
  %284 = vmatpush1.msra.mxu0 0.0
  %285 = vmatprep.subr.mxu0 0.0
  %286 = vmatpush1.msra.mxu0 0.0
  %287 = vmatprep.subr.mxu0 0.0
  %288 = vmatpush1.msra.mxu0 0.0
  %289 = vmatprep.subr.mxu0 0.0
  %290 = vmatpush1.msra.mxu0 0.0
  %291 = vmatprep.subr.mxu0 0.0
  %292 = vmatpush1.msra.mxu0 0.0
  %293 = vmatprep.subr.mxu0 0.0
  %294 = vmatpush1.msra.mxu0 0.0
  %295 = vmatprep.subr.mxu0 0.0
  %296 = vmatpush1.msra.mxu0 0.0
  %297 = vmatprep.subr.mxu0 0.0
  %298 = vmatpush1.msra.mxu0 0.0
  %299 = vmatprep.subr.mxu0 0.0
  %300 = vmatpush1.msra.mxu0 0.0
  %301 = vmatprep.subr.mxu0 0.0
  %302 = vmatpush1.msra.mxu0 0.0
  %303 = vmatprep.subr.mxu0 0.0
  %304 = vmatpush1.msra.mxu0 0.0
  %305 = vmatprep.subr.mxu0 0.0
  %306 = vmatpush1.msra.mxu0 0.0
  %307 = vmatprep.subr.mxu0 0.0
  %308 = vmatpush1.msra.mxu0 0.0
  %309 = vmatprep.subr.mxu0 0.0
  %310 = vmatpush1.msra.mxu0 %v115
  %311 = vmatprep.subr.mxu0 0.0
  %312 = vmatpush1.msra.mxu0 %v17
  %313 = vmatprep.subr.mxu0 0.0
  %314 = vmatpush1.msra.mxu0 %v16
  %315 = vmatprep.subr.mxu0 0.0
  %316 = vmatpush2.msra.mxu0 0.0
  %317 = vmatprep.subr.mxu0 0.0
  %318 = vmatpush2.msra.mxu0 0.0
  %319 = vmatprep.subr.mxu0 0.0
  %320 = vmatpush2.msra.mxu0 0.0
  %321 = vmatprep.subr.mxu0 0.0
  %322 = vmatpush2.msra.mxu0 0.0
  %323 = vmatprep.subr.mxu0 0.0
  %324 = vmatpush2.msra.mxu0 0.0
  %325 = vmatprep.subr.mxu0 0.0
  %326 = vmatpush2.msra.mxu0 0.0
  %327 = vmatprep.subr.mxu0 0.0
  %328 = vmatpush2.msra.mxu0 0.0
  %329 = vmatprep.subr.mxu0 0.0
  %330 = vmatpush2.msra.mxu0 0.0
  %331 = vmatprep.subr.mxu0 0.0
  %332 = vmatpush2.msra.mxu0 0.0
  %333 = vmatprep.subr.mxu0 0.0
  %334 = vmatpush2.msra.mxu0 0.0
  %335 = vmatprep.subr.mxu0 0.0
  %336 = vmatpush2.msra.mxu0 0.0
  %337 = vmatprep.subr.mxu0 0.0
  %338 = vmatpush2.msra.mxu0 0.0
  %339 = vmatprep.subr.mxu0 0.0
  %340 = vmatpush2.msra.mxu0 0.0
  %341 = vmatprep.subr.mxu0 0.0
  %342 = vmatpush2.msra.mxu0 0.0
  %343 = vmatprep.subr.mxu0 0.0
  %344 = vmatpush2.msra.mxu0 0.0
  %345 = vmatprep.subr.mxu0 0.0
  %346 = vmatpush2.msra.mxu0 0.0
  %347 = vmatprep.mubr.f32.mxu0 0.0
  %348 = vmatmul.mubr.f32.gmra.mxu0 %v278
  %v349 = vpop.f32.mrf.mxu0
  %v350 = vadd.f32 0.0, %v349
  %v351 = vpop.f32.mrf.mxu0
  %352 = vmatprep.mubr.f32.mxu0 0.0
  %353 = vmatmul.mubr.f32.gmra.mxu0 %v281
  %v354 = vpop.f32.mrf.mxu0
  %v355 = vadd.f32 0.0, %v354
  %v356 = vpop.f32.mrf.mxu0
  %357 = vdwg.mxu0
  %s358 = scalar_lea.vmem %s3, 16
  %359 = vst.msk [vmem:[%s358] sm:$0xff] %vm192, %v350
  %360 = vst.msk [vmem:[%s358 + $0x8] sm:$0xff] %vm192, %v355
  %s361 = scalar_lea.vmem %s0, 48
  %v362 = vld [vmem:[%s361] sm:$0xff]
  %v363 = vld [vmem:[%s361 + $0x8] sm:$0xff]
  %v364 = vld [vmem:[%s361 + $0x10] sm:$0xf]
  %v366 = vsel %vm29, %v364, 0
  %368 = vmatprep.subr.mxu0 0.0
  %369 = vmatpush1.msra.mxu0 0.0
  %370 = vmatprep.subr.mxu0 0.0
  %371 = vmatpush1.msra.mxu0 0.0
  %372 = vmatprep.subr.mxu0 0.0
  %373 = vmatpush1.msra.mxu0 0.0
  %374 = vmatprep.subr.mxu0 0.0
  %375 = vmatpush1.msra.mxu0 0.0
  %376 = vmatprep.subr.mxu0 0.0
  %377 = vmatpush1.msra.mxu0 0.0
  %378 = vmatprep.subr.mxu0 0.0
  %379 = vmatpush1.msra.mxu0 0.0
  %380 = vmatprep.subr.mxu0 0.0
  %381 = vmatpush1.msra.mxu0 0.0
  %382 = vmatprep.subr.mxu0 0.0
  %383 = vmatpush1.msra.mxu0 0.0
  %384 = vmatprep.subr.mxu0 0.0
  %385 = vmatpush1.msra.mxu0 0.0
  %386 = vmatprep.subr.mxu0 0.0
  %387 = vmatpush1.msra.mxu0 0.0
  %388 = vmatprep.subr.mxu0 0.0
  %389 = vmatpush1.msra.mxu0 0.0
  %390 = vmatprep.subr.mxu0 0.0
  %391 = vmatpush1.msra.mxu0 0.0
  %392 = vmatprep.subr.mxu0 0.0
  %393 = vmatpush1.msra.mxu0 0.0
  %394 = vmatprep.subr.mxu0 0.0
  %395 = vmatpush1.msra.mxu0 %v366
  %396 = vmatprep.subr.mxu0 0.0
  %397 = vmatpush1.msra.mxu0 %v363
  %398 = vmatprep.subr.mxu0 0.0
  %399 = vmatpush1.msra.mxu0 %v362
  %400 = vmatprep.subr.mxu0 0.0
  %401 = vmatpush2.msra.mxu0 0.0
  %402 = vmatprep.subr.mxu0 0.0
  %403 = vmatpush2.msra.mxu0 0.0
  %404 = vmatprep.subr.mxu0 0.0
  %405 = vmatpush2.msra.mxu0 0.0
  %406 = vmatprep.subr.mxu0 0.0
  %407 = vmatpush2.msra.mxu0 0.0
  %408 = vmatprep.subr.mxu0 0.0
  %409 = vmatpush2.msra.mxu0 0.0
  %410 = vmatprep.subr.mxu0 0.0
  %411 = vmatpush2.msra.mxu0 0.0
  %412 = vmatprep.subr.mxu0 0.0
  %413 = vmatpush2.msra.mxu0 0.0
  %414 = vmatprep.subr.mxu0 0.0
  %415 = vmatpush2.msra.mxu0 0.0
  %416 = vmatprep.subr.mxu0 0.0
  %417 = vmatpush2.msra.mxu0 0.0
  %418 = vmatprep.subr.mxu0 0.0
  %419 = vmatpush2.msra.mxu0 0.0
  %420 = vmatprep.subr.mxu0 0.0
  %421 = vmatpush2.msra.mxu0 0.0
  %422 = vmatprep.subr.mxu0 0.0
  %423 = vmatpush2.msra.mxu0 0.0
  %424 = vmatprep.subr.mxu0 0.0
  %425 = vmatpush2.msra.mxu0 0.0
  %426 = vmatprep.subr.mxu0 0.0
  %427 = vmatpush2.msra.mxu0 0.0
  %428 = vmatprep.subr.mxu0 0.0
  %429 = vmatpush2.msra.mxu0 0.0
  %430 = vmatprep.subr.mxu0 0.0
  %431 = vmatpush2.msra.mxu0 0.0
  %432 = vmatprep.mubr.f32.mxu0 0.0
  %433 = vmatmul.mubr.f32.gmra.mxu0 %v24
  %v434 = vpop.f32.mrf.mxu0
  %v435 = vadd.f32 0.0, %v434
  %v436 = vpop.f32.mrf.mxu0
  %437 = vmatprep.mubr.f32.mxu0 0.0
  %438 = vmatmul.mubr.f32.gmra.mxu0 %v27
  %v439 = vpop.f32.mrf.mxu0
  %v440 = vadd.f32 0.0, %v439
  %v441 = vpop.f32.mrf.mxu0
  %442 = vdwg.mxu0
  %v444 = vsel %vm22, %v435, 0
  %v447 = vsel %vm22, %v440, 0
  %449 = vmatprep.subr.mxu0 0.0
  %450 = vmatpush1.msra.mxu0 0.0
  %451 = vmatprep.subr.mxu0 0.0
  %452 = vmatpush1.msra.mxu0 0.0
  %453 = vmatprep.subr.mxu0 0.0
  %454 = vmatpush1.msra.mxu0 0.0
  %455 = vmatprep.subr.mxu0 0.0
  %456 = vmatpush1.msra.mxu0 0.0
  %457 = vmatprep.subr.mxu0 0.0
  %458 = vmatpush1.msra.mxu0 0.0
  %459 = vmatprep.subr.mxu0 0.0
  %460 = vmatpush1.msra.mxu0 0.0
  %461 = vmatprep.subr.mxu0 0.0
  %462 = vmatpush1.msra.mxu0 0.0
  %463 = vmatprep.subr.mxu0 0.0
  %464 = vmatpush1.msra.mxu0 0.0
  %465 = vmatprep.subr.mxu0 0.0
  %466 = vmatpush1.msra.mxu0 0.0
  %467 = vmatprep.subr.mxu0 0.0
  %468 = vmatpush1.msra.mxu0 0.0
  %469 = vmatprep.subr.mxu0 0.0
  %470 = vmatpush1.msra.mxu0 0.0
  %471 = vmatprep.subr.mxu0 0.0
  %472 = vmatpush1.msra.mxu0 0.0
  %473 = vmatprep.subr.mxu0 0.0
  %474 = vmatpush1.msra.mxu0 0.0
  %475 = vmatprep.subr.mxu0 0.0
  %476 = vmatpush1.msra.mxu0 %v115
  %477 = vmatprep.subr.mxu0 0.0
  %478 = vmatpush1.msra.mxu0 %v17
  %479 = vmatprep.subr.mxu0 0.0
  %480 = vmatpush1.msra.mxu0 %v16
  %481 = vmatprep.subr.mxu0 0.0
  %482 = vmatpush2.msra.mxu0 0.0
  %483 = vmatprep.subr.mxu0 0.0
  %484 = vmatpush2.msra.mxu0 0.0
  %485 = vmatprep.subr.mxu0 0.0
  %486 = vmatpush2.msra.mxu0 0.0
  %487 = vmatprep.subr.mxu0 0.0
  %488 = vmatpush2.msra.mxu0 0.0
  %489 = vmatprep.subr.mxu0 0.0
  %490 = vmatpush2.msra.mxu0 0.0
  %491 = vmatprep.subr.mxu0 0.0
  %492 = vmatpush2.msra.mxu0 0.0
  %493 = vmatprep.subr.mxu0 0.0
  %494 = vmatpush2.msra.mxu0 0.0
  %495 = vmatprep.subr.mxu0 0.0
  %496 = vmatpush2.msra.mxu0 0.0
  %497 = vmatprep.subr.mxu0 0.0
  %498 = vmatpush2.msra.mxu0 0.0
  %499 = vmatprep.subr.mxu0 0.0
  %500 = vmatpush2.msra.mxu0 0.0
  %501 = vmatprep.subr.mxu0 0.0
  %502 = vmatpush2.msra.mxu0 0.0
  %503 = vmatprep.subr.mxu0 0.0
  %504 = vmatpush2.msra.mxu0 0.0
  %505 = vmatprep.subr.mxu0 0.0
  %506 = vmatpush2.msra.mxu0 0.0
  %507 = vmatprep.subr.mxu0 0.0
  %508 = vmatpush2.msra.mxu0 0.0
  %509 = vmatprep.subr.mxu0 0.0
  %510 = vmatpush2.msra.mxu0 0.0
  %511 = vmatprep.subr.mxu0 0.0
  %512 = vmatpush2.msra.mxu0 0.0
  %513 = vmatprep.mubr.f32.mxu0 0.0
  %514 = vmatmul.mubr.f32.gmra.mxu0 %v444
  %v515 = vpop.f32.mrf.mxu0
  %v516 = vadd.f32 0.0, %v515
  %v517 = vpop.f32.mrf.mxu0
  %518 = vmatprep.mubr.f32.mxu0 0.0
  %519 = vmatmul.mubr.f32.gmra.mxu0 %v447
  %v520 = vpop.f32.mrf.mxu0
  %v521 = vadd.f32 0.0, %v520
  %v522 = vpop.f32.mrf.mxu0
  %523 = vdwg.mxu0
  %s524 = scalar_lea.vmem %s3, 32
  %525 = vst.msk [vmem:[%s524] sm:$0xff] %vm192, %v516
  %526 = vst.msk [vmem:[%s524 + $0x8] sm:$0xff] %vm192, %v521
  %s527 = scalar_lea.vmem %s0, 72
  %v528 = vld [vmem:[%s527] sm:$0xff]
  %v529 = vld [vmem:[%s527 + $0x8] sm:$0xff]
  %v530 = vld [vmem:[%s527 + $0x10] sm:$0xf]
  %v532 = vsel %vm29, %v530, 0
  %534 = vmatprep.subr.mxu0 0.0
  %535 = vmatpush1.msra.mxu0 0.0
  %536 = vmatprep.subr.mxu0 0.0
  %537 = vmatpush1.msra.mxu0 0.0
  %538 = vmatprep.subr.mxu0 0.0
  %539 = vmatpush1.msra.mxu0 0.0
  %540 = vmatprep.subr.mxu0 0.0
  %541 = vmatpush1.msra.mxu0 0.0
  %542 = vmatprep.subr.mxu0 0.0
  %543 = vmatpush1.msra.mxu0 0.0
  %544 = vmatprep.subr.mxu0 0.0
  %545 = vmatpush1.msra.mxu0 0.0
  %546 = vmatprep.subr.mxu0 0.0
  %547 = vmatpush1.msra.mxu0 0.0
  %548 = vmatprep.subr.mxu0 0.0
  %549 = vmatpush1.msra.mxu0 0.0
  %550 = vmatprep.subr.mxu0 0.0
  %551 = vmatpush1.msra.mxu0 0.0
  %552 = vmatprep.subr.mxu0 0.0
  %553 = vmatpush1.msra.mxu0 0.0
  %554 = vmatprep.subr.mxu0 0.0
  %555 = vmatpush1.msra.mxu0 0.0
  %556 = vmatprep.subr.mxu0 0.0
  %557 = vmatpush1.msra.mxu0 0.0
  %558 = vmatprep.subr.mxu0 0.0
  %559 = vmatpush1.msra.mxu0 0.0
  %560 = vmatprep.subr.mxu0 0.0
  %561 = vmatpush1.msra.mxu0 %v532
  %562 = vmatprep.subr.mxu0 0.0
  %563 = vmatpush1.msra.mxu0 %v529
  %564 = vmatprep.subr.mxu0 0.0
  %565 = vmatpush1.msra.mxu0 %v528
  %566 = vmatprep.subr.mxu0 0.0
  %567 = vmatpush2.msra.mxu0 0.0
  %568 = vmatprep.subr.mxu0 0.0
  %569 = vmatpush2.msra.mxu0 0.0
  %570 = vmatprep.subr.mxu0 0.0
  %571 = vmatpush2.msra.mxu0 0.0
  %572 = vmatprep.subr.mxu0 0.0
  %573 = vmatpush2.msra.mxu0 0.0
  %574 = vmatprep.subr.mxu0 0.0
  %575 = vmatpush2.msra.mxu0 0.0
  %576 = vmatprep.subr.mxu0 0.0
  %577 = vmatpush2.msra.mxu0 0.0
  %578 = vmatprep.subr.mxu0 0.0
  %579 = vmatpush2.msra.mxu0 0.0
  %580 = vmatprep.subr.mxu0 0.0
  %581 = vmatpush2.msra.mxu0 0.0
  %582 = vmatprep.subr.mxu0 0.0
  %583 = vmatpush2.msra.mxu0 0.0
  %584 = vmatprep.subr.mxu0 0.0
  %585 = vmatpush2.msra.mxu0 0.0
  %586 = vmatprep.subr.mxu0 0.0
  %587 = vmatpush2.msra.mxu0 0.0
  %588 = vmatprep.subr.mxu0 0.0
  %589 = vmatpush2.msra.mxu0 0.0
  %590 = vmatprep.subr.mxu0 0.0
  %591 = vmatpush2.msra.mxu0 0.0
  %592 = vmatprep.subr.mxu0 0.0
  %593 = vmatpush2.msra.mxu0 0.0
  %594 = vmatprep.subr.mxu0 0.0
  %595 = vmatpush2.msra.mxu0 0.0
  %596 = vmatprep.subr.mxu0 0.0
  %597 = vmatpush2.msra.mxu0 0.0
  %598 = vmatprep.mubr.f32.mxu0 0.0
  %599 = vmatmul.mubr.f32.gmra.mxu0 %v24
  %v600 = vpop.f32.mrf.mxu0
  %v601 = vadd.f32 0.0, %v600
  %v602 = vpop.f32.mrf.mxu0
  %603 = vmatprep.mubr.f32.mxu0 0.0
  %604 = vmatmul.mubr.f32.gmra.mxu0 %v27
  %v605 = vpop.f32.mrf.mxu0
  %v606 = vadd.f32 0.0, %v605
  %v607 = vpop.f32.mrf.mxu0
  %608 = vdwg.mxu0
  %v610 = vsel %vm22, %v601, 0
  %v613 = vsel %vm22, %v606, 0
  %615 = vmatprep.subr.mxu0 0.0
  %616 = vmatpush1.msra.mxu0 0.0
  %617 = vmatprep.subr.mxu0 0.0
  %618 = vmatpush1.msra.mxu0 0.0
  %619 = vmatprep.subr.mxu0 0.0
  %620 = vmatpush1.msra.mxu0 0.0
  %621 = vmatprep.subr.mxu0 0.0
  %622 = vmatpush1.msra.mxu0 0.0
  %623 = vmatprep.subr.mxu0 0.0
  %624 = vmatpush1.msra.mxu0 0.0
  %625 = vmatprep.subr.mxu0 0.0
  %626 = vmatpush1.msra.mxu0 0.0
  %627 = vmatprep.subr.mxu0 0.0
  %628 = vmatpush1.msra.mxu0 0.0
  %629 = vmatprep.subr.mxu0 0.0
  %630 = vmatpush1.msra.mxu0 0.0
  %631 = vmatprep.subr.mxu0 0.0
  %632 = vmatpush1.msra.mxu0 0.0
  %633 = vmatprep.subr.mxu0 0.0
  %634 = vmatpush1.msra.mxu0 0.0
  %635 = vmatprep.subr.mxu0 0.0
  %636 = vmatpush1.msra.mxu0 0.0
  %637 = vmatprep.subr.mxu0 0.0
  %638 = vmatpush1.msra.mxu0 0.0
  %639 = vmatprep.subr.mxu0 0.0
  %640 = vmatpush1.msra.mxu0 0.0
  %641 = vmatprep.subr.mxu0 0.0
  %642 = vmatpush1.msra.mxu0 %v115
  %643 = vmatprep.subr.mxu0 0.0
  %644 = vmatpush1.msra.mxu0 %v17
  %645 = vmatprep.subr.mxu0 0.0
  %646 = vmatpush1.msra.mxu0 %v16
  %647 = vmatprep.subr.mxu0 0.0
  %648 = vmatpush2.msra.mxu0 0.0
  %649 = vmatprep.subr.mxu0 0.0
  %650 = vmatpush2.msra.mxu0 0.0
  %651 = vmatprep.subr.mxu0 0.0
  %652 = vmatpush2.msra.mxu0 0.0
  %653 = vmatprep.subr.mxu0 0.0
  %654 = vmatpush2.msra.mxu0 0.0
  %655 = vmatprep.subr.mxu0 0.0
  %656 = vmatpush2.msra.mxu0 0.0
  %657 = vmatprep.subr.mxu0 0.0
  %658 = vmatpush2.msra.mxu0 0.0
  %659 = vmatprep.subr.mxu0 0.0
  %660 = vmatpush2.msra.mxu0 0.0
  %661 = vmatprep.subr.mxu0 0.0
  %662 = vmatpush2.msra.mxu0 0.0
  %663 = vmatprep.subr.mxu0 0.0
  %664 = vmatpush2.msra.mxu0 0.0
  %665 = vmatprep.subr.mxu0 0.0
  %666 = vmatpush2.msra.mxu0 0.0
  %667 = vmatprep.subr.mxu0 0.0
  %668 = vmatpush2.msra.mxu0 0.0
  %669 = vmatprep.subr.mxu0 0.0
  %670 = vmatpush2.msra.mxu0 0.0
  %671 = vmatprep.subr.mxu0 0.0
  %672 = vmatpush2.msra.mxu0 0.0
  %673 = vmatprep.subr.mxu0 0.0
  %674 = vmatpush2.msra.mxu0 0.0
  %675 = vmatprep.subr.mxu0 0.0
  %676 = vmatpush2.msra.mxu0 0.0
  %677 = vmatprep.subr.mxu0 0.0
  %678 = vmatpush2.msra.mxu0 0.0
  %679 = vmatprep.mubr.f32.mxu0 0.0
  %680 = vmatmul.mubr.f32.gmra.mxu0 %v610
  %v681 = vpop.f32.mrf.mxu0
  %v682 = vadd.f32 0.0, %v681
  %v683 = vpop.f32.mrf.mxu0
  %684 = vmatprep.mubr.f32.mxu0 0.0
  %685 = vmatmul.mubr.f32.gmra.mxu0 %v613
  %v686 = vpop.f32.mrf.mxu0
  %v687 = vadd.f32 0.0, %v686
  %v688 = vpop.f32.mrf.mxu0
  %689 = vdwg.mxu0
  %s690 = scalar_lea.vmem %s3, 48
  %691 = vst.msk [vmem:[%s690] sm:$0xff] %vm192, %v682
  %692 = vst.msk [vmem:[%s690 + $0x8] sm:$0xff] %vm192, %v687
  %s693 = scalar_lea.vmem %s0, 96
  %v694 = vld [vmem:[%s693] sm:$0xff]
  %v695 = vld [vmem:[%s693 + $0x8] sm:$0xff]
  %v696 = vld [vmem:[%s693 + $0x10] sm:$0xf]
  %v698 = vsel %vm29, %v696, 0
  %700 = vmatprep.subr.mxu0 0.0
  %701 = vmatpush1.msra.mxu0 0.0
  %702 = vmatprep.subr.mxu0 0.0
  %703 = vmatpush1.msra.mxu0 0.0
  %704 = vmatprep.subr.mxu0 0.0
  %705 = vmatpush1.msra.mxu0 0.0
  %706 = vmatprep.subr.mxu0 0.0
  %707 = vmatpush1.msra.mxu0 0.0
  %708 = vmatprep.subr.mxu0 0.0
  %709 = vmatpush1.msra.mxu0 0.0
  %710 = vmatprep.subr.mxu0 0.0
  %711 = vmatpush1.msra.mxu0 0.0
  %712 = vmatprep.subr.mxu0 0.0
  %713 = vmatpush1.msra.mxu0 0.0
  %714 = vmatprep.subr.mxu0 0.0
  %715 = vmatpush1.msra.mxu0 0.0
  %716 = vmatprep.subr.mxu0 0.0
  %717 = vmatpush1.msra.mxu0 0.0
  %718 = vmatprep.subr.mxu0 0.0
  %719 = vmatpush1.msra.mxu0 0.0
  %720 = vmatprep.subr.mxu0 0.0
  %721 = vmatpush1.msra.mxu0 0.0
  %722 = vmatprep.subr.mxu0 0.0
  %723 = vmatpush1.msra.mxu0 0.0
  %724 = vmatprep.subr.mxu0 0.0
  %725 = vmatpush1.msra.mxu0 0.0
  %726 = vmatprep.subr.mxu0 0.0
  %727 = vmatpush1.msra.mxu0 %v698
  %728 = vmatprep.subr.mxu0 0.0
  %729 = vmatpush1.msra.mxu0 %v695
  %730 = vmatprep.subr.mxu0 0.0
  %731 = vmatpush1.msra.mxu0 %v694
  %732 = vmatprep.subr.mxu0 0.0
  %733 = vmatpush2.msra.mxu0 0.0
  %734 = vmatprep.subr.mxu0 0.0
  %735 = vmatpush2.msra.mxu0 0.0
  %736 = vmatprep.subr.mxu0 0.0
  %737 = vmatpush2.msra.mxu0 0.0
  %738 = vmatprep.subr.mxu0 0.0
  %739 = vmatpush2.msra.mxu0 0.0
  %740 = vmatprep.subr.mxu0 0.0
  %741 = vmatpush2.msra.mxu0 0.0
  %742 = vmatprep.subr.mxu0 0.0
  %743 = vmatpush2.msra.mxu0 0.0
  %744 = vmatprep.subr.mxu0 0.0
  %745 = vmatpush2.msra.mxu0 0.0
  %746 = vmatprep.subr.mxu0 0.0
  %747 = vmatpush2.msra.mxu0 0.0
  %748 = vmatprep.subr.mxu0 0.0
  %749 = vmatpush2.msra.mxu0 0.0
  %750 = vmatprep.subr.mxu0 0.0
  %751 = vmatpush2.msra.mxu0 0.0
  %752 = vmatprep.subr.mxu0 0.0
  %753 = vmatpush2.msra.mxu0 0.0
  %754 = vmatprep.subr.mxu0 0.0
  %755 = vmatpush2.msra.mxu0 0.0
  %756 = vmatprep.subr.mxu0 0.0
  %757 = vmatpush2.msra.mxu0 0.0
  %758 = vmatprep.subr.mxu0 0.0
  %759 = vmatpush2.msra.mxu0 0.0
  %760 = vmatprep.subr.mxu0 0.0
  %761 = vmatpush2.msra.mxu0 0.0
  %762 = vmatprep.subr.mxu0 0.0
  %763 = vmatpush2.msra.mxu0 0.0
  %764 = vmatprep.mubr.f32.mxu0 0.0
  %765 = vmatmul.mubr.f32.gmra.mxu0 %v24
  %v766 = vpop.f32.mrf.mxu0
  %v767 = vadd.f32 0.0, %v766
  %v768 = vpop.f32.mrf.mxu0
  %769 = vmatprep.mubr.f32.mxu0 0.0
  %770 = vmatmul.mubr.f32.gmra.mxu0 %v27
  %v771 = vpop.f32.mrf.mxu0
  %v772 = vadd.f32 0.0, %v771
  %v773 = vpop.f32.mrf.mxu0
  %774 = vdwg.mxu0
  %v776 = vsel %vm22, %v767, 0
  %v779 = vsel %vm22, %v772, 0
  %781 = vmatprep.subr.mxu0 0.0
  %782 = vmatpush1.msra.mxu0 0.0
  %783 = vmatprep.subr.mxu0 0.0
  %784 = vmatpush1.msra.mxu0 0.0
  %785 = vmatprep.subr.mxu0 0.0
  %786 = vmatpush1.msra.mxu0 0.0
  %787 = vmatprep.subr.mxu0 0.0
  %788 = vmatpush1.msra.mxu0 0.0
  %789 = vmatprep.subr.mxu0 0.0
  %790 = vmatpush1.msra.mxu0 0.0
  %791 = vmatprep.subr.mxu0 0.0
  %792 = vmatpush1.msra.mxu0 0.0
  %793 = vmatprep.subr.mxu0 0.0
  %794 = vmatpush1.msra.mxu0 0.0
  %795 = vmatprep.subr.mxu0 0.0
  %796 = vmatpush1.msra.mxu0 0.0
  %797 = vmatprep.subr.mxu0 0.0
  %798 = vmatpush1.msra.mxu0 0.0
  %799 = vmatprep.subr.mxu0 0.0
  %800 = vmatpush1.msra.mxu0 0.0
  %801 = vmatprep.subr.mxu0 0.0
  %802 = vmatpush1.msra.mxu0 0.0
  %803 = vmatprep.subr.mxu0 0.0
  %804 = vmatpush1.msra.mxu0 0.0
  %805 = vmatprep.subr.mxu0 0.0
  %806 = vmatpush1.msra.mxu0 0.0
  %807 = vmatprep.subr.mxu0 0.0
  %808 = vmatpush1.msra.mxu0 %v115
  %809 = vmatprep.subr.mxu0 0.0
  %810 = vmatpush1.msra.mxu0 %v17
  %811 = vmatprep.subr.mxu0 0.0
  %812 = vmatpush1.msra.mxu0 %v16
  %813 = vmatprep.subr.mxu0 0.0
  %814 = vmatpush2.msra.mxu0 0.0
  %815 = vmatprep.subr.mxu0 0.0
  %816 = vmatpush2.msra.mxu0 0.0
  %817 = vmatprep.subr.mxu0 0.0
  %818 = vmatpush2.msra.mxu0 0.0
  %819 = vmatprep.subr.mxu0 0.0
  %820 = vmatpush2.msra.mxu0 0.0
  %821 = vmatprep.subr.mxu0 0.0
  %822 = vmatpush2.msra.mxu0 0.0
  %823 = vmatprep.subr.mxu0 0.0
  %824 = vmatpush2.msra.mxu0 0.0
  %825 = vmatprep.subr.mxu0 0.0
  %826 = vmatpush2.msra.mxu0 0.0
  %827 = vmatprep.subr.mxu0 0.0
  %828 = vmatpush2.msra.mxu0 0.0
  %829 = vmatprep.subr.mxu0 0.0
  %830 = vmatpush2.msra.mxu0 0.0
  %831 = vmatprep.subr.mxu0 0.0
  %832 = vmatpush2.msra.mxu0 0.0
  %833 = vmatprep.subr.mxu0 0.0
  %834 = vmatpush2.msra.mxu0 0.0
  %835 = vmatprep.subr.mxu0 0.0
  %836 = vmatpush2.msra.mxu0 0.0
  %837 = vmatprep.subr.mxu0 0.0
  %838 = vmatpush2.msra.mxu0 0.0
  %839 = vmatprep.subr.mxu0 0.0
  %840 = vmatpush2.msra.mxu0 0.0
  %841 = vmatprep.subr.mxu0 0.0
  %842 = vmatpush2.msra.mxu0 0.0
  %843 = vmatprep.subr.mxu0 0.0
  %844 = vmatpush2.msra.mxu0 0.0
  %845 = vmatprep.mubr.f32.mxu0 0.0
  %846 = vmatmul.mubr.f32.gmra.mxu0 %v776
  %v847 = vpop.f32.mrf.mxu0
  %v848 = vadd.f32 0.0, %v847
  %v849 = vpop.f32.mrf.mxu0
  %850 = vmatprep.mubr.f32.mxu0 0.0
  %851 = vmatmul.mubr.f32.gmra.mxu0 %v779
  %v852 = vpop.f32.mrf.mxu0
  %v853 = vadd.f32 0.0, %v852
  %v854 = vpop.f32.mrf.mxu0
  %855 = vdwg.mxu0
  %s856 = scalar_lea.vmem %s3, 64
  %857 = vst.msk [vmem:[%s856] sm:$0xff] %vm192, %v848
  %858 = vst.msk [vmem:[%s856 + $0x8] sm:$0xff] %vm192, %v853
  %s859 = scalar_lea.vmem %s0, 120
  %v860 = vld [vmem:[%s859] sm:$0xff]
  %v861 = vld [vmem:[%s859 + $0x8] sm:$0xff]
  %v862 = vld [vmem:[%s859 + $0x10] sm:$0xf]
  %v864 = vsel %vm29, %v862, 0
  %866 = vmatprep.subr.mxu0 0.0
  %867 = vmatpush1.msra.mxu0 0.0
  %868 = vmatprep.subr.mxu0 0.0
  %869 = vmatpush1.msra.mxu0 0.0
  %870 = vmatprep.subr.mxu0 0.0
  %871 = vmatpush1.msra.mxu0 0.0
  %872 = vmatprep.subr.mxu0 0.0
  %873 = vmatpush1.msra.mxu0 0.0
  %874 = vmatprep.subr.mxu0 0.0
  %875 = vmatpush1.msra.mxu0 0.0
  %876 = vmatprep.subr.mxu0 0.0
  %877 = vmatpush1.msra.mxu0 0.0
  %878 = vmatprep.subr.mxu0 0.0
  %879 = vmatpush1.msra.mxu0 0.0
  %880 = vmatprep.subr.mxu0 0.0
  %881 = vmatpush1.msra.mxu0 0.0
  %882 = vmatprep.subr.mxu0 0.0
  %883 = vmatpush1.msra.mxu0 0.0
  %884 = vmatprep.subr.mxu0 0.0
  %885 = vmatpush1.msra.mxu0 0.0
  %886 = vmatprep.subr.mxu0 0.0
  %887 = vmatpush1.msra.mxu0 0.0
  %888 = vmatprep.subr.mxu0 0.0
  %889 = vmatpush1.msra.mxu0 0.0
  %890 = vmatprep.subr.mxu0 0.0
  %891 = vmatpush1.msra.mxu0 0.0
  %892 = vmatprep.subr.mxu0 0.0
  %893 = vmatpush1.msra.mxu0 %v864
  %894 = vmatprep.subr.mxu0 0.0
  %895 = vmatpush1.msra.mxu0 %v861
  %896 = vmatprep.subr.mxu0 0.0
  %897 = vmatpush1.msra.mxu0 %v860
  %898 = vmatprep.subr.mxu0 0.0
  %899 = vmatpush2.msra.mxu0 0.0
  %900 = vmatprep.subr.mxu0 0.0
  %901 = vmatpush2.msra.mxu0 0.0
  %902 = vmatprep.subr.mxu0 0.0
  %903 = vmatpush2.msra.mxu0 0.0
  %904 = vmatprep.subr.mxu0 0.0
  %905 = vmatpush2.msra.mxu0 0.0
  %906 = vmatprep.subr.mxu0 0.0
  %907 = vmatpush2.msra.mxu0 0.0
  %908 = vmatprep.subr.mxu0 0.0
  %909 = vmatpush2.msra.mxu0 0.0
  %910 = vmatprep.subr.mxu0 0.0
  %911 = vmatpush2.msra.mxu0 0.0
  %912 = vmatprep.subr.mxu0 0.0
  %913 = vmatpush2.msra.mxu0 0.0
  %914 = vmatprep.subr.mxu0 0.0
  %915 = vmatpush2.msra.mxu0 0.0
  %916 = vmatprep.subr.mxu0 0.0
  %917 = vmatpush2.msra.mxu0 0.0
  %918 = vmatprep.subr.mxu0 0.0
  %919 = vmatpush2.msra.mxu0 0.0
  %920 = vmatprep.subr.mxu0 0.0
  %921 = vmatpush2.msra.mxu0 0.0
  %922 = vmatprep.subr.mxu0 0.0
  %923 = vmatpush2.msra.mxu0 0.0
  %924 = vmatprep.subr.mxu0 0.0
  %925 = vmatpush2.msra.mxu0 0.0
  %926 = vmatprep.subr.mxu0 0.0
  %927 = vmatpush2.msra.mxu0 0.0
  %928 = vmatprep.subr.mxu0 0.0
  %929 = vmatpush2.msra.mxu0 0.0
  %930 = vmatprep.mubr.f32.mxu0 0.0
  %931 = vmatmul.mubr.f32.gmra.mxu0 %v24
  %v932 = vpop.f32.mrf.mxu0
  %v933 = vadd.f32 0.0, %v932
  %v934 = vpop.f32.mrf.mxu0
  %935 = vmatprep.mubr.f32.mxu0 0.0
  %936 = vmatmul.mubr.f32.gmra.mxu0 %v27
  %v937 = vpop.f32.mrf.mxu0
  %v938 = vadd.f32 0.0, %v937
  %v939 = vpop.f32.mrf.mxu0
  %940 = vdwg.mxu0
  %v942 = vsel %vm22, %v933, 0
  %v945 = vsel %vm22, %v938, 0
  %947 = vmatprep.subr.mxu0 0.0
  %948 = vmatpush1.msra.mxu0 0.0
  %949 = vmatprep.subr.mxu0 0.0
  %950 = vmatpush1.msra.mxu0 0.0
  %951 = vmatprep.subr.mxu0 0.0
  %952 = vmatpush1.msra.mxu0 0.0
  %953 = vmatprep.subr.mxu0 0.0
  %954 = vmatpush1.msra.mxu0 0.0
  %955 = vmatprep.subr.mxu0 0.0
  %956 = vmatpush1.msra.mxu0 0.0
  %957 = vmatprep.subr.mxu0 0.0
  %958 = vmatpush1.msra.mxu0 0.0
  %959 = vmatprep.subr.mxu0 0.0
  %960 = vmatpush1.msra.mxu0 0.0
  %961 = vmatprep.subr.mxu0 0.0
  %962 = vmatpush1.msra.mxu0 0.0
  %963 = vmatprep.subr.mxu0 0.0
  %964 = vmatpush1.msra.mxu0 0.0
  %965 = vmatprep.subr.mxu0 0.0
  %966 = vmatpush1.msra.mxu0 0.0
  %967 = vmatprep.subr.mxu0 0.0
  %968 = vmatpush1.msra.mxu0 0.0
  %969 = vmatprep.subr.mxu0 0.0
  %970 = vmatpush1.msra.mxu0 0.0
  %971 = vmatprep.subr.mxu0 0.0
  %972 = vmatpush1.msra.mxu0 0.0
  %973 = vmatprep.subr.mxu0 0.0
  %974 = vmatpush1.msra.mxu0 %v115
  %975 = vmatprep.subr.mxu0 0.0
  %976 = vmatpush1.msra.mxu0 %v17
  %977 = vmatprep.subr.mxu0 0.0
  %978 = vmatpush1.msra.mxu0 %v16
  %979 = vmatprep.subr.mxu0 0.0
  %980 = vmatpush2.msra.mxu0 0.0
  %981 = vmatprep.subr.mxu0 0.0
  %982 = vmatpush2.msra.mxu0 0.0
  %983 = vmatprep.subr.mxu0 0.0
  %984 = vmatpush2.msra.mxu0 0.0
  %985 = vmatprep.subr.mxu0 0.0
  %986 = vmatpush2.msra.mxu0 0.0
  %987 = vmatprep.subr.mxu0 0.0
  %988 = vmatpush2.msra.mxu0 0.0
  %989 = vmatprep.subr.mxu0 0.0
  %990 = vmatpush2.msra.mxu0 0.0
  %991 = vmatprep.subr.mxu0 0.0
  %992 = vmatpush2.msra.mxu0 0.0
  %993 = vmatprep.subr.mxu0 0.0
  %994 = vmatpush2.msra.mxu0 0.0
  %995 = vmatprep.subr.mxu0 0.0
  %996 = vmatpush2.msra.mxu0 0.0
  %997 = vmatprep.subr.mxu0 0.0
  %998 = vmatpush2.msra.mxu0 0.0
  %999 = vmatprep.subr.mxu0 0.0
  %1000 = vmatpush2.msra.mxu0 0.0
  %1001 = vmatprep.subr.mxu0 0.0
  %1002 = vmatpush2.msra.mxu0 0.0
  %1003 = vmatprep.subr.mxu0 0.0
  %1004 = vmatpush2.msra.mxu0 0.0
  %1005 = vmatprep.subr.mxu0 0.0
  %1006 = vmatpush2.msra.mxu0 0.0
  %1007 = vmatprep.subr.mxu0 0.0
  %1008 = vmatpush2.msra.mxu0 0.0
  %1009 = vmatprep.subr.mxu0 0.0
  %1010 = vmatpush2.msra.mxu0 0.0
  %1011 = vmatprep.mubr.f32.mxu0 0.0
  %1012 = vmatmul.mubr.f32.gmra.mxu0 %v942
  %v1013 = vpop.f32.mrf.mxu0
  %v1014 = vadd.f32 0.0, %v1013
  %v1015 = vpop.f32.mrf.mxu0
  %1016 = vmatprep.mubr.f32.mxu0 0.0
  %1017 = vmatmul.mubr.f32.gmra.mxu0 %v945
  %v1018 = vpop.f32.mrf.mxu0
  %v1019 = vadd.f32 0.0, %v1018
  %v1020 = vpop.f32.mrf.mxu0
  %1021 = vdwg.mxu0
  %s1022 = scalar_lea.vmem %s3, 80
  %1023 = vst.msk [vmem:[%s1022] sm:$0xff] %vm192, %v1014
  %1024 = vst.msk [vmem:[%s1022 + $0x8] sm:$0xff] %vm192, %v1019
  // Predicated region
  $region14: #{openclip_man_forward.2} parent=0 // pred_check
    _
  $region15: #{openclip_man_forward.2} parent=0 // pred_check_branch
    %1026 = sbr.rel (0) target = $region17
  $region16: #{openclip_man_forward.2} parent=0 // pred_region
    _
  $region17: #{openclip_man_forward.2} parent=0 // pred_fallthru
    _
  // Predicated region
  $region18: #{openclip_man_forward.2} parent=0 // pred_check
    _
  $region19: #{openclip_man_forward.2} parent=0 // pred_check_branch
    %1028 = sbr.rel (0) target = $region21
  $region20: #{openclip_man_forward.2} parent=0 // pred_region
    _
  $region21: #{openclip_man_forward.2} parent=0 // pred_fallthru
    _

// kernel: openclip_man_forward.3
$region0: #{openclip_man_forward.3}
  #allocation0 [shape = 'u32[]', space=smem, size = 0x4, offset = 0x4, fixed_abs, tag = 'smem constant byte address 0x4 - core index']
  #allocation1 [shape = 'u32[144,128]{1,0:T(1,128)}', space=vmem, size = 0x12000, scoped, tag = 'internal scratch']
  #allocation2 [shape = 'f32[10,64]{1,0:T(8,128)}', space=vmem, size = 0x2000, scoped, tag = 'scratch operand']
  %s0 = inlined_call_operand.vmem [shape: f32[10,192], index: 0, kind: input, shape index: {}]
  %s1 = inlined_call_operand.vmem [shape: f32[10,64], index: 1, kind: input, shape index: {}]
  %s2 = inlined_call_operand.vmem [shape: bf16[192,64], index: 2, kind: input, shape index: {}]
  %s3 = inlined_call_operand.vmem [shape: f32[1,64], index: 3, kind: input, shape index: {}]
  %s4 = inlined_call_operand.vmem [shape: f32[1,64], index: 4, kind: input, shape index: {}]
  %s5 = inlined_call_operand.vmem [shape: f32[2,1,64], index: 5, kind: input, shape index: {}]
  %s6 = inlined_call_operand.vmem [shape: f32[2,1,64], index: 6, kind: input, shape index: {}]
  %s7 = inlined_call_operand.vmem [shape: bf16[2,64,192], index: 7, kind: input, shape index: {}]
  %s8 = inlined_call_operand.vmem [shape: f32[2,1,192], index: 8, kind: input, shape index: {}]
  %s9 = inlined_call_operand.vmem [shape: bf16[2,64,64], index: 9, kind: input, shape index: {}]
  %s10 = inlined_call_operand.vmem [shape: f32[2,1,64], index: 10, kind: input, shape index: {}]
  %s11 = inlined_call_operand.vmem [shape: f32[2,1,64], index: 11, kind: input, shape index: {}]
  %s12 = inlined_call_operand.vmem [shape: f32[2,1,64], index: 12, kind: input, shape index: {}]
  %s13 = inlined_call_operand.vmem [shape: bf16[2,64,256], index: 13, kind: input, shape index: {}]
  %s14 = inlined_call_operand.vmem [shape: f32[2,1,256], index: 14, kind: input, shape index: {}]
  %s15 = inlined_call_operand.vmem [shape: bf16[2,256,64], index: 15, kind: input, shape index: {}]
  %s16 = inlined_call_operand.vmem [shape: f32[2,1,64], index: 16, kind: input, shape index: {}]
  %s17 = inlined_call_operand.vmem [shape: f32[1,64], index: 17, kind: input, shape index: {}]
  %s18 = inlined_call_operand.vmem [shape: f32[1,64], index: 18, kind: input, shape index: {}]
  %s19 = inlined_call_operand.vmem [shape: bf16[64,64], index: 19, kind: input, shape index: {}]
  %s20 = inlined_call_operand.vmem [shape: bf16[64,512], index: 20, kind: input, shape index: {}]
  %s21 = inlined_call_operand.vmem [shape: f32[1,512], index: 21, kind: input, shape index: {}]
  %s22 = inlined_call_operand.vmem [shape: bf16[512,256], index: 22, kind: input, shape index: {}]
  %s23 = inlined_call_operand.vmem [shape: f32[1,256], index: 23, kind: input, shape index: {}]
  %s24 = inlined_call_operand.vmem [shape: bf16[256,10], index: 24, kind: input, shape index: {}]
  %s25 = inlined_call_operand.vmem [shape: f32[1,10], index: 25, kind: input, shape index: {}]
  %s26 = inlined_call_operand.vmem [shape: f32[10,128], index: 26, kind: output, shape index: {}]
  %s27 = sld [smem:[#allocation0]]
  $region145: #{openclip_man_forward.3} parent=0
    _
  %s29 = ssub.s32 1, %s27
  %s30 = scalar_select 0, %s29, %s27
  loop: start=0, step=1, limit=4
  $region2: #{openclip_man_forward.3} parent=0 // loop_pre_header
    _
  $region3: #{openclip_man_forward.3} parent=0 // loop_header
    %s32 = sphi 0, %s36
    %p33 = scmp.ge.s32.totalorder %s32, 4
    %s40 = sphi 0, %s40
    %s42 = sphi 0, %s40
    %s43 = sphi 0, %s42
    %s57 = sphi 0, %s43
    %s61 = sphi 0, %s61
    %s63 = sphi 0, %s61
    %s64 = sphi 0, %s63
    %s78 = sphi 0, %s64
    %s82 = sphi 0, %s82
    %s84 = sphi 0, %s82
    %s85 = sphi 0, %s84
    %s99 = sphi 0, %s85
    %s103 = sphi 0, %s103
    %s105 = sphi 0, %s103
    %s106 = sphi 0, %s105
    %s120 = sphi 0, %s106
    %s124 = sphi 0, %s124
    %s126 = sphi 0, %s124
    %s127 = sphi 0, %s126
    %s141 = sphi 0, %s127
    %s147 = sphi 0, %s149
    %s150 = sphi 0, %s147
    %s151 = sphi 0, %s150
    %s167 = sphi 0, %s151
    %s173 = sphi 0, %s175
    %s176 = sphi 0, %s173
    %s177 = sphi 0, %s176
    %s193 = sphi 0, %s177
    %s199 = sphi 0, %s201
    %s202 = sphi 0, %s199
    %s203 = sphi 0, %s202
    %s219 = sphi 0, %s203
    %s225 = sphi 0, %s227
    %s228 = sphi 0, %s225
    %s229 = sphi 0, %s228
    %s245 = sphi 0, %s229
    %s251 = sphi 0, %s253
    %s254 = sphi 0, %s251
    %s255 = sphi 0, %s254
    %s271 = sphi 0, %s255
    %s277 = sphi 0, %s279
    %s280 = sphi 0, %s277
    %s281 = sphi 0, %s280
    %s297 = sphi 0, %s281
    %s303 = sphi 0, %s305
    %s306 = sphi 0, %s303
    %s307 = sphi 0, %s306
    %s323 = sphi 0, %s307
    %s329 = sphi 0, %s331
    %s332 = sphi 0, %s329
    %s333 = sphi 0, %s332
    %s349 = sphi 0, %s333
    %s355 = sphi 0, %s357
    %s358 = sphi 0, %s355
    %s359 = sphi 0, %s358
    %s375 = sphi 0, %s359
    %s381 = sphi 0, %s383
    %s384 = sphi 0, %s381
    %s385 = sphi 0, %s384
    %s401 = sphi 0, %s385
    %s407 = sphi 0, %s409
    %s410 = sphi 0, %s407
    %s411 = sphi 0, %s410
    %s427 = sphi 0, %s411
    %s433 = sphi 0, %s435
    %s436 = sphi 0, %s433
    %s437 = sphi 0, %s436
    %s453 = sphi 0, %s437
    %s457 = sphi 0, %s457
    %s459 = sphi 0, %s457
    %s460 = sphi 0, %s459
    %s474 = sphi 0, %s460
    %s478 = sphi 0, %s478
    %s480 = sphi 0, %s478
    %s481 = sphi 0, %s480
    %s495 = sphi 0, %s481
    %s499 = sphi 0, %s499
    %s501 = sphi 0, %s499
    %s502 = sphi 0, %s501
    %s516 = sphi 0, %s502
    %s520 = sphi 0, %s520
    %s522 = sphi 0, %s520
    %s523 = sphi 0, %s522
    %s537 = sphi 0, %s523
    %s541 = sphi 0, %s541
    %s543 = sphi 0, %s541
    %s544 = sphi 0, %s543
    %s558 = sphi 0, %s544
    %s562 = sphi 0, %s562
    %s564 = sphi 0, %s562
    %s565 = sphi 0, %s564
    %s579 = sphi 0, %s565
    %s583 = sphi 0, %s583
    %s585 = sphi 0, %s583
    %s586 = sphi 0, %s585
    %s600 = sphi 0, %s586
    %s604 = sphi 0, %s604
    %s606 = sphi 0, %s604
    %s607 = sphi 0, %s606
    %s621 = sphi 0, %s607
    %s625 = sphi 0, %s625
    %s627 = sphi 0, %s625
    %s628 = sphi 0, %s627
    %s642 = sphi 0, %s628
    %s646 = sphi 0, %s646
    %s648 = sphi 0, %s646
    %s649 = sphi 0, %s648
    %s663 = sphi 0, %s649
  $region4: #{openclip_man_forward.3} parent=0 // loop_header_branch
    %35 = sbr.rel (%p33) target = $region8
  $region5: #{openclip_man_forward.3} parent=0 // loop_body
    %s37 = ssub.s32 %s32, 1
    %s38 = ssub.s32 %s32, 2
    %s39 = sadd.s32 %s32, 1
    %s41 = sadd.s32 %s40, 1
    %p44 = scmp.eq.s32.totalorder %s32, 1
    %p45 = scmp.ne.s32.totalorder %s40, %s42
    %p46 = scmp.eq.s32.totalorder %s32, 0
    %p47 = por %p45, %p46
    %p48 = scmp.ne.s32.totalorder %s40, %s42
    %p49 = scmp.eq.s32.totalorder %s37, 1
    %p50 = por %p48, %p49
    %p51 = scmp.ne.s32.totalorder %s42, %s43
    %p52 = scmp.eq.s32.totalorder %s37, 0
    %p53 = por %p51, %p52
    %p54 = scmp.ne.s32.totalorder %s42, %s43
    %p55 = scmp.eq.s32.totalorder %s38, 1
    %p56 = por %p54, %p55
    %p58 = scmp.ne.s32.totalorder %s43, %s57
    %p59 = scmp.eq.s32.totalorder %s38, 0
    %p60 = por %p58, %p59
    %s62 = sadd.s32 %s61, 1
    %p65 = scmp.eq.s32.totalorder %s32, 1
    %p66 = scmp.ne.s32.totalorder %s61, %s63
    %p67 = scmp.eq.s32.totalorder %s32, 0
    %p68 = por %p66, %p67
    %p69 = scmp.ne.s32.totalorder %s61, %s63
    %p70 = scmp.eq.s32.totalorder %s37, 1
    %p71 = por %p69, %p70
    %p72 = scmp.ne.s32.totalorder %s63, %s64
    %p73 = scmp.eq.s32.totalorder %s37, 0
    %p74 = por %p72, %p73
    %p75 = scmp.ne.s32.totalorder %s63, %s64
    %p76 = scmp.eq.s32.totalorder %s38, 1
    %p77 = por %p75, %p76
    %p79 = scmp.ne.s32.totalorder %s64, %s78
    %p80 = scmp.eq.s32.totalorder %s38, 0
    %p81 = por %p79, %p80
    %s83 = sadd.s32 %s82, 1
    %p86 = scmp.eq.s32.totalorder %s32, 1
    %p87 = scmp.ne.s32.totalorder %s82, %s84
    %p88 = scmp.eq.s32.totalorder %s32, 0
    %p89 = por %p87, %p88
    %p90 = scmp.ne.s32.totalorder %s82, %s84
    %p91 = scmp.eq.s32.totalorder %s37, 1
    %p92 = por %p90, %p91
    %p93 = scmp.ne.s32.totalorder %s84, %s85
    %p94 = scmp.eq.s32.totalorder %s37, 0
    %p95 = por %p93, %p94
    %p96 = scmp.ne.s32.totalorder %s84, %s85
    %p97 = scmp.eq.s32.totalorder %s38, 1
    %p98 = por %p96, %p97
    %p100 = scmp.ne.s32.totalorder %s85, %s99
    %p101 = scmp.eq.s32.totalorder %s38, 0
    %p102 = por %p100, %p101
    %s104 = sadd.s32 %s103, 1
    %p107 = scmp.eq.s32.totalorder %s32, 1
    %p108 = scmp.ne.s32.totalorder %s103, %s105
    %p109 = scmp.eq.s32.totalorder %s32, 0
    %p110 = por %p108, %p109
    %p111 = scmp.ne.s32.totalorder %s103, %s105
    %p112 = scmp.eq.s32.totalorder %s37, 1
    %p113 = por %p111, %p112
    %p114 = scmp.ne.s32.totalorder %s105, %s106
    %p115 = scmp.eq.s32.totalorder %s37, 0
    %p116 = por %p114, %p115
    %p117 = scmp.ne.s32.totalorder %s105, %s106
    %p118 = scmp.eq.s32.totalorder %s38, 1
    %p119 = por %p117, %p118
    %p121 = scmp.ne.s32.totalorder %s106, %s120
    %p122 = scmp.eq.s32.totalorder %s38, 0
    %p123 = por %p121, %p122
    %s125 = sadd.s32 %s124, 1
    %p128 = scmp.eq.s32.totalorder %s32, 1
    %p129 = scmp.ne.s32.totalorder %s124, %s126
    %p130 = scmp.eq.s32.totalorder %s32, 0
    %p131 = por %p129, %p130
    %p132 = scmp.ne.s32.totalorder %s124, %s126
    %p133 = scmp.eq.s32.totalorder %s37, 1
    %p134 = por %p132, %p133
    %p135 = scmp.ne.s32.totalorder %s126, %s127
    %p136 = scmp.eq.s32.totalorder %s37, 0
    %p137 = por %p135, %p136
    %p138 = scmp.ne.s32.totalorder %s126, %s127
    %p139 = scmp.eq.s32.totalorder %s38, 1
    %p140 = por %p138, %p139
    %p142 = scmp.ne.s32.totalorder %s127, %s141
    %p143 = scmp.eq.s32.totalorder %s38, 0
    %p144 = por %p142, %p143
    %s145 = ssub.s32 %s32, %s39
    %p146 = scmp.eq.s32.totalorder %s145, 0
    %s148 = sadd.s32 %s147, 1
    %s149 = scalar_select %p146, %s147, %s148
    %p152 = pneg %p146
    %p153 = scmp.eq.s32.totalorder %s32, 1
    %p154 = por %p152, %p153
    %p155 = scmp.ne.s32.totalorder %s147, %s150
    %p156 = scmp.eq.s32.totalorder %s32, 0
    %p157 = por %p155, %p156
    %p158 = scmp.ne.s32.totalorder %s147, %s150
    %p159 = scmp.eq.s32.totalorder %s37, 1
    %p160 = por %p158, %p159
    %p161 = scmp.ne.s32.totalorder %s150, %s151
    %p162 = scmp.eq.s32.totalorder %s37, 0
    %p163 = por %p161, %p162
    %p164 = scmp.ne.s32.totalorder %s150, %s151
    %p165 = scmp.eq.s32.totalorder %s38, 1
    %p166 = por %p164, %p165
    %p168 = scmp.ne.s32.totalorder %s151, %s167
    %p169 = scmp.eq.s32.totalorder %s38, 0
    %p170 = por %p168, %p169
    %s171 = ssub.s32 %s32, %s39
    %p172 = scmp.eq.s32.totalorder %s171, 0
    %s174 = sadd.s32 %s173, 1
    %s175 = scalar_select %p172, %s173, %s174
    %p178 = pneg %p172
    %p179 = scmp.eq.s32.totalorder %s32, 1
    %p180 = por %p178, %p179
    %p181 = scmp.ne.s32.totalorder %s173, %s176
    %p182 = scmp.eq.s32.totalorder %s32, 0
    %p183 = por %p181, %p182
    %p184 = scmp.ne.s32.totalorder %s173, %s176
    %p185 = scmp.eq.s32.totalorder %s37, 1
    %p186 = por %p184, %p185
    %p187 = scmp.ne.s32.totalorder %s176, %s177
    %p188 = scmp.eq.s32.totalorder %s37, 0
    %p189 = por %p187, %p188
    %p190 = scmp.ne.s32.totalorder %s176, %s177
    %p191 = scmp.eq.s32.totalorder %s38, 1
    %p192 = por %p190, %p191
    %p194 = scmp.ne.s32.totalorder %s177, %s193
    %p195 = scmp.eq.s32.totalorder %s38, 0
    %p196 = por %p194, %p195
    %s197 = ssub.s32 %s32, %s39
    %p198 = scmp.eq.s32.totalorder %s197, 0
    %s200 = sadd.s32 %s199, 1
    %s201 = scalar_select %p198, %s199, %s200
    %p204 = pneg %p198
    %p205 = scmp.eq.s32.totalorder %s32, 1
    %p206 = por %p204, %p205
    %p207 = scmp.ne.s32.totalorder %s199, %s202
    %p208 = scmp.eq.s32.totalorder %s32, 0
    %p209 = por %p207, %p208
    %p210 = scmp.ne.s32.totalorder %s199, %s202
    %p211 = scmp.eq.s32.totalorder %s37, 1
    %p212 = por %p210, %p211
    %p213 = scmp.ne.s32.totalorder %s202, %s203
    %p214 = scmp.eq.s32.totalorder %s37, 0
    %p215 = por %p213, %p214
    %p216 = scmp.ne.s32.totalorder %s202, %s203
    %p217 = scmp.eq.s32.totalorder %s38, 1
    %p218 = por %p216, %p217
    %p220 = scmp.ne.s32.totalorder %s203, %s219
    %p221 = scmp.eq.s32.totalorder %s38, 0
    %p222 = por %p220, %p221
    %s223 = ssub.s32 %s32, %s39
    %p224 = scmp.eq.s32.totalorder %s223, 0
    %s226 = sadd.s32 %s225, 1
    %s227 = scalar_select %p224, %s225, %s226
    %p230 = pneg %p224
    %p231 = scmp.eq.s32.totalorder %s32, 1
    %p232 = por %p230, %p231
    %p233 = scmp.ne.s32.totalorder %s225, %s228
    %p234 = scmp.eq.s32.totalorder %s32, 0
    %p235 = por %p233, %p234
    %p236 = scmp.ne.s32.totalorder %s225, %s228
    %p237 = scmp.eq.s32.totalorder %s37, 1
    %p238 = por %p236, %p237
    %p239 = scmp.ne.s32.totalorder %s228, %s229
    %p240 = scmp.eq.s32.totalorder %s37, 0
    %p241 = por %p239, %p240
    %p242 = scmp.ne.s32.totalorder %s228, %s229
    %p243 = scmp.eq.s32.totalorder %s38, 1
    %p244 = por %p242, %p243
    %p246 = scmp.ne.s32.totalorder %s229, %s245
    %p247 = scmp.eq.s32.totalorder %s38, 0
    %p248 = por %p246, %p247
    %s249 = ssub.s32 %s32, %s39
    %p250 = scmp.eq.s32.totalorder %s249, 0
    %s252 = sadd.s32 %s251, 1
    %s253 = scalar_select %p250, %s251, %s252
    %p256 = pneg %p250
    %p257 = scmp.eq.s32.totalorder %s32, 1
    %p258 = por %p256, %p257
    %p259 = scmp.ne.s32.totalorder %s251, %s254
    %p260 = scmp.eq.s32.totalorder %s32, 0
    %p261 = por %p259, %p260
    %p262 = scmp.ne.s32.totalorder %s251, %s254
    %p263 = scmp.eq.s32.totalorder %s37, 1
    %p264 = por %p262, %p263
    %p265 = scmp.ne.s32.totalorder %s254, %s255
    %p266 = scmp.eq.s32.totalorder %s37, 0
    %p267 = por %p265, %p266
    %p268 = scmp.ne.s32.totalorder %s254, %s255
    %p269 = scmp.eq.s32.totalorder %s38, 1
    %p270 = por %p268, %p269
    %p272 = scmp.ne.s32.totalorder %s255, %s271
    %p273 = scmp.eq.s32.totalorder %s38, 0
    %p274 = por %p272, %p273
    %s275 = ssub.s32 %s32, %s39
    %p276 = scmp.eq.s32.totalorder %s275, 0
    %s278 = sadd.s32 %s277, 1
    %s279 = scalar_select %p276, %s277, %s278
    %p282 = pneg %p276
    %p283 = scmp.eq.s32.totalorder %s32, 1
    %p284 = por %p282, %p283
    %p285 = scmp.ne.s32.totalorder %s277, %s280
    %p286 = scmp.eq.s32.totalorder %s32, 0
    %p287 = por %p285, %p286
    %p288 = scmp.ne.s32.totalorder %s277, %s280
    %p289 = scmp.eq.s32.totalorder %s37, 1
    %p290 = por %p288, %p289
    %p291 = scmp.ne.s32.totalorder %s280, %s281
    %p292 = scmp.eq.s32.totalorder %s37, 0
    %p293 = por %p291, %p292
    %p294 = scmp.ne.s32.totalorder %s280, %s281
    %p295 = scmp.eq.s32.totalorder %s38, 1
    %p296 = por %p294, %p295
    %p298 = scmp.ne.s32.totalorder %s281, %s297
    %p299 = scmp.eq.s32.totalorder %s38, 0
    %p300 = por %p298, %p299
    %s301 = ssub.s32 %s32, %s39
    %p302 = scmp.eq.s32.totalorder %s301, 0
    %s304 = sadd.s32 %s303, 1
    %s305 = scalar_select %p302, %s303, %s304
    %p308 = pneg %p302
    %p309 = scmp.eq.s32.totalorder %s32, 1
    %p310 = por %p308, %p309
    %p311 = scmp.ne.s32.totalorder %s303, %s306
    %p312 = scmp.eq.s32.totalorder %s32, 0
    %p313 = por %p311, %p312
    %p314 = scmp.ne.s32.totalorder %s303, %s306
    %p315 = scmp.eq.s32.totalorder %s37, 1
    %p316 = por %p314, %p315
    %p317 = scmp.ne.s32.totalorder %s306, %s307
    %p318 = scmp.eq.s32.totalorder %s37, 0
    %p319 = por %p317, %p318
    %p320 = scmp.ne.s32.totalorder %s306, %s307
    %p321 = scmp.eq.s32.totalorder %s38, 1
    %p322 = por %p320, %p321
    %p324 = scmp.ne.s32.totalorder %s307, %s323
    %p325 = scmp.eq.s32.totalorder %s38, 0
    %p326 = por %p324, %p325
    %s327 = ssub.s32 %s32, %s39
    %p328 = scmp.eq.s32.totalorder %s327, 0
    %s330 = sadd.s32 %s329, 1
    %s331 = scalar_select %p328, %s329, %s330
    %p334 = pneg %p328
    %p335 = scmp.eq.s32.totalorder %s32, 1
    %p336 = por %p334, %p335
    %p337 = scmp.ne.s32.totalorder %s329, %s332
    %p338 = scmp.eq.s32.totalorder %s32, 0
    %p339 = por %p337, %p338
    %p340 = scmp.ne.s32.totalorder %s329, %s332
    %p341 = scmp.eq.s32.totalorder %s37, 1
    %p342 = por %p340, %p341
    %p343 = scmp.ne.s32.totalorder %s332, %s333
    %p344 = scmp.eq.s32.totalorder %s37, 0
    %p345 = por %p343, %p344
    %p346 = scmp.ne.s32.totalorder %s332, %s333
    %p347 = scmp.eq.s32.totalorder %s38, 1
    %p348 = por %p346, %p347
    %p350 = scmp.ne.s32.totalorder %s333, %s349
    %p351 = scmp.eq.s32.totalorder %s38, 0
    %p352 = por %p350, %p351
    %s353 = ssub.s32 %s32, %s39
    %p354 = scmp.eq.s32.totalorder %s353, 0
    %s356 = sadd.s32 %s355, 1
    %s357 = scalar_select %p354, %s355, %s356
    %p360 = pneg %p354
    %p361 = scmp.eq.s32.totalorder %s32, 1
    %p362 = por %p360, %p361
    %p363 = scmp.ne.s32.totalorder %s355, %s358
    %p364 = scmp.eq.s32.totalorder %s32, 0
    %p365 = por %p363, %p364
    %p366 = scmp.ne.s32.totalorder %s355, %s358
    %p367 = scmp.eq.s32.totalorder %s37, 1
    %p368 = por %p366, %p367
    %p369 = scmp.ne.s32.totalorder %s358, %s359
    %p370 = scmp.eq.s32.totalorder %s37, 0
    %p371 = por %p369, %p370
    %p372 = scmp.ne.s32.totalorder %s358, %s359
    %p373 = scmp.eq.s32.totalorder %s38, 1
    %p374 = por %p372, %p373
    %p376 = scmp.ne.s32.totalorder %s359, %s375
    %p377 = scmp.eq.s32.totalorder %s38, 0
    %p378 = por %p376, %p377
    %s379 = ssub.s32 %s32, %s39
    %p380 = scmp.eq.s32.totalorder %s379, 0
    %s382 = sadd.s32 %s381, 1
    %s383 = scalar_select %p380, %s381, %s382
    %p386 = pneg %p380
    %p387 = scmp.eq.s32.totalorder %s32, 1
    %p388 = por %p386, %p387
    %p389 = scmp.ne.s32.totalorder %s381, %s384
    %p390 = scmp.eq.s32.totalorder %s32, 0
    %p391 = por %p389, %p390
    %p392 = scmp.ne.s32.totalorder %s381, %s384
    %p393 = scmp.eq.s32.totalorder %s37, 1
    %p394 = por %p392, %p393
    %p395 = scmp.ne.s32.totalorder %s384, %s385
    %p396 = scmp.eq.s32.totalorder %s37, 0
    %p397 = por %p395, %p396
    %p398 = scmp.ne.s32.totalorder %s384, %s385
    %p399 = scmp.eq.s32.totalorder %s38, 1
    %p400 = por %p398, %p399
    %p402 = scmp.ne.s32.totalorder %s385, %s401
    %p403 = scmp.eq.s32.totalorder %s38, 0
    %p404 = por %p402, %p403
    %s405 = ssub.s32 %s32, %s39
    %p406 = scmp.eq.s32.totalorder %s405, 0
    %s408 = sadd.s32 %s407, 1
    %s409 = scalar_select %p406, %s407, %s408
    %p412 = pneg %p406
    %p413 = scmp.eq.s32.totalorder %s32, 1
    %p414 = por %p412, %p413
    %p415 = scmp.ne.s32.totalorder %s407, %s410
    %p416 = scmp.eq.s32.totalorder %s32, 0
    %p417 = por %p415, %p416
    %p418 = scmp.ne.s32.totalorder %s407, %s410
    %p419 = scmp.eq.s32.totalorder %s37, 1
    %p420 = por %p418, %p419
    %p421 = scmp.ne.s32.totalorder %s410, %s411
    %p422 = scmp.eq.s32.totalorder %s37, 0
    %p423 = por %p421, %p422
    %p424 = scmp.ne.s32.totalorder %s410, %s411
    %p425 = scmp.eq.s32.totalorder %s38, 1
    %p426 = por %p424, %p425
    %p428 = scmp.ne.s32.totalorder %s411, %s427
    %p429 = scmp.eq.s32.totalorder %s38, 0
    %p430 = por %p428, %p429
    %s431 = ssub.s32 %s32, %s39
    %p432 = scmp.eq.s32.totalorder %s431, 0
    %s434 = sadd.s32 %s433, 1
    %s435 = scalar_select %p432, %s433, %s434
    %p438 = pneg %p432
    %p439 = scmp.eq.s32.totalorder %s32, 1
    %p440 = por %p438, %p439
    %p441 = scmp.ne.s32.totalorder %s433, %s436
    %p442 = scmp.eq.s32.totalorder %s32, 0
    %p443 = por %p441, %p442
    %p444 = scmp.ne.s32.totalorder %s433, %s436
    %p445 = scmp.eq.s32.totalorder %s37, 1
    %p446 = por %p444, %p445
    %p447 = scmp.ne.s32.totalorder %s436, %s437
    %p448 = scmp.eq.s32.totalorder %s37, 0
    %p449 = por %p447, %p448
    %p450 = scmp.ne.s32.totalorder %s436, %s437
    %p451 = scmp.eq.s32.totalorder %s38, 1
    %p452 = por %p450, %p451
    %p454 = scmp.ne.s32.totalorder %s437, %s453
    %p455 = scmp.eq.s32.totalorder %s38, 0
    %p456 = por %p454, %p455
    %s458 = sadd.s32 %s457, 1
    %p461 = scmp.eq.s32.totalorder %s32, 1
    %p462 = scmp.ne.s32.totalorder %s457, %s459
    %p463 = scmp.eq.s32.totalorder %s32, 0
    %p464 = por %p462, %p463
    %p465 = scmp.ne.s32.totalorder %s457, %s459
    %p466 = scmp.eq.s32.totalorder %s37, 1
    %p467 = por %p465, %p466
    %p468 = scmp.ne.s32.totalorder %s459, %s460
    %p469 = scmp.eq.s32.totalorder %s37, 0
    %p470 = por %p468, %p469
    %p471 = scmp.ne.s32.totalorder %s459, %s460
    %p472 = scmp.eq.s32.totalorder %s38, 1
    %p473 = por %p471, %p472
    %p475 = scmp.ne.s32.totalorder %s460, %s474
    %p476 = scmp.eq.s32.totalorder %s38, 0
    %p477 = por %p475, %p476
    %s479 = sadd.s32 %s478, 1
    %p482 = scmp.eq.s32.totalorder %s32, 1
    %p483 = scmp.ne.s32.totalorder %s478, %s480
    %p484 = scmp.eq.s32.totalorder %s32, 0
    %p485 = por %p483, %p484
    %p486 = scmp.ne.s32.totalorder %s478, %s480
    %p487 = scmp.eq.s32.totalorder %s37, 1
    %p488 = por %p486, %p487
    %p489 = scmp.ne.s32.totalorder %s480, %s481
    %p490 = scmp.eq.s32.totalorder %s37, 0
    %p491 = por %p489, %p490
    %p492 = scmp.ne.s32.totalorder %s480, %s481
    %p493 = scmp.eq.s32.totalorder %s38, 1
    %p494 = por %p492, %p493
    %p496 = scmp.ne.s32.totalorder %s481, %s495
    %p497 = scmp.eq.s32.totalorder %s38, 0
    %p498 = por %p496, %p497
    %s500 = sadd.s32 %s499, 1
    %p503 = scmp.eq.s32.totalorder %s32, 1
    %p504 = scmp.ne.s32.totalorder %s499, %s501
    %p505 = scmp.eq.s32.totalorder %s32, 0
    %p506 = por %p504, %p505
    %p507 = scmp.ne.s32.totalorder %s499, %s501
    %p508 = scmp.eq.s32.totalorder %s37, 1
    %p509 = por %p507, %p508
    %p510 = scmp.ne.s32.totalorder %s501, %s502
    %p511 = scmp.eq.s32.totalorder %s37, 0
    %p512 = por %p510, %p511
    %p513 = scmp.ne.s32.totalorder %s501, %s502
    %p514 = scmp.eq.s32.totalorder %s38, 1
    %p515 = por %p513, %p514
    %p517 = scmp.ne.s32.totalorder %s502, %s516
    %p518 = scmp.eq.s32.totalorder %s38, 0
    %p519 = por %p517, %p518
    %s521 = sadd.s32 %s520, 1
    %p524 = scmp.eq.s32.totalorder %s32, 1
    %p525 = scmp.ne.s32.totalorder %s520, %s522
    %p526 = scmp.eq.s32.totalorder %s32, 0
    %p527 = por %p525, %p526
    %p528 = scmp.ne.s32.totalorder %s520, %s522
    %p529 = scmp.eq.s32.totalorder %s37, 1
    %p530 = por %p528, %p529
    %p531 = scmp.ne.s32.totalorder %s522, %s523
    %p532 = scmp.eq.s32.totalorder %s37, 0
    %p533 = por %p531, %p532
    %p534 = scmp.ne.s32.totalorder %s522, %s523
    %p535 = scmp.eq.s32.totalorder %s38, 1
    %p536 = por %p534, %p535
    %p538 = scmp.ne.s32.totalorder %s523, %s537
    %p539 = scmp.eq.s32.totalorder %s38, 0
    %p540 = por %p538, %p539
    %s542 = sadd.s32 %s541, 1
    %p545 = scmp.eq.s32.totalorder %s32, 1
    %p546 = scmp.ne.s32.totalorder %s541, %s543
    %p547 = scmp.eq.s32.totalorder %s32, 0
    %p548 = por %p546, %p547
    %p549 = scmp.ne.s32.totalorder %s541, %s543
    %p550 = scmp.eq.s32.totalorder %s37, 1
    %p551 = por %p549, %p550
    %p552 = scmp.ne.s32.totalorder %s543, %s544
    %p553 = scmp.eq.s32.totalorder %s37, 0
    %p554 = por %p552, %p553
    %p555 = scmp.ne.s32.totalorder %s543, %s544
    %p556 = scmp.eq.s32.totalorder %s38, 1
    %p557 = por %p555, %p556
    %p559 = scmp.ne.s32.totalorder %s544, %s558
    %p560 = scmp.eq.s32.totalorder %s38, 0
    %p561 = por %p559, %p560
    %s563 = sadd.s32 %s562, 1
    %p566 = scmp.eq.s32.totalorder %s32, 1
    %p567 = scmp.ne.s32.totalorder %s562, %s564
    %p568 = scmp.eq.s32.totalorder %s32, 0
    %p569 = por %p567, %p568
    %p570 = scmp.ne.s32.totalorder %s562, %s564
    %p571 = scmp.eq.s32.totalorder %s37, 1
    %p572 = por %p570, %p571
    %p573 = scmp.ne.s32.totalorder %s564, %s565
    %p574 = scmp.eq.s32.totalorder %s37, 0
    %p575 = por %p573, %p574
    %p576 = scmp.ne.s32.totalorder %s564, %s565
    %p577 = scmp.eq.s32.totalorder %s38, 1
    %p578 = por %p576, %p577
    %p580 = scmp.ne.s32.totalorder %s565, %s579
    %p581 = scmp.eq.s32.totalorder %s38, 0
    %p582 = por %p580, %p581
    %s584 = sadd.s32 %s583, 1
    %p587 = scmp.eq.s32.totalorder %s32, 1
    %p588 = scmp.ne.s32.totalorder %s583, %s585
    %p589 = scmp.eq.s32.totalorder %s32, 0
    %p590 = por %p588, %p589
    %p591 = scmp.ne.s32.totalorder %s583, %s585
    %p592 = scmp.eq.s32.totalorder %s37, 1
    %p593 = por %p591, %p592
    %p594 = scmp.ne.s32.totalorder %s585, %s586
    %p595 = scmp.eq.s32.totalorder %s37, 0
    %p596 = por %p594, %p595
    %p597 = scmp.ne.s32.totalorder %s585, %s586
    %p598 = scmp.eq.s32.totalorder %s38, 1
    %p599 = por %p597, %p598
    %p601 = scmp.ne.s32.totalorder %s586, %s600
    %p602 = scmp.eq.s32.totalorder %s38, 0
    %p603 = por %p601, %p602
    %s605 = sadd.s32 %s604, 1
    %p608 = scmp.eq.s32.totalorder %s32, 1
    %p609 = scmp.ne.s32.totalorder %s604, %s606
    %p610 = scmp.eq.s32.totalorder %s32, 0
    %p611 = por %p609, %p610
    %p612 = scmp.ne.s32.totalorder %s604, %s606
    %p613 = scmp.eq.s32.totalorder %s37, 1
    %p614 = por %p612, %p613
    %p615 = scmp.ne.s32.totalorder %s606, %s607
    %p616 = scmp.eq.s32.totalorder %s37, 0
    %p617 = por %p615, %p616
    %p618 = scmp.ne.s32.totalorder %s606, %s607
    %p619 = scmp.eq.s32.totalorder %s38, 1
    %p620 = por %p618, %p619
    %p622 = scmp.ne.s32.totalorder %s607, %s621
    %p623 = scmp.eq.s32.totalorder %s38, 0
    %p624 = por %p622, %p623
    %s626 = sadd.s32 %s625, 1
    %p629 = scmp.eq.s32.totalorder %s32, 1
    %p630 = scmp.ne.s32.totalorder %s625, %s627
    %p631 = scmp.eq.s32.totalorder %s32, 0
    %p632 = por %p630, %p631
    %p633 = scmp.ne.s32.totalorder %s625, %s627
    %p634 = scmp.eq.s32.totalorder %s37, 1
    %p635 = por %p633, %p634
    %p636 = scmp.ne.s32.totalorder %s627, %s628
    %p637 = scmp.eq.s32.totalorder %s37, 0
    %p638 = por %p636, %p637
    %p639 = scmp.ne.s32.totalorder %s627, %s628
    %p640 = scmp.eq.s32.totalorder %s38, 1
    %p641 = por %p639, %p640
    %p643 = scmp.ne.s32.totalorder %s628, %s642
    %p644 = scmp.eq.s32.totalorder %s38, 0
    %p645 = por %p643, %p644
    %s647 = sadd.s32 %s646, 1
    %p650 = scmp.eq.s32.totalorder %s32, 1
    %p651 = scmp.ne.s32.totalorder %s646, %s648
    %p652 = scmp.eq.s32.totalorder %s32, 0
    %p653 = por %p651, %p652
    %p654 = scmp.ne.s32.totalorder %s646, %s648
    %p655 = scmp.eq.s32.totalorder %s37, 1
    %p656 = por %p654, %p655
    %p657 = scmp.ne.s32.totalorder %s648, %s649
    %p658 = scmp.eq.s32.totalorder %s37, 0
    %p659 = por %p657, %p658
    %p660 = scmp.ne.s32.totalorder %s648, %s649
    %p661 = scmp.eq.s32.totalorder %s38, 1
    %p662 = por %p660, %p661
    %p664 = scmp.ne.s32.totalorder %s649, %s663
    %p665 = scmp.eq.s32.totalorder %s38, 0
    %p666 = por %p664, %p665
    %p667 = scmp.le.s32.totalorder 1, %s32
    %p668 = scmp.lt.s32.totalorder %s32, 3
    %p669 = pnand %p667, %p668
    %p670 = pneg %p669
    // Predicated region
    $region9: #{openclip_man_forward.3} parent=5 // pred_check
      _
    $region10: #{openclip_man_forward.3} parent=5 // pred_check_branch
      %672 = sbr.rel (%p669) target = $region12
    $region11: #{openclip_man_forward.3} parent=5 // pred_region
      %s673 = ssub.s32 %s32, 1
      // Predicated region
      $region13: #{openclip_man_forward.3} parent=11 // pred_check
        %p674 = pneg %p53
      $region14: #{openclip_man_forward.3} parent=11 // pred_check_branch
        %676 = sbr.rel (%p674) target = $region16
      $region15: #{openclip_man_forward.3} parent=11 // pred_region
        _
      $region16: #{openclip_man_forward.3} parent=11 // pred_fallthru
        _
      // Predicated region
      $region17: #{openclip_man_forward.3} parent=11 // pred_check
        %p677 = pneg %p74
      $region18: #{openclip_man_forward.3} parent=11 // pred_check_branch
        %679 = sbr.rel (%p677) target = $region20
      $region19: #{openclip_man_forward.3} parent=11 // pred_region
        _
      $region20: #{openclip_man_forward.3} parent=11 // pred_fallthru
        _
      // Predicated region
      $region21: #{openclip_man_forward.3} parent=11 // pred_check
        %p680 = pneg %p95
      $region22: #{openclip_man_forward.3} parent=11 // pred_check_branch
        %682 = sbr.rel (%p680) target = $region24
      $region23: #{openclip_man_forward.3} parent=11 // pred_region
        _
      $region24: #{openclip_man_forward.3} parent=11 // pred_fallthru
        _
      // Predicated region
      $region25: #{openclip_man_forward.3} parent=11 // pred_check
        %p683 = pneg %p116
      $region26: #{openclip_man_forward.3} parent=11 // pred_check_branch
        %685 = sbr.rel (%p683) target = $region28
      $region27: #{openclip_man_forward.3} parent=11 // pred_region
        _
      $region28: #{openclip_man_forward.3} parent=11 // pred_fallthru
        _
      // Predicated region
      $region29: #{openclip_man_forward.3} parent=11 // pred_check
        %p686 = pneg %p137
      $region30: #{openclip_man_forward.3} parent=11 // pred_check_branch
        %688 = sbr.rel (%p686) target = $region32
      $region31: #{openclip_man_forward.3} parent=11 // pred_region
        _
      $region32: #{openclip_man_forward.3} parent=11 // pred_fallthru
        _
      // Predicated region
      $region33: #{openclip_man_forward.3} parent=11 // pred_check
        %p689 = pneg %p470
      $region34: #{openclip_man_forward.3} parent=11 // pred_check_branch
        %691 = sbr.rel (%p689) target = $region36
      $region35: #{openclip_man_forward.3} parent=11 // pred_region
        _
      $region36: #{openclip_man_forward.3} parent=11 // pred_fallthru
        _
      // Predicated region
      $region37: #{openclip_man_forward.3} parent=11 // pred_check
        %p692 = pneg %p491
      $region38: #{openclip_man_forward.3} parent=11 // pred_check_branch
        %694 = sbr.rel (%p692) target = $region40
      $region39: #{openclip_man_forward.3} parent=11 // pred_region
        _
      $region40: #{openclip_man_forward.3} parent=11 // pred_fallthru
        _
      // Predicated region
      $region41: #{openclip_man_forward.3} parent=11 // pred_check
        %p695 = pneg %p512
      $region42: #{openclip_man_forward.3} parent=11 // pred_check_branch
        %697 = sbr.rel (%p695) target = $region44
      $region43: #{openclip_man_forward.3} parent=11 // pred_region
        _
      $region44: #{openclip_man_forward.3} parent=11 // pred_fallthru
        _
      // Predicated region
      $region45: #{openclip_man_forward.3} parent=11 // pred_check
        %p698 = pneg %p533
      $region46: #{openclip_man_forward.3} parent=11 // pred_check_branch
        %700 = sbr.rel (%p698) target = $region48
      $region47: #{openclip_man_forward.3} parent=11 // pred_region
        _
      $region48: #{openclip_man_forward.3} parent=11 // pred_fallthru
        _
      // Predicated region
      $region49: #{openclip_man_forward.3} parent=11 // pred_check
        %p701 = pneg %p554
      $region50: #{openclip_man_forward.3} parent=11 // pred_check_branch
        %703 = sbr.rel (%p701) target = $region52
      $region51: #{openclip_man_forward.3} parent=11 // pred_region
        _
      $region52: #{openclip_man_forward.3} parent=11 // pred_fallthru
        _
      // Predicated region
      $region53: #{openclip_man_forward.3} parent=11 // pred_check
        %p704 = pneg %p575
      $region54: #{openclip_man_forward.3} parent=11 // pred_check_branch
        %706 = sbr.rel (%p704) target = $region56
      $region55: #{openclip_man_forward.3} parent=11 // pred_region
        _
      $region56: #{openclip_man_forward.3} parent=11 // pred_fallthru
        _
      // Predicated region
      $region57: #{openclip_man_forward.3} parent=11 // pred_check
        %p707 = pneg %p596
      $region58: #{openclip_man_forward.3} parent=11 // pred_check_branch
        %709 = sbr.rel (%p707) target = $region60
      $region59: #{openclip_man_forward.3} parent=11 // pred_region
        _
      $region60: #{openclip_man_forward.3} parent=11 // pred_fallthru
        _
      // Predicated region
      $region61: #{openclip_man_forward.3} parent=11 // pred_check
        %p710 = pneg %p617
      $region62: #{openclip_man_forward.3} parent=11 // pred_check_branch
        %712 = sbr.rel (%p710) target = $region64
      $region63: #{openclip_man_forward.3} parent=11 // pred_region
        _
      $region64: #{openclip_man_forward.3} parent=11 // pred_fallthru
        _
      // Predicated region
      $region65: #{openclip_man_forward.3} parent=11 // pred_check
        %p713 = pneg %p638
      $region66: #{openclip_man_forward.3} parent=11 // pred_check_branch
        %715 = sbr.rel (%p713) target = $region68
      $region67: #{openclip_man_forward.3} parent=11 // pred_region
        _
      $region68: #{openclip_man_forward.3} parent=11 // pred_fallthru
        _
    $region12: #{openclip_man_forward.3} parent=5 // pred_fallthru
      _
    %p716 = scmp.lt.s32.totalorder %s32, 2
    // Predicated region
    $region69: #{openclip_man_forward.3} parent=5 // pred_check
      %p717 = pneg %p716
    $region70: #{openclip_man_forward.3} parent=5 // pred_check_branch
      %719 = sbr.rel (%p717) target = $region72
    $region71: #{openclip_man_forward.3} parent=5 // pred_region
      // Predicated region
      $region73: #{openclip_man_forward.3} parent=71 // pred_check
        %p720 = pneg %p157
      $region74: #{openclip_man_forward.3} parent=71 // pred_check_branch
        %722 = sbr.rel (%p720) target = $region76
      $region75: #{openclip_man_forward.3} parent=71 // pred_region
        %p723 = scmp.lt.s32.totalorder %s32, 1
        %s724 = scalar_select %p723, %s32, 1
        %s725 = scalar_lea.vmem %s5, %s724
      $region76: #{openclip_man_forward.3} parent=71 // pred_fallthru
        _
      // Predicated region
      $region77: #{openclip_man_forward.3} parent=71 // pred_check
        %p726 = pneg %p183
      $region78: #{openclip_man_forward.3} parent=71 // pred_check_branch
        %728 = sbr.rel (%p726) target = $region80
      $region79: #{openclip_man_forward.3} parent=71 // pred_region
        %p729 = scmp.lt.s32.totalorder %s32, 1
        %s730 = scalar_select %p729, %s32, 1
        %s731 = scalar_lea.vmem %s6, %s730
      $region80: #{openclip_man_forward.3} parent=71 // pred_fallthru
        _
      // Predicated region
      $region81: #{openclip_man_forward.3} parent=71 // pred_check
        %p732 = pneg %p209
      $region82: #{openclip_man_forward.3} parent=71 // pred_check_branch
        %734 = sbr.rel (%p732) target = $region84
      $region83: #{openclip_man_forward.3} parent=71 // pred_region
        %p735 = scmp.lt.s32.totalorder %s32, 1
        %s736 = scalar_select %p735, %s32, 1
        %s737 = smul.addr %s736, 16
        %s738 = smul.addr %s737, 4
        %s739 = scalar_lea.vmem %s7, %s738
      $region84: #{openclip_man_forward.3} parent=71 // pred_fallthru
        _
      // Predicated region
      $region85: #{openclip_man_forward.3} parent=71 // pred_check
        %p740 = pneg %p235
      $region86: #{openclip_man_forward.3} parent=71 // pred_check_branch
        %742 = sbr.rel (%p740) target = $region88
      $region87: #{openclip_man_forward.3} parent=71 // pred_region
        %p743 = scmp.lt.s32.totalorder %s32, 1
        %s744 = scalar_select %p743, %s32, 1
        %s745 = smul.addr %s744, 2
        %s746 = scalar_lea.vmem %s8, %s745
      $region88: #{openclip_man_forward.3} parent=71 // pred_fallthru
        _
      // Predicated region
      $region89: #{openclip_man_forward.3} parent=71 // pred_check
        %p747 = pneg %p261
      $region90: #{openclip_man_forward.3} parent=71 // pred_check_branch
        %749 = sbr.rel (%p747) target = $region92
      $region91: #{openclip_man_forward.3} parent=71 // pred_region
        %p750 = scmp.lt.s32.totalorder %s32, 1
        %s751 = scalar_select %p750, %s32, 1
        %s752 = smul.addr %s751, 8
        %s753 = smul.addr %s752, 4
        %s754 = scalar_lea.vmem %s9, %s753
      $region92: #{openclip_man_forward.3} parent=71 // pred_fallthru
        _
      // Predicated region
      $region93: #{openclip_man_forward.3} parent=71 // pred_check
        %p755 = pneg %p287
      $region94: #{openclip_man_forward.3} parent=71 // pred_check_branch
        %757 = sbr.rel (%p755) target = $region96
      $region95: #{openclip_man_forward.3} parent=71 // pred_region
        %p758 = scmp.lt.s32.totalorder %s32, 1
        %s759 = scalar_select %p758, %s32, 1
        %s760 = scalar_lea.vmem %s10, %s759
      $region96: #{openclip_man_forward.3} parent=71 // pred_fallthru
        _
      // Predicated region
      $region97: #{openclip_man_forward.3} parent=71 // pred_check
        %p761 = pneg %p313
      $region98: #{openclip_man_forward.3} parent=71 // pred_check_branch
        %763 = sbr.rel (%p761) target = $region100
      $region99: #{openclip_man_forward.3} parent=71 // pred_region
        %p764 = scmp.lt.s32.totalorder %s32, 1
        %s765 = scalar_select %p764, %s32, 1
        %s766 = scalar_lea.vmem %s11, %s765
      $region100: #{openclip_man_forward.3} parent=71 // pred_fallthru
        _
      // Predicated region
      $region101: #{openclip_man_forward.3} parent=71 // pred_check
        %p767 = pneg %p339
      $region102: #{openclip_man_forward.3} parent=71 // pred_check_branch
        %769 = sbr.rel (%p767) target = $region104
      $region103: #{openclip_man_forward.3} parent=71 // pred_region
        %p770 = scmp.lt.s32.totalorder %s32, 1
        %s771 = scalar_select %p770, %s32, 1
        %s772 = scalar_lea.vmem %s12, %s771
      $region104: #{openclip_man_forward.3} parent=71 // pred_fallthru
        _
      // Predicated region
      $region105: #{openclip_man_forward.3} parent=71 // pred_check
        %p773 = pneg %p365
      $region106: #{openclip_man_forward.3} parent=71 // pred_check_branch
        %775 = sbr.rel (%p773) target = $region108
      $region107: #{openclip_man_forward.3} parent=71 // pred_region
        %p776 = scmp.lt.s32.totalorder %s32, 1
        %s777 = scalar_select %p776, %s32, 1
        %s778 = smul.addr %s777, 16
        %s779 = smul.addr %s778, 4
        %s780 = scalar_lea.vmem %s13, %s779
      $region108: #{openclip_man_forward.3} parent=71 // pred_fallthru
        _
      // Predicated region
      $region109: #{openclip_man_forward.3} parent=71 // pred_check
        %p781 = pneg %p391
      $region110: #{openclip_man_forward.3} parent=71 // pred_check_branch
        %783 = sbr.rel (%p781) target = $region112
      $region111: #{openclip_man_forward.3} parent=71 // pred_region
        %p784 = scmp.lt.s32.totalorder %s32, 1
        %s785 = scalar_select %p784, %s32, 1
        %s786 = smul.addr %s785, 2
        %s787 = scalar_lea.vmem %s14, %s786
      $region112: #{openclip_man_forward.3} parent=71 // pred_fallthru
        _
      // Predicated region
      $region113: #{openclip_man_forward.3} parent=71 // pred_check
        %p788 = pneg %p417
      $region114: #{openclip_man_forward.3} parent=71 // pred_check_branch
        %790 = sbr.rel (%p788) target = $region116
      $region115: #{openclip_man_forward.3} parent=71 // pred_region
        %p791 = scmp.lt.s32.totalorder %s32, 1
        %s792 = scalar_select %p791, %s32, 1
        %s793 = smul.addr %s792, 32
        %s794 = smul.addr %s793, 4
        %s795 = scalar_lea.vmem %s15, %s794
      $region116: #{openclip_man_forward.3} parent=71 // pred_fallthru
        _
      // Predicated region
      $region117: #{openclip_man_forward.3} parent=71 // pred_check
        %p796 = pneg %p443
      $region118: #{openclip_man_forward.3} parent=71 // pred_check_branch
        %798 = sbr.rel (%p796) target = $region120
      $region119: #{openclip_man_forward.3} parent=71 // pred_region
        %p799 = scmp.lt.s32.totalorder %s32, 1
        %s800 = scalar_select %p799, %s32, 1
        %s801 = scalar_lea.vmem %s16, %s800
      $region120: #{openclip_man_forward.3} parent=71 // pred_fallthru
        _
    $region72: #{openclip_man_forward.3} parent=5 // pred_fallthru
      _
    %p802 = scmp.le.s32.totalorder 1, %s32
    %p803 = scmp.lt.s32.totalorder %s32, 3
    %p804 = pnand %p802, %p803
    %p805 = pneg %p804
    // Predicated region
    $region121: #{openclip_man_forward.3} parent=5 // pred_check
      _
    $region122: #{openclip_man_forward.3} parent=5 // pred_check_branch
      %807 = sbr.rel (%p804) target = $region124
    $region123: #{openclip_man_forward.3} parent=5 // pred_region
      %s808 = ssub.s32 %s32, 1
      %p809 = pneg %p53
      %p810 = pneg %p50
      %p811 = pneg %p74
      %p812 = pneg %p71
      %p813 = pneg %p95
      %p814 = pneg %p92
      %p815 = pneg %p116
      %p816 = pneg %p113
      %p817 = pneg %p137
      %p818 = pneg %p134
      %p819 = scmp.lt.s32.totalorder %s37, 1
      %s820 = scalar_select %p819, %s37, 1
      %s821 = scalar_lea.vmem %s5, %s820
      %p822 = pneg %p163
      %p823 = pneg %p160
      %p824 = scmp.lt.s32.totalorder %s37, 1
      %s825 = scalar_select %p824, %s37, 1
      %s826 = scalar_lea.vmem %s6, %s825
      %p827 = pneg %p189
      %p828 = pneg %p186
      %p829 = scmp.lt.s32.totalorder %s37, 1
      %s830 = scalar_select %p829, %s37, 1
      %s831 = smul.addr %s830, 16
      %s832 = smul.addr %s831, 4
      %s833 = scalar_lea.vmem %s7, %s832
      %p834 = pneg %p215
      %p835 = pneg %p212
      %p836 = scmp.lt.s32.totalorder %s37, 1
      %s837 = scalar_select %p836, %s37, 1
      %s838 = smul.addr %s837, 2
      %s839 = scalar_lea.vmem %s8, %s838
      %p840 = pneg %p241
      %p841 = pneg %p238
      %p842 = scmp.lt.s32.totalorder %s37, 1
      %s843 = scalar_select %p842, %s37, 1
      %s844 = smul.addr %s843, 8
      %s845 = smul.addr %s844, 4
      %s846 = scalar_lea.vmem %s9, %s845
      %p847 = pneg %p267
      %p848 = pneg %p264
      %p849 = scmp.lt.s32.totalorder %s37, 1
      %s850 = scalar_select %p849, %s37, 1
      %s851 = scalar_lea.vmem %s10, %s850
      %p852 = pneg %p293
      %p853 = pneg %p290
      %p854 = scmp.lt.s32.totalorder %s37, 1
      %s855 = scalar_select %p854, %s37, 1
      %s856 = scalar_lea.vmem %s11, %s855
      %p857 = pneg %p319
      %p858 = pneg %p316
      %p859 = scmp.lt.s32.totalorder %s37, 1
      %s860 = scalar_select %p859, %s37, 1
      %s861 = scalar_lea.vmem %s12, %s860
      %p862 = pneg %p345
      %p863 = pneg %p342
      %p864 = scmp.lt.s32.totalorder %s37, 1
      %s865 = scalar_select %p864, %s37, 1
      %s866 = smul.addr %s865, 16
      %s867 = smul.addr %s866, 4
      %s868 = scalar_lea.vmem %s13, %s867
      %p869 = pneg %p371
      %p870 = pneg %p368
      %p871 = scmp.lt.s32.totalorder %s37, 1
      %s872 = scalar_select %p871, %s37, 1
      %s873 = smul.addr %s872, 2
      %s874 = scalar_lea.vmem %s14, %s873
      %p875 = pneg %p397
      %p876 = pneg %p394
      %p877 = scmp.lt.s32.totalorder %s37, 1
      %s878 = scalar_select %p877, %s37, 1
      %s879 = smul.addr %s878, 32
      %s880 = smul.addr %s879, 4
      %s881 = scalar_lea.vmem %s15, %s880
      %p882 = pneg %p423
      %p883 = pneg %p420
      %p884 = scmp.lt.s32.totalorder %s37, 1
      %s885 = scalar_select %p884, %s37, 1
      %s886 = scalar_lea.vmem %s16, %s885
      %p887 = pneg %p449
      %p888 = pneg %p446
      %p889 = pneg %p470
      %p890 = pneg %p467
      %p891 = pneg %p491
      %p892 = pneg %p488
      %p893 = pneg %p512
      %p894 = pneg %p509
      %p895 = pneg %p533
      %p896 = pneg %p530
      %p897 = pneg %p554
      %p898 = pneg %p551
      %p899 = pneg %p575
      %p900 = pneg %p572
      %p901 = pneg %p596
      %p902 = pneg %p593
      %p903 = pneg %p617
      %p904 = pneg %p614
      %p905 = pneg %p638
      %p906 = pneg %p635
      %p907 = pneg %p659
      %p908 = pneg %p656
      %p909 = scmp.lt.s32.totalorder %s37, 1
      %s910 = scalar_select %p909, %s37, 1
      %s911 = scalar_lea.vmem %s5, %s910
      %p912 = scmp.lt.s32.totalorder %s37, 1
      %s913 = scalar_select %p912, %s37, 1
      %s914 = scalar_lea.vmem %s6, %s913
      %p915 = scmp.lt.s32.totalorder %s37, 1
      %s916 = scalar_select %p915, %s37, 1
      %s917 = smul.addr %s916, 16
      %s918 = smul.addr %s917, 4
      %s919 = scalar_lea.vmem %s7, %s918
      %p920 = scmp.lt.s32.totalorder %s37, 1
      %s921 = scalar_select %p920, %s37, 1
      %s922 = smul.addr %s921, 2
      %s923 = scalar_lea.vmem %s8, %s922
      %p924 = scmp.lt.s32.totalorder %s37, 1
      %s925 = scalar_select %p924, %s37, 1
      %s926 = smul.addr %s925, 8
      %s927 = smul.addr %s926, 4
      %s928 = scalar_lea.vmem %s9, %s927
      %p929 = scmp.lt.s32.totalorder %s37, 1
      %s930 = scalar_select %p929, %s37, 1
      %s931 = scalar_lea.vmem %s10, %s930
      %p932 = scmp.lt.s32.totalorder %s37, 1
      %s933 = scalar_select %p932, %s37, 1
      %s934 = scalar_lea.vmem %s11, %s933
      %p935 = scmp.lt.s32.totalorder %s37, 1
      %s936 = scalar_select %p935, %s37, 1
      %s937 = scalar_lea.vmem %s12, %s936
      %p938 = scmp.lt.s32.totalorder %s37, 1
      %s939 = scalar_select %p938, %s37, 1
      %s940 = smul.addr %s939, 16
      %s941 = smul.addr %s940, 4
      %s942 = scalar_lea.vmem %s13, %s941
      %p943 = scmp.lt.s32.totalorder %s37, 1
      %s944 = scalar_select %p943, %s37, 1
      %s945 = smul.addr %s944, 2
      %s946 = scalar_lea.vmem %s14, %s945
      %p947 = scmp.lt.s32.totalorder %s37, 1
      %s948 = scalar_select %p947, %s37, 1
      %s949 = smul.addr %s948, 32
      %s950 = smul.addr %s949, 4
      %s951 = scalar_lea.vmem %s15, %s950
      %p952 = scmp.lt.s32.totalorder %s37, 1
      %s953 = scalar_select %p952, %s37, 1
      %s954 = scalar_lea.vmem %s16, %s953
      %p956 = scmp.eq.s32.totalorder %s37, 0
      // Predicated region
      $region125: #{openclip_man_forward.3} parent=123 // pred_check
        %p957 = pneg %p956
      $region126: #{openclip_man_forward.3} parent=123 // pred_check_branch
        %959 = sbr.rel (%p957) target = $region128
      $region127: #{openclip_man_forward.3} parent=123 // pred_region
        %v960 = vld [vmem:[%s0] sm:$0xff]
        %v961 = vld [vmem:[%s0 + $0x8] sm:$0xff]
        %v962 = vld [vmem:[%s0 + $0x10] sm:$0x3]
        %v963 = vld [vmem:[%s0 + $0x18] sm:$0x3]
        %v964 = vld [vmem:[%s2] sm:$0xf]
        %v965 = vld [vmem:[%s2 + $0x4] sm:$0xf]
        %v966 = vld [vmem:[%s2 + $0x8] sm:$0xf]
        %v967 = vld [vmem:[%s2 + $0xc] sm:$0xf]
        %v968 = vld [vmem:[%s2 + $0x10] sm:$0xf]
        %v969 = vld [vmem:[%s2 + $0x14] sm:$0xf]
        %v970 = vld [vmem:[%s2 + $0x18] sm:$0xf]
        %v971 = vld [vmem:[%s2 + $0x1c] sm:$0xf]
        %v972 = vld [vmem:[%s2 + $0x20] sm:$0xf]
        %v973 = vld [vmem:[%s2 + $0x24] sm:$0xf]
        %v974 = vld [vmem:[%s2 + $0x28] sm:$0xf]
        %v975 = vld [vmem:[%s2 + $0x2c] sm:$0xf]
        %v976 = vld [vmem:[%s2 + $0x30] sm:$0xf]
        %v977 = vld [vmem:[%s2 + $0x34] sm:$0xf]
        %v978 = vld [vmem:[%s2 + $0x38] sm:$0xf]
        %v979 = vld [vmem:[%s2 + $0x3c] sm:$0xf]
        %v980 = vld [vmem:[%s2 + $0x40] sm:$0xf]
        %v981 = vld [vmem:[%s2 + $0x44] sm:$0xf]
        %v982 = vld [vmem:[%s2 + $0x48] sm:$0xf]
        %v983 = vld [vmem:[%s2 + $0x4c] sm:$0xf]
        %v984 = vld [vmem:[%s2 + $0x50] sm:$0xf]
        %v985 = vld [vmem:[%s2 + $0x54] sm:$0xf]
        %v986 = vld [vmem:[%s2 + $0x58] sm:$0xf]
        %v987 = vld [vmem:[%s2 + $0x5c] sm:$0xf]
        %v988 = vpack.c.bf16 %v962, %v960
        %v989 = vpack.c.bf16 %v963, %v961
        %v990 = vld [vmem:[%s1] sm:$0xff]
        %v991 = vld [vmem:[%s1 + $0x8] sm:$0x3]
        %v1016 = vunpack.c.l.b16 %v964
        %v1017 = vunpack.c.l.b16 %v965
        %v1018 = vunpack.c.l.b16 %v966
        %v1019 = vunpack.c.l.b16 %v967
        %v1020 = vunpack.c.l.b16 %v968
        %v1021 = vunpack.c.l.b16 %v969
        %v1022 = vunpack.c.l.b16 %v970
        %v1023 = vunpack.c.l.b16 %v971
        %v1024 = vunpack.c.l.b16 %v972
        %v1025 = vunpack.c.l.b16 %v973
        %v1026 = vunpack.c.l.b16 %v974
        %v1027 = vunpack.c.l.b16 %v975
        %v1028 = vunpack.c.l.b16 %v976
        %v1029 = vunpack.c.l.b16 %v977
        %v1030 = vunpack.c.l.b16 %v978
        %v1031 = vunpack.c.l.b16 %v979
        %v1032 = vunpack.c.l.b16 %v980
        %v1033 = vunpack.c.l.b16 %v981
        %v1034 = vunpack.c.l.b16 %v982
        %v1035 = vunpack.c.l.b16 %v983
        %v1036 = vunpack.c.l.b16 %v984
        %v1037 = vunpack.c.l.b16 %v985
        %v1038 = vunpack.c.l.b16 %v986
        %v1039 = vunpack.c.l.b16 %v987
        %v1040 = vpack.c.b16 %v1017, %v1016
        %v1041 = vpack.c.b16 %v1019, %v1018
        %v1042 = vpack.c.b16 %v1021, %v1020
        %v1043 = vpack.c.b16 %v1023, %v1022
        %v1044 = vpack.c.b16 %v1025, %v1024
        %v1045 = vpack.c.b16 %v1027, %v1026
        %v1046 = vpack.c.b16 %v1029, %v1028
        %v1047 = vpack.c.b16 %v1031, %v1030
        %v1048 = vpack.c.b16 %v1033, %v1032
        %v1049 = vpack.c.b16 %v1035, %v1034
        %v1050 = vpack.c.b16 %v1037, %v1036
        %v1051 = vpack.c.b16 %v1039, %v1038
        %vm1064 = vcmask 523264
        %v1066 = vsel %vm1064, %v989, 0
        %1068 = vmatprep.subr.bf16.mxu0 0
        %1069 = vmatpush1.bf16.msra.mxu0 %v1047
        %1070 = vmatprep.subr.bf16.mxu0 0
        %1071 = vmatpush1.bf16.msra.mxu0 %v1046
        %1072 = vmatprep.subr.bf16.mxu0 0
        %1073 = vmatpush1.bf16.msra.mxu0 %v1045
        %1074 = vmatprep.subr.bf16.mxu0 0
        %1075 = vmatpush1.bf16.msra.mxu0 %v1044
        %1076 = vmatprep.subr.bf16.mxu0 0
        %1077 = vmatpush1.bf16.msra.mxu0 %v1043
        %1078 = vmatprep.subr.bf16.mxu0 0
        %1079 = vmatpush1.bf16.msra.mxu0 %v1042
        %1080 = vmatprep.subr.bf16.mxu0 0
        %1081 = vmatpush1.bf16.msra.mxu0 %v1041
        %1082 = vmatprep.subr.bf16.mxu0 0
        %1083 = vmatpush1.bf16.msra.mxu0 %v1040
        %1084 = vmatprep.subr.bf16.mxu0 0
        %1085 = vmatpush2.bf16.msra.mxu0 0
        %1086 = vmatprep.subr.bf16.mxu0 0
        %1087 = vmatpush2.bf16.msra.mxu0 0
        %1088 = vmatprep.subr.bf16.mxu0 0
        %1089 = vmatpush2.bf16.msra.mxu0 0
        %1090 = vmatprep.subr.bf16.mxu0 0
        %1091 = vmatpush2.bf16.msra.mxu0 0
        %1092 = vmatprep.subr.bf16.mxu0 0
        %1093 = vmatpush2.bf16.msra.mxu0 %v1051
        %1094 = vmatprep.subr.bf16.mxu0 0
        %1095 = vmatpush2.bf16.msra.mxu0 %v1050
        %1096 = vmatprep.subr.bf16.mxu0 0
        %1097 = vmatpush2.bf16.msra.mxu0 %v1049
        %1098 = vmatprep.subr.bf16.mxu0 0
        %1099 = vmatpush2.bf16.msra.mxu0 %v1048
        %1100 = vmatprep.mubr.bf16.mxu0 %v1066
        %1101 = vmatmul.mubr.bf16.gmra.mxu0 %v988
        %v1102 = vpop.f32.mrf.mxu0
        %v1103 = vadd.f32 %v990, %v1102
        %v1104 = vpop.f32.mrf.mxu0
        %v1105 = vpop.f32.mrf.mxu0
        %v1106 = vadd.f32 %v991, %v1105
        %v1107 = vpop.f32.mrf.mxu0
        %1108 = vdwg.mxu0
        %v1109 = vsel %vm1064, %v1103, 0.0
        %1110 = vadd.xlane.f32.xlu0 %v1109
        %v1111 = vpop.xlane.xlu0 %1110
        %vm1112 = vcmask 517120
        %v1113 = vsel %vm1112, %v1106, 0.0
        %1114 = vadd.xlane.f32.xlu0 %v1113
        %v1115 = vpop.xlane.xlu0 %1114
        %v1116 = vrcp.pop 64.0
        %v1117 = vmul.f32 %v1111, %v1116
        %v1118 = vmul.f32 %v1115, %v1116
        %v1119 = vsub.f32 %v1103, %v1117
        %v1120 = vsub.f32 %v1106, %v1118
        %v1121 = vmul.f32 %v1119, %v1119
        %v1122 = vmul.f32 %v1120, %v1120
        %v1123 = vsel %vm1064, %v1121, 0.0
        %1124 = vadd.xlane.f32.xlu0 %v1123
        %v1125 = vpop.xlane.xlu0 %1124
        %v1126 = vsel %vm1112, %v1122, 0.0
        %1127 = vadd.xlane.f32.xlu0 %v1126
        %v1128 = vpop.xlane.xlu0 %1127
        %v1129 = vmul.f32 %v1125, %v1116
        %v1130 = vmul.f32 %v1128, %v1116
        %v1131 = vadd.f32 %v1129, 1e-05
        %v1132 = vadd.f32 %v1130, 1e-05
        %v1133 = vrsqrt.pop %v1131
        %v1134 = vrsqrt.pop %v1132
        %v1135 = vmul.f32 %v1119, %v1133
        %v1136 = vmul.f32 %v1120, %v1134
        %v1137 = vld [vmem:[%s3] sm:$0x1]
        %v1139 = vlaneseq
        %v1140 = vshrl.u32 %v1139, 7
        %v1141 = vsub.s32 0, %v1140
        %v1142 = vrot.slane %v1137, %v1141
        %v1144 = vmul.f32 %v1135, %v1142
        %v1145 = vmul.f32 %v1136, %v1142
        %v1146 = vld [vmem:[%s4] sm:$0x1]
        %v1148 = vlaneseq
        %v1149 = vshrl.u32 %v1148, 7
        %v1150 = vsub.s32 0, %v1149
        %v1151 = vrot.slane %v1146, %v1150
        %v1153 = vadd.f32 %v1144, %v1151
        %v1154 = vadd.f32 %v1145, %v1151
        %1155 = vst.msk [vmem:[#allocation2] sm:$0xff] %vm1064, %v1153
        %1156 = vst.msk [vmem:[#allocation2 + $0x8] sm:$0x3] %vm1112, %v1154
      $region128: #{openclip_man_forward.3} parent=123 // pred_fallthru
        _
      %v1157 = vld [vmem:[#allocation2] sm:$0xff]
      %v1158 = vld [vmem:[#allocation2 + $0x8] sm:$0x3]
      %vm1159 = vcmask 523264
      %v1160 = vsel %vm1159, %v1157, 0.0
      %1161 = vadd.xlane.f32.xlu0 %v1160
      %v1162 = vpop.xlane.xlu0 %1161
      %vm1163 = vcmask 517120
      %v1164 = vsel %vm1163, %v1158, 0.0
      %1165 = vadd.xlane.f32.xlu0 %v1164
      %v1166 = vpop.xlane.xlu0 %1165
      %v1167 = vrcp.pop 64.0
      %v1168 = vmul.f32 %v1162, %v1167
      %v1169 = vmul.f32 %v1166, %v1167
      %v1170 = vsub.f32 %v1157, %v1168
      %v1171 = vsub.f32 %v1158, %v1169
      %v1172 = vmul.f32 %v1170, %v1170
      %v1173 = vmul.f32 %v1171, %v1171
      %v1174 = vsel %vm1159, %v1172, 0.0
      %1175 = vadd.xlane.f32.xlu0 %v1174
      %v1176 = vpop.xlane.xlu0 %1175
      %v1177 = vsel %vm1163, %v1173, 0.0
      %1178 = vadd.xlane.f32.xlu0 %v1177
      %v1179 = vpop.xlane.xlu0 %1178
      %v1180 = vmul.f32 %v1176, %v1167
      %v1181 = vmul.f32 %v1179, %v1167
      %v1182 = vadd.f32 %v1180, 1e-05
      %v1183 = vadd.f32 %v1181, 1e-05
      %v1184 = vrsqrt.pop %v1182
      %v1185 = vrsqrt.pop %v1183
      %v1186 = vmul.f32 %v1170, %v1184
      %v1187 = vmul.f32 %v1171, %v1185
      %v1188 = vld [vmem:[%s911] sm:$0x1]
      %v1190 = vlaneseq
      %v1191 = vshrl.u32 %v1190, 7
      %v1192 = vsub.s32 0, %v1191
      %v1193 = vrot.slane %v1188, %v1192
      %v1195 = vmul.f32 %v1186, %v1193
      %v1196 = vmul.f32 %v1187, %v1193
      %v1197 = vld [vmem:[%s914] sm:$0x1]
      %v1199 = vlaneseq
      %v1200 = vshrl.u32 %v1199, 7
      %v1201 = vsub.s32 0, %v1200
      %v1202 = vrot.slane %v1197, %v1201
      %v1204 = vadd.f32 %v1195, %v1202
      %v1205 = vadd.f32 %v1196, %v1202
      %v1206 = vld [vmem:[%s919] sm:$0xff]
      %v1207 = vld [vmem:[%s919 + $0x8] sm:$0xff]
      %v1208 = vld [vmem:[%s919 + $0x10] sm:$0xff]
      %v1209 = vld [vmem:[%s919 + $0x18] sm:$0xff]
      %v1210 = vld [vmem:[%s919 + $0x20] sm:$0xff]
      %v1211 = vld [vmem:[%s919 + $0x28] sm:$0xff]
      %v1212 = vld [vmem:[%s919 + $0x30] sm:$0xff]
      %v1213 = vld [vmem:[%s919 + $0x38] sm:$0xff]
      %v1214 = vpack.c.bf16 %v1205, %v1204
      %v1215 = vld [vmem:[%s923] sm:$0x3]
      %v1217 = vlaneseq
      %v1218 = vshrl.u32 %v1217, 7
      %v1219 = vsub.s32 0, %v1218
      %v1220 = vrot.slane %v1215, %v1219
      %v1221 = vlaneseq
      %v1222 = vshrl.u32 %v1221, 7
      %v1223 = vsub.s32 1, %v1222
      %v1224 = vrot.slane %v1215, %v1223
      %v1235 = vunpack.c.l.b16 %v1206
      %v1236 = vunpack.c.h.b16 %v1206
      %v1237 = vunpack.c.l.b16 %v1207
      %v1238 = vunpack.c.h.b16 %v1207
      %v1239 = vunpack.c.l.b16 %v1208
      %v1240 = vunpack.c.h.b16 %v1208
      %v1241 = vunpack.c.l.b16 %v1209
      %v1242 = vunpack.c.h.b16 %v1209
      %v1243 = vunpack.c.l.b16 %v1210
      %v1244 = vunpack.c.h.b16 %v1210
      %v1245 = vunpack.c.l.b16 %v1211
      %v1246 = vunpack.c.h.b16 %v1211
      %v1247 = vunpack.c.l.b16 %v1212
      %v1248 = vunpack.c.h.b16 %v1212
      %v1249 = vunpack.c.l.b16 %v1213
      %v1250 = vunpack.c.h.b16 %v1213
      %v1251 = vpack.c.b16 %v1237, %v1235
      %v1252 = vpack.c.b16 %v1238, %v1236
      %v1253 = vpack.c.b16 %v1241, %v1239
      %v1254 = vpack.c.b16 %v1242, %v1240
      %v1255 = vpack.c.b16 %v1245, %v1243
      %v1256 = vpack.c.b16 %v1246, %v1244
      %v1257 = vpack.c.b16 %v1249, %v1247
      %v1258 = vpack.c.b16 %v1250, %v1248
      %v1268 = vsel %vm1159, %v1214, 0
      %1270 = vmatprep.subr.bf16.mxu0 0
      %1271 = vmatpush1.bf16.msra.mxu0 0
      %1272 = vmatprep.subr.bf16.mxu0 0
      %1273 = vmatpush1.bf16.msra.mxu0 0
      %1274 = vmatprep.subr.bf16.mxu0 0
      %1275 = vmatpush1.bf16.msra.mxu0 0
      %1276 = vmatprep.subr.bf16.mxu0 0
      %1277 = vmatpush1.bf16.msra.mxu0 0
      %1278 = vmatprep.subr.bf16.mxu0 %v1258
      %1279 = vmatpush1.bf16.msra.mxu0 %v1257
      %1280 = vmatprep.subr.bf16.mxu0 %v1256
      %1281 = vmatpush1.bf16.msra.mxu0 %v1255
      %1282 = vmatprep.subr.bf16.mxu0 %v1254
      %1283 = vmatpush1.bf16.msra.mxu0 %v1253
      %1284 = vmatprep.subr.bf16.mxu0 %v1252
      %1285 = vmatpush1.bf16.msra.mxu0 %v1251
      %1286 = vmatprep.subr.bf16.mxu0 0
      %1287 = vmatpush2.bf16.msra.mxu0 0
      %1288 = vmatprep.subr.bf16.mxu0 0
      %1289 = vmatpush2.bf16.msra.mxu0 0
      %1290 = vmatprep.subr.bf16.mxu0 0
      %1291 = vmatpush2.bf16.msra.mxu0 0
      %1292 = vmatprep.subr.bf16.mxu0 0
      %1293 = vmatpush2.bf16.msra.mxu0 0
      %1294 = vmatprep.subr.bf16.mxu0 0
      %1295 = vmatpush2.bf16.msra.mxu0 0
      %1296 = vmatprep.subr.bf16.mxu0 0
      %1297 = vmatpush2.bf16.msra.mxu0 0
      %1298 = vmatprep.subr.bf16.mxu0 0
      %1299 = vmatpush2.bf16.msra.mxu0 0
      %1300 = vmatprep.subr.bf16.mxu0 0
      %1301 = vmatpush2.bf16.msra.mxu0 0
      %1302 = vmatprep.mubr.bf16.mxu0 0
      %1303 = vmatmul.mubr.bf16.gmra.mxu0 %v1268
      %v1304 = vpop.f32.mrf.mxu0
      %v1305 = vadd.f32 %v1220, %v1304
      %v1306 = vpop.f32.mrf.mxu0
      %v1307 = vadd.f32 %v1224, %v1306
      %v1308 = vpop.f32.mrf.mxu0
      %v1309 = vadd.f32 %v1220, %v1308
      %v1310 = vpop.f32.mrf.mxu0
      %v1311 = vadd.f32 %v1224, %v1310
      %1312 = vdwg.mxu0
      %v1313 = vpack.c.bf16 %v1305, %v1305
      %1315 = vrot.lane.b32.xlu0 %v1313, 64
      %v1316 = vpop.permute.xlu0 %1315
      %vm1317 = vcmask 130048
      %v1319 = vsel %vm1317, %v1313, 0
      %v1322 = vsel %vm1317, %v1316, 0
      %1324 = vmatprep.subr.bf16.mxu0 0
      %1325 = vmatpush1.bf16.xpose.msra.mxu0 0
      %1326 = vmatprep.subr.bf16.mxu0 0
      %1327 = vmatpush1.bf16.xpose.msra.mxu0 0
      %1328 = vmatprep.subr.bf16.mxu0 0
      %1329 = vmatpush1.bf16.xpose.msra.mxu0 0
      %1330 = vmatprep.subr.bf16.mxu0 0
      %1331 = vmatpush1.bf16.xpose.msra.mxu0 0
      %1332 = vmatprep.subr.bf16.mxu0 0
      %1333 = vmatpush1.bf16.xpose.msra.mxu0 0
      %1334 = vmatprep.subr.bf16.mxu0 0
      %1335 = vmatpush1.bf16.xpose.msra.mxu0 0
      %1336 = vmatprep.subr.bf16.mxu0 0
      %1337 = vmatpush1.bf16.xpose.msra.mxu0 0
      %1338 = vmatprep.subr.bf16.mxu0 0
      %1339 = vmatpush1.bf16.xpose.msra.mxu0 %v1322
      %1340 = vmatprep.subr.bf16.mxu0 0
      %1341 = vmatpush2.bf16.xpose.msra.mxu0 0
      %1342 = vmatprep.subr.bf16.mxu0 0
      %1343 = vmatpush2.bf16.xpose.msra.mxu0 0
      %1344 = vmatprep.subr.bf16.mxu0 0
      %1345 = vmatpush2.bf16.xpose.msra.mxu0 0
      %1346 = vmatprep.subr.bf16.mxu0 0
      %1347 = vmatpush2.bf16.xpose.msra.mxu0 0
      %1348 = vmatprep.subr.bf16.mxu0 0
      %1349 = vmatpush2.bf16.xpose.msra.mxu0 0
      %1350 = vmatprep.subr.bf16.mxu0 0
      %1351 = vmatpush2.bf16.xpose.msra.mxu0 0
      %1352 = vmatprep.subr.bf16.mxu0 0
      %1353 = vmatpush2.bf16.xpose.msra.mxu0 0
      %1354 = vmatprep.subr.bf16.mxu0 0
      %1355 = vmatpush2.bf16.xpose.msra.mxu0 0
      %1356 = vmatprep.mubr.bf16.mxu0 0
      %1357 = vmatmul.mubr.bf16.gmra.mxu0 %v1319
      %v1358 = vpop.f32.mrf.mxu0
      %v1359 = vadd.f32 0.0, %v1358
      %v1360 = vpop.f32.mrf.mxu0
      %v1361 = vpop.f32.mrf.mxu0
      %v1362 = vpop.f32.mrf.mxu0
      %1363 = vdwg.mxu0
      %v1364 = vmul.f32 %v1359, 0.25
      %vm1365 = vcmask 36864
      %v1366 = vsel %vm1365, %v1364, -inf
      %1367 = vmax.xlane.f32.xlu0 %v1366
      %v1368 = vpop.xlane.xlu0 %1367
      %v1369 = vsub.f32 %v1364, %v1368
      %v1370 = vmul.f32 %v1369, 1.442695
      %v1371 = vpow.pop %v1370
      %v1372 = vsel %vm1365, %v1371, 0.0
      %1373 = vadd.xlane.f32.xlu0 %v1372
      %v1374 = vpop.xlane.xlu0 %1373
      %v1375 = vrcp.pop %v1374
      %v1376 = vmul.f32 %v1371, %v1375
      %v1377 = vpack.c.bf16 %v1376, %v1376
      %v1378 = vpack.c.bf16 %v1307, %v1307
      %vm1379 = vcmask 39936
      %v1381 = vsel %vm1379, %v1377, 0
      %vm1383 = vcmask 1041408
      %vm1384 = vcmask 1042432
      %v1385 = vsel %vm1383, 4294967295, 65535
      %v1386 = vsel %vm1384, %v1385, 0
      %v1388 = vand.u32 %v1378, %v1386
      %1390 = vmatprep.subr.bf16.mxu0 0
      %1391 = vmatpush1.bf16.msra.mxu0 0
      %1392 = vmatprep.subr.bf16.mxu0 0
      %1393 = vmatpush1.bf16.msra.mxu0 0
      %1394 = vmatprep.subr.bf16.mxu0 0
      %1395 = vmatpush1.bf16.msra.mxu0 0
      %1396 = vmatprep.subr.bf16.mxu0 0
      %1397 = vmatpush1.bf16.msra.mxu0 0
      %1398 = vmatprep.subr.bf16.mxu0 0
      %1399 = vmatpush1.bf16.msra.mxu0 0
      %1400 = vmatprep.subr.bf16.mxu0 0
      %1401 = vmatpush1.bf16.msra.mxu0 0
      %1402 = vmatprep.subr.bf16.mxu0 0
      %1403 = vmatpush1.bf16.msra.mxu0 0
      %1404 = vmatprep.subr.bf16.mxu0 0
      %1405 = vmatpush1.bf16.msra.mxu0 %v1388
      %1406 = vmatprep.subr.bf16.mxu0 0
      %1407 = vmatpush2.bf16.msra.mxu0 0
      %1408 = vmatprep.subr.bf16.mxu0 0
      %1409 = vmatpush2.bf16.msra.mxu0 0
      %1410 = vmatprep.subr.bf16.mxu0 0
      %1411 = vmatpush2.bf16.msra.mxu0 0
      %1412 = vmatprep.subr.bf16.mxu0 0
      %1413 = vmatpush2.bf16.msra.mxu0 0
      %1414 = vmatprep.subr.bf16.mxu0 0
      %1415 = vmatpush2.bf16.msra.mxu0 0
      %1416 = vmatprep.subr.bf16.mxu0 0
      %1417 = vmatpush2.bf16.msra.mxu0 0
      %1418 = vmatprep.subr.bf16.mxu0 0
      %1419 = vmatpush2.bf16.msra.mxu0 0
      %1420 = vmatprep.subr.bf16.mxu0 0
      %1421 = vmatpush2.bf16.msra.mxu0 0
      %1422 = vmatprep.mubr.bf16.mxu0 0
      %1423 = vmatmul.mubr.bf16.gmra.mxu0 %v1381
      %v1424 = vpop.f32.mrf.mxu0
      %v1425 = vadd.f32 0.0, %v1424
      %v1426 = vpop.f32.mrf.mxu0
      %v1427 = vpop.f32.mrf.mxu0
      %v1428 = vpop.f32.mrf.mxu0
      %1429 = vdwg.mxu0
      %1430 = vrot.lane.b32.xlu0 %v1313, 112
      %v1431 = vpop.permute.xlu0 %1430
      %1432 = vrot.lane.b32.xlu0 %v1313, 48
      %v1433 = vpop.permute.xlu0 %1432
      %v1435 = vsel %vm1317, %v1431, 0
      %v1438 = vsel %vm1317, %v1433, 0
      %1440 = vmatprep.subr.bf16.mxu0 0
      %1441 = vmatpush1.bf16.xpose.msra.mxu0 0
      %1442 = vmatprep.subr.bf16.mxu0 0
      %1443 = vmatpush1.bf16.xpose.msra.mxu0 0
      %1444 = vmatprep.subr.bf16.mxu0 0
      %1445 = vmatpush1.bf16.xpose.msra.mxu0 0
      %1446 = vmatprep.subr.bf16.mxu0 0
      %1447 = vmatpush1.bf16.xpose.msra.mxu0 0
      %1448 = vmatprep.subr.bf16.mxu0 0
      %1449 = vmatpush1.bf16.xpose.msra.mxu0 0
      %1450 = vmatprep.subr.bf16.mxu0 0
      %1451 = vmatpush1.bf16.xpose.msra.mxu0 0
      %1452 = vmatprep.subr.bf16.mxu0 0
      %1453 = vmatpush1.bf16.xpose.msra.mxu0 0
      %1454 = vmatprep.subr.bf16.mxu0 0
      %1455 = vmatpush1.bf16.xpose.msra.mxu0 %v1438
      %1456 = vmatprep.subr.bf16.mxu0 0
      %1457 = vmatpush2.bf16.xpose.msra.mxu0 0
      %1458 = vmatprep.subr.bf16.mxu0 0
      %1459 = vmatpush2.bf16.xpose.msra.mxu0 0
      %1460 = vmatprep.subr.bf16.mxu0 0
      %1461 = vmatpush2.bf16.xpose.msra.mxu0 0
      %1462 = vmatprep.subr.bf16.mxu0 0
      %1463 = vmatpush2.bf16.xpose.msra.mxu0 0
      %1464 = vmatprep.subr.bf16.mxu0 0
      %1465 = vmatpush2.bf16.xpose.msra.mxu0 0
      %1466 = vmatprep.subr.bf16.mxu0 0
      %1467 = vmatpush2.bf16.xpose.msra.mxu0 0
      %1468 = vmatprep.subr.bf16.mxu0 0
      %1469 = vmatpush2.bf16.xpose.msra.mxu0 0
      %1470 = vmatprep.subr.bf16.mxu0 0
      %1471 = vmatpush2.bf16.xpose.msra.mxu0 0
      %1472 = vmatprep.mubr.bf16.mxu0 0
      %1473 = vmatmul.mubr.bf16.gmra.mxu0 %v1435
      %v1474 = vpop.f32.mrf.mxu0
      %v1475 = vadd.f32 0.0, %v1474
      %v1476 = vpop.f32.mrf.mxu0
      %v1477 = vpop.f32.mrf.mxu0
      %v1478 = vpop.f32.mrf.mxu0
      %1479 = vdwg.mxu0
      %v1480 = vmul.f32 %v1475, 0.25
      %v1481 = vsel %vm1365, %v1480, -inf
      %1482 = vmax.xlane.f32.xlu0 %v1481
      %v1483 = vpop.xlane.xlu0 %1482
      %v1484 = vsub.f32 %v1480, %v1483
      %v1485 = vmul.f32 %v1484, 1.442695
      %v1486 = vpow.pop %v1485
      %v1487 = vsel %vm1365, %v1486, 0.0
      %1488 = vadd.xlane.f32.xlu0 %v1487
      %v1489 = vpop.xlane.xlu0 %1488
      %v1490 = vrcp.pop %v1489
      %v1491 = vmul.f32 %v1486, %v1490
      %v1492 = vpack.c.bf16 %v1491, %v1491
      %1494 = vrot.lane.b32.xlu0 %v1378, 112
      %v1495 = vpop.permute.xlu0 %1494
      %v1497 = vsel %vm1379, %v1492, 0
      %v1500 = vand.u32 %v1495, %v1386
      %1502 = vmatprep.subr.bf16.mxu0 0
      %1503 = vmatpush1.bf16.msra.mxu0 0
      %1504 = vmatprep.subr.bf16.mxu0 0
      %1505 = vmatpush1.bf16.msra.mxu0 0
      %1506 = vmatprep.subr.bf16.mxu0 0
      %1507 = vmatpush1.bf16.msra.mxu0 0
      %1508 = vmatprep.subr.bf16.mxu0 0
      %1509 = vmatpush1.bf16.msra.mxu0 0
      %1510 = vmatprep.subr.bf16.mxu0 0
      %1511 = vmatpush1.bf16.msra.mxu0 0
      %1512 = vmatprep.subr.bf16.mxu0 0
      %1513 = vmatpush1.bf16.msra.mxu0 0
      %1514 = vmatprep.subr.bf16.mxu0 0
      %1515 = vmatpush1.bf16.msra.mxu0 0
      %1516 = vmatprep.subr.bf16.mxu0 0
      %1517 = vmatpush1.bf16.msra.mxu0 %v1500
      %1518 = vmatprep.subr.bf16.mxu0 0
      %1519 = vmatpush2.bf16.msra.mxu0 0
      %1520 = vmatprep.subr.bf16.mxu0 0
      %1521 = vmatpush2.bf16.msra.mxu0 0
      %1522 = vmatprep.subr.bf16.mxu0 0
      %1523 = vmatpush2.bf16.msra.mxu0 0
      %1524 = vmatprep.subr.bf16.mxu0 0
      %1525 = vmatpush2.bf16.msra.mxu0 0
      %1526 = vmatprep.subr.bf16.mxu0 0
      %1527 = vmatpush2.bf16.msra.mxu0 0
      %1528 = vmatprep.subr.bf16.mxu0 0
      %1529 = vmatpush2.bf16.msra.mxu0 0
      %1530 = vmatprep.subr.bf16.mxu0 0
      %1531 = vmatpush2.bf16.msra.mxu0 0
      %1532 = vmatprep.subr.bf16.mxu0 0
      %1533 = vmatpush2.bf16.msra.mxu0 0
      %1534 = vmatprep.mubr.bf16.mxu0 0
      %1535 = vmatmul.mubr.bf16.gmra.mxu0 %v1497
      %v1536 = vpop.f32.mrf.mxu0
      %v1537 = vadd.f32 0.0, %v1536
      %v1538 = vpop.f32.mrf.mxu0
      %v1539 = vpop.f32.mrf.mxu0
      %v1540 = vpop.f32.mrf.mxu0
      %1541 = vdwg.mxu0
      %1542 = vrot.lane.b32.xlu0 %v1313, 96
      %v1543 = vpop.permute.xlu0 %1542
      %1544 = vrot.lane.b32.xlu0 %v1313, 32
      %v1545 = vpop.permute.xlu0 %1544
      %v1547 = vsel %vm1317, %v1543, 0
      %v1550 = vsel %vm1317, %v1545, 0
      %1552 = vmatprep.subr.bf16.mxu0 0
      %1553 = vmatpush1.bf16.xpose.msra.mxu0 0
      %1554 = vmatprep.subr.bf16.mxu0 0
      %1555 = vmatpush1.bf16.xpose.msra.mxu0 0
      %1556 = vmatprep.subr.bf16.mxu0 0
      %1557 = vmatpush1.bf16.xpose.msra.mxu0 0
      %1558 = vmatprep.subr.bf16.mxu0 0
      %1559 = vmatpush1.bf16.xpose.msra.mxu0 0
      %1560 = vmatprep.subr.bf16.mxu0 0
      %1561 = vmatpush1.bf16.xpose.msra.mxu0 0
      %1562 = vmatprep.subr.bf16.mxu0 0
      %1563 = vmatpush1.bf16.xpose.msra.mxu0 0
      %1564 = vmatprep.subr.bf16.mxu0 0
      %1565 = vmatpush1.bf16.xpose.msra.mxu0 0
      %1566 = vmatprep.subr.bf16.mxu0 0
      %1567 = vmatpush1.bf16.xpose.msra.mxu0 %v1550
      %1568 = vmatprep.subr.bf16.mxu0 0
      %1569 = vmatpush2.bf16.xpose.msra.mxu0 0
      %1570 = vmatprep.subr.bf16.mxu0 0
      %1571 = vmatpush2.bf16.xpose.msra.mxu0 0
      %1572 = vmatprep.subr.bf16.mxu0 0
      %1573 = vmatpush2.bf16.xpose.msra.mxu0 0
      %1574 = vmatprep.subr.bf16.mxu0 0
      %1575 = vmatpush2.bf16.xpose.msra.mxu0 0
      %1576 = vmatprep.subr.bf16.mxu0 0
      %1577 = vmatpush2.bf16.xpose.msra.mxu0 0
      %1578 = vmatprep.subr.bf16.mxu0 0
      %1579 = vmatpush2.bf16.xpose.msra.mxu0 0
      %1580 = vmatprep.subr.bf16.mxu0 0
      %1581 = vmatpush2.bf16.xpose.msra.mxu0 0
      %1582 = vmatprep.subr.bf16.mxu0 0
      %1583 = vmatpush2.bf16.xpose.msra.mxu0 0
      %1584 = vmatprep.mubr.bf16.mxu0 0
      %1585 = vmatmul.mubr.bf16.gmra.mxu0 %v1547
      %v1586 = vpop.f32.mrf.mxu0
      %v1587 = vadd.f32 0.0, %v1586
      %v1588 = vpop.f32.mrf.mxu0
      %v1589 = vpop.f32.mrf.mxu0
      %v1590 = vpop.f32.mrf.mxu0
      %1591 = vdwg.mxu0
      %v1592 = vmul.f32 %v1587, 0.25
      %v1593 = vsel %vm1365, %v1592, -inf
      %1594 = vmax.xlane.f32.xlu0 %v1593
      %v1595 = vpop.xlane.xlu0 %1594
      %v1596 = vsub.f32 %v1592, %v1595
      %v1597 = vmul.f32 %v1596, 1.442695
      %v1598 = vpow.pop %v1597
      %v1599 = vsel %vm1365, %v1598, 0.0
      %1600 = vadd.xlane.f32.xlu0 %v1599
      %v1601 = vpop.xlane.xlu0 %1600
      %v1602 = vrcp.pop %v1601
      %v1603 = vmul.f32 %v1598, %v1602
      %v1604 = vpack.c.bf16 %v1603, %v1603
      %1605 = vrot.lane.b32.xlu0 %v1378, 96
      %v1606 = vpop.permute.xlu0 %1605
      %v1608 = vsel %vm1379, %v1604, 0
      %v1611 = vand.u32 %v1606, %v1386
      %1613 = vmatprep.subr.bf16.mxu0 0
      %1614 = vmatpush1.bf16.msra.mxu0 0
      %1615 = vmatprep.subr.bf16.mxu0 0
      %1616 = vmatpush1.bf16.msra.mxu0 0
      %1617 = vmatprep.subr.bf16.mxu0 0
      %1618 = vmatpush1.bf16.msra.mxu0 0
      %1619 = vmatprep.subr.bf16.mxu0 0
      %1620 = vmatpush1.bf16.msra.mxu0 0
      %1621 = vmatprep.subr.bf16.mxu0 0
      %1622 = vmatpush1.bf16.msra.mxu0 0
      %1623 = vmatprep.subr.bf16.mxu0 0
      %1624 = vmatpush1.bf16.msra.mxu0 0
      %1625 = vmatprep.subr.bf16.mxu0 0
      %1626 = vmatpush1.bf16.msra.mxu0 0
      %1627 = vmatprep.subr.bf16.mxu0 0
      %1628 = vmatpush1.bf16.msra.mxu0 %v1611
      %1629 = vmatprep.subr.bf16.mxu0 0
      %1630 = vmatpush2.bf16.msra.mxu0 0
      %1631 = vmatprep.subr.bf16.mxu0 0
      %1632 = vmatpush2.bf16.msra.mxu0 0
      %1633 = vmatprep.subr.bf16.mxu0 0
      %1634 = vmatpush2.bf16.msra.mxu0 0
      %1635 = vmatprep.subr.bf16.mxu0 0
      %1636 = vmatpush2.bf16.msra.mxu0 0
      %1637 = vmatprep.subr.bf16.mxu0 0
      %1638 = vmatpush2.bf16.msra.mxu0 0
      %1639 = vmatprep.subr.bf16.mxu0 0
      %1640 = vmatpush2.bf16.msra.mxu0 0
      %1641 = vmatprep.subr.bf16.mxu0 0
      %1642 = vmatpush2.bf16.msra.mxu0 0
      %1643 = vmatprep.subr.bf16.mxu0 0
      %1644 = vmatpush2.bf16.msra.mxu0 0
      %1645 = vmatprep.mubr.bf16.mxu0 0
      %1646 = vmatmul.mubr.bf16.gmra.mxu0 %v1608
      %v1647 = vpop.f32.mrf.mxu0
      %v1648 = vadd.f32 0.0, %v1647
      %v1649 = vpop.f32.mrf.mxu0
      %v1650 = vpop.f32.mrf.mxu0
      %v1651 = vpop.f32.mrf.mxu0
      %1652 = vdwg.mxu0
      %1653 = vrot.lane.b32.xlu0 %v1313, 80
      %v1654 = vpop.permute.xlu0 %1653
      %1655 = vrot.lane.b32.xlu0 %v1313, 16
      %v1656 = vpop.permute.xlu0 %1655
      %v1658 = vsel %vm1317, %v1654, 0
      %v1661 = vsel %vm1317, %v1656, 0
      %1663 = vmatprep.subr.bf16.mxu0 0
      %1664 = vmatpush1.bf16.xpose.msra.mxu0 0
      %1665 = vmatprep.subr.bf16.mxu0 0
      %1666 = vmatpush1.bf16.xpose.msra.mxu0 0
      %1667 = vmatprep.subr.bf16.mxu0 0
      %1668 = vmatpush1.bf16.xpose.msra.mxu0 0
      %1669 = vmatprep.subr.bf16.mxu0 0
      %1670 = vmatpush1.bf16.xpose.msra.mxu0 0
      %1671 = vmatprep.subr.bf16.mxu0 0
      %1672 = vmatpush1.bf16.xpose.msra.mxu0 0
      %1673 = vmatprep.subr.bf16.mxu0 0
      %1674 = vmatpush1.bf16.xpose.msra.mxu0 0
      %1675 = vmatprep.subr.bf16.mxu0 0
      %1676 = vmatpush1.bf16.xpose.msra.mxu0 0
      %1677 = vmatprep.subr.bf16.mxu0 0
      %1678 = vmatpush1.bf16.xpose.msra.mxu0 %v1661
      %1679 = vmatprep.subr.bf16.mxu0 0
      %1680 = vmatpush2.bf16.xpose.msra.mxu0 0
      %1681 = vmatprep.subr.bf16.mxu0 0
      %1682 = vmatpush2.bf16.xpose.msra.mxu0 0
      %1683 = vmatprep.subr.bf16.mxu0 0
      %1684 = vmatpush2.bf16.xpose.msra.mxu0 0
      %1685 = vmatprep.subr.bf16.mxu0 0
      %1686 = vmatpush2.bf16.xpose.msra.mxu0 0
      %1687 = vmatprep.subr.bf16.mxu0 0
      %1688 = vmatpush2.bf16.xpose.msra.mxu0 0
      %1689 = vmatprep.subr.bf16.mxu0 0
      %1690 = vmatpush2.bf16.xpose.msra.mxu0 0
      %1691 = vmatprep.subr.bf16.mxu0 0
      %1692 = vmatpush2.bf16.xpose.msra.mxu0 0
      %1693 = vmatprep.subr.bf16.mxu0 0
      %1694 = vmatpush2.bf16.xpose.msra.mxu0 0
      %1695 = vmatprep.mubr.bf16.mxu0 0
      %1696 = vmatmul.mubr.bf16.gmra.mxu0 %v1658
      %v1697 = vpop.f32.mrf.mxu0
      %v1698 = vadd.f32 0.0, %v1697
      %v1699 = vpop.f32.mrf.mxu0
      %v1700 = vpop.f32.mrf.mxu0
      %v1701 = vpop.f32.mrf.mxu0
      %1702 = vdwg.mxu0
      %v1703 = vmul.f32 %v1698, 0.25
      %v1704 = vsel %vm1365, %v1703, -inf
      %1705 = vmax.xlane.f32.xlu0 %v1704
      %v1706 = vpop.xlane.xlu0 %1705
      %v1707 = vsub.f32 %v1703, %v1706
      %v1708 = vmul.f32 %v1707, 1.442695
      %v1709 = vpow.pop %v1708
      %v1710 = vsel %vm1365, %v1709, 0.0
      %1711 = vadd.xlane.f32.xlu0 %v1710
      %v1712 = vpop.xlane.xlu0 %1711
      %v1713 = vrcp.pop %v1712
      %v1714 = vmul.f32 %v1709, %v1713
      %v1715 = vpack.c.bf16 %v1714, %v1714
      %1716 = vrot.lane.b32.xlu0 %v1378, 80
      %v1717 = vpop.permute.xlu0 %1716
      %v1719 = vsel %vm1379, %v1715, 0
      %v1722 = vand.u32 %v1717, %v1386
      %1724 = vmatprep.subr.bf16.mxu0 0
      %1725 = vmatpush1.bf16.msra.mxu0 0
      %1726 = vmatprep.subr.bf16.mxu0 0
      %1727 = vmatpush1.bf16.msra.mxu0 0
      %1728 = vmatprep.subr.bf16.mxu0 0
      %1729 = vmatpush1.bf16.msra.mxu0 0
      %1730 = vmatprep.subr.bf16.mxu0 0
      %1731 = vmatpush1.bf16.msra.mxu0 0
      %1732 = vmatprep.subr.bf16.mxu0 0
      %1733 = vmatpush1.bf16.msra.mxu0 0
      %1734 = vmatprep.subr.bf16.mxu0 0
      %1735 = vmatpush1.bf16.msra.mxu0 0
      %1736 = vmatprep.subr.bf16.mxu0 0
      %1737 = vmatpush1.bf16.msra.mxu0 0
      %1738 = vmatprep.subr.bf16.mxu0 0
      %1739 = vmatpush1.bf16.msra.mxu0 %v1722
      %1740 = vmatprep.subr.bf16.mxu0 0
      %1741 = vmatpush2.bf16.msra.mxu0 0
      %1742 = vmatprep.subr.bf16.mxu0 0
      %1743 = vmatpush2.bf16.msra.mxu0 0
      %1744 = vmatprep.subr.bf16.mxu0 0
      %1745 = vmatpush2.bf16.msra.mxu0 0
      %1746 = vmatprep.subr.bf16.mxu0 0
      %1747 = vmatpush2.bf16.msra.mxu0 0
      %1748 = vmatprep.subr.bf16.mxu0 0
      %1749 = vmatpush2.bf16.msra.mxu0 0
      %1750 = vmatprep.subr.bf16.mxu0 0
      %1751 = vmatpush2.bf16.msra.mxu0 0
      %1752 = vmatprep.subr.bf16.mxu0 0
      %1753 = vmatpush2.bf16.msra.mxu0 0
      %1754 = vmatprep.subr.bf16.mxu0 0
      %1755 = vmatpush2.bf16.msra.mxu0 0
      %1756 = vmatprep.mubr.bf16.mxu0 0
      %1757 = vmatmul.mubr.bf16.gmra.mxu0 %v1719
      %v1758 = vpop.f32.mrf.mxu0
      %v1759 = vadd.f32 0.0, %v1758
      %v1760 = vpop.f32.mrf.mxu0
      %v1761 = vpop.f32.mrf.mxu0
      %v1762 = vpop.f32.mrf.mxu0
      %1763 = vdwg.mxu0
      %1765 = vrot.lane.b32.xlu0 %v1537, 16
      %v1766 = vpop.permute.xlu0 %1765
      %1769 = vrot.lane.b32.xlu0 %v1648, 32
      %v1770 = vpop.permute.xlu0 %1769
      %1773 = vrot.lane.b32.xlu0 %v1759, 48
      %v1774 = vpop.permute.xlu0 %1773
      %v1776 = vsel %vm1317, %v1425, %v1766
      %vm1777 = vcmask 261120
      %v1778 = vsel %vm1777, %v1776, %v1770
      %vm1779 = vcmask 392192
      %v1780 = vsel %vm1779, %v1778, %v1774
      %v1781 = vpack.c.bf16 %v1309, %v1305
      %v1783 = vshrl.u32 %v1781, 16
      %v1785 = vrot.slane %v1783, 2
      %v1786 = vshll.u32 %v1781, 16
      %v1788 = vrot.slane %v1786, 3
      %v1789 = vor.u32 %v1785, %v1788
      %1790 = vrot.lane.b32.xlu0 %v1789, 64
      %v1791 = vpop.permute.xlu0 %1790
      %v1793 = vsel %vm1317, %v1789, 0
      %v1796 = vsel %vm1317, %v1791, 0
      %1798 = vmatprep.subr.bf16.mxu0 0
      %1799 = vmatpush1.bf16.xpose.msra.mxu0 0
      %1800 = vmatprep.subr.bf16.mxu0 0
      %1801 = vmatpush1.bf16.xpose.msra.mxu0 0
      %1802 = vmatprep.subr.bf16.mxu0 0
      %1803 = vmatpush1.bf16.xpose.msra.mxu0 0
      %1804 = vmatprep.subr.bf16.mxu0 0
      %1805 = vmatpush1.bf16.xpose.msra.mxu0 0
      %1806 = vmatprep.subr.bf16.mxu0 0
      %1807 = vmatpush1.bf16.xpose.msra.mxu0 0
      %1808 = vmatprep.subr.bf16.mxu0 0
      %1809 = vmatpush1.bf16.xpose.msra.mxu0 0
      %1810 = vmatprep.subr.bf16.mxu0 0
      %1811 = vmatpush1.bf16.xpose.msra.mxu0 0
      %1812 = vmatprep.subr.bf16.mxu0 0
      %1813 = vmatpush1.bf16.xpose.msra.mxu0 %v1796
      %1814 = vmatprep.subr.bf16.mxu0 0
      %1815 = vmatpush2.bf16.xpose.msra.mxu0 0
      %1816 = vmatprep.subr.bf16.mxu0 0
      %1817 = vmatpush2.bf16.xpose.msra.mxu0 0
      %1818 = vmatprep.subr.bf16.mxu0 0
      %1819 = vmatpush2.bf16.xpose.msra.mxu0 0
      %1820 = vmatprep.subr.bf16.mxu0 0
      %1821 = vmatpush2.bf16.xpose.msra.mxu0 0
      %1822 = vmatprep.subr.bf16.mxu0 0
      %1823 = vmatpush2.bf16.xpose.msra.mxu0 0
      %1824 = vmatprep.subr.bf16.mxu0 0
      %1825 = vmatpush2.bf16.xpose.msra.mxu0 0
      %1826 = vmatprep.subr.bf16.mxu0 0
      %1827 = vmatpush2.bf16.xpose.msra.mxu0 0
      %1828 = vmatprep.subr.bf16.mxu0 0
      %1829 = vmatpush2.bf16.xpose.msra.mxu0 0
      %1830 = vmatprep.mubr.bf16.mxu0 0
      %1831 = vmatmul.mubr.bf16.gmra.mxu0 %v1793
      %v1832 = vpop.f32.mrf.mxu0
      %v1833 = vadd.f32 0.0, %v1832
      %v1834 = vpop.f32.mrf.mxu0
      %v1835 = vpop.f32.mrf.mxu0
      %v1836 = vpop.f32.mrf.mxu0
      %1837 = vdwg.mxu0
      %v1838 = vmul.f32 %v1833, 0.25
      %v1839 = vsel %vm1365, %v1838, -inf
      %1840 = vmax.xlane.f32.xlu0 %v1839
      %v1841 = vpop.xlane.xlu0 %1840
      %v1842 = vsub.f32 %v1838, %v1841
      %v1843 = vmul.f32 %v1842, 1.442695
      %v1844 = vpow.pop %v1843
      %v1845 = vsel %vm1365, %v1844, 0.0
      %1846 = vadd.xlane.f32.xlu0 %v1845
      %v1847 = vpop.xlane.xlu0 %1846
      %v1848 = vrcp.pop %v1847
      %v1849 = vmul.f32 %v1844, %v1848
      %v1850 = vpack.c.bf16 %v1849, %v1849
      %v1851 = vpack.c.bf16 %v1311, %v1307
      %v1853 = vshrl.u32 %v1851, 16
      %v1855 = vrot.slane %v1853, 2
      %v1856 = vshll.u32 %v1851, 16
      %v1858 = vrot.slane %v1856, 3
      %v1859 = vor.u32 %v1855, %v1858
      %v1861 = vsel %vm1379, %v1850, 0
      %v1864 = vand.u32 %v1859, %v1386
      %1866 = vmatprep.subr.bf16.mxu0 0
      %1867 = vmatpush1.bf16.msra.mxu0 0
      %1868 = vmatprep.subr.bf16.mxu0 0
      %1869 = vmatpush1.bf16.msra.mxu0 0
      %1870 = vmatprep.subr.bf16.mxu0 0
      %1871 = vmatpush1.bf16.msra.mxu0 0
      %1872 = vmatprep.subr.bf16.mxu0 0
      %1873 = vmatpush1.bf16.msra.mxu0 0
      %1874 = vmatprep.subr.bf16.mxu0 0
      %1875 = vmatpush1.bf16.msra.mxu0 0
      %1876 = vmatprep.subr.bf16.mxu0 0
      %1877 = vmatpush1.bf16.msra.mxu0 0
      %1878 = vmatprep.subr.bf16.mxu0 0
      %1879 = vmatpush1.bf16.msra.mxu0 0
      %1880 = vmatprep.subr.bf16.mxu0 0
      %1881 = vmatpush1.bf16.msra.mxu0 %v1864
      %1882 = vmatprep.subr.bf16.mxu0 0
      %1883 = vmatpush2.bf16.msra.mxu0 0
      %1884 = vmatprep.subr.bf16.mxu0 0
      %1885 = vmatpush2.bf16.msra.mxu0 0
      %1886 = vmatprep.subr.bf16.mxu0 0
      %1887 = vmatpush2.bf16.msra.mxu0 0
      %1888 = vmatprep.subr.bf16.mxu0 0
      %1889 = vmatpush2.bf16.msra.mxu0 0
      %1890 = vmatprep.subr.bf16.mxu0 0
      %1891 = vmatpush2.bf16.msra.mxu0 0
      %1892 = vmatprep.subr.bf16.mxu0 0
      %1893 = vmatpush2.bf16.msra.mxu0 0
      %1894 = vmatprep.subr.bf16.mxu0 0
      %1895 = vmatpush2.bf16.msra.mxu0 0
      %1896 = vmatprep.subr.bf16.mxu0 0
      %1897 = vmatpush2.bf16.msra.mxu0 0
      %1898 = vmatprep.mubr.bf16.mxu0 0
      %1899 = vmatmul.mubr.bf16.gmra.mxu0 %v1861
      %v1900 = vpop.f32.mrf.mxu0
      %v1901 = vadd.f32 0.0, %v1900
      %v1902 = vpop.f32.mrf.mxu0
      %v1903 = vpop.f32.mrf.mxu0
      %v1904 = vpop.f32.mrf.mxu0
      %1905 = vdwg.mxu0
      %1906 = vrot.lane.b32.xlu0 %v1789, 112
      %v1907 = vpop.permute.xlu0 %1906
      %1908 = vrot.lane.b32.xlu0 %v1789, 48
      %v1909 = vpop.permute.xlu0 %1908
      %v1911 = vsel %vm1317, %v1907, 0
      %v1914 = vsel %vm1317, %v1909, 0
      %1916 = vmatprep.subr.bf16.mxu0 0
      %1917 = vmatpush1.bf16.xpose.msra.mxu0 0
      %1918 = vmatprep.subr.bf16.mxu0 0
      %1919 = vmatpush1.bf16.xpose.msra.mxu0 0
      %1920 = vmatprep.subr.bf16.mxu0 0
      %1921 = vmatpush1.bf16.xpose.msra.mxu0 0
      %1922 = vmatprep.subr.bf16.mxu0 0
      %1923 = vmatpush1.bf16.xpose.msra.mxu0 0
      %1924 = vmatprep.subr.bf16.mxu0 0
      %1925 = vmatpush1.bf16.xpose.msra.mxu0 0
      %1926 = vmatprep.subr.bf16.mxu0 0
      %1927 = vmatpush1.bf16.xpose.msra.mxu0 0
      %1928 = vmatprep.subr.bf16.mxu0 0
      %1929 = vmatpush1.bf16.xpose.msra.mxu0 0
      %1930 = vmatprep.subr.bf16.mxu0 0
      %1931 = vmatpush1.bf16.xpose.msra.mxu0 %v1914
      %1932 = vmatprep.subr.bf16.mxu0 0
      %1933 = vmatpush2.bf16.xpose.msra.mxu0 0
      %1934 = vmatprep.subr.bf16.mxu0 0
      %1935 = vmatpush2.bf16.xpose.msra.mxu0 0
      %1936 = vmatprep.subr.bf16.mxu0 0
      %1937 = vmatpush2.bf16.xpose.msra.mxu0 0
      %1938 = vmatprep.subr.bf16.mxu0 0
      %1939 = vmatpush2.bf16.xpose.msra.mxu0 0
      %1940 = vmatprep.subr.bf16.mxu0 0
      %1941 = vmatpush2.bf16.xpose.msra.mxu0 0
      %1942 = vmatprep.subr.bf16.mxu0 0
      %1943 = vmatpush2.bf16.xpose.msra.mxu0 0
      %1944 = vmatprep.subr.bf16.mxu0 0
      %1945 = vmatpush2.bf16.xpose.msra.mxu0 0
      %1946 = vmatprep.subr.bf16.mxu0 0
      %1947 = vmatpush2.bf16.xpose.msra.mxu0 0
      %1948 = vmatprep.mubr.bf16.mxu0 0
      %1949 = vmatmul.mubr.bf16.gmra.mxu0 %v1911
      %v1950 = vpop.f32.mrf.mxu0
      %v1951 = vadd.f32 0.0, %v1950
      %v1952 = vpop.f32.mrf.mxu0
      %v1953 = vpop.f32.mrf.mxu0
      %v1954 = vpop.f32.mrf.mxu0
      %1955 = vdwg.mxu0
      %v1956 = vmul.f32 %v1951, 0.25
      %v1957 = vsel %vm1365, %v1956, -inf
      %1958 = vmax.xlane.f32.xlu0 %v1957
      %v1959 = vpop.xlane.xlu0 %1958
      %v1960 = vsub.f32 %v1956, %v1959
      %v1961 = vmul.f32 %v1960, 1.442695
      %v1962 = vpow.pop %v1961
      %v1963 = vsel %vm1365, %v1962, 0.0
      %1964 = vadd.xlane.f32.xlu0 %v1963
      %v1965 = vpop.xlane.xlu0 %1964
      %v1966 = vrcp.pop %v1965
      %v1967 = vmul.f32 %v1962, %v1966
      %v1968 = vpack.c.bf16 %v1967, %v1967
      %1969 = vrot.lane.b32.xlu0 %v1859, 112
      %v1970 = vpop.permute.xlu0 %1969
      %v1972 = vsel %vm1379, %v1968, 0
      %v1975 = vand.u32 %v1970, %v1386
      %1977 = vmatprep.subr.bf16.mxu0 0
      %1978 = vmatpush1.bf16.msra.mxu0 0
      %1979 = vmatprep.subr.bf16.mxu0 0
      %1980 = vmatpush1.bf16.msra.mxu0 0
      %1981 = vmatprep.subr.bf16.mxu0 0
      %1982 = vmatpush1.bf16.msra.mxu0 0
      %1983 = vmatprep.subr.bf16.mxu0 0
      %1984 = vmatpush1.bf16.msra.mxu0 0
      %1985 = vmatprep.subr.bf16.mxu0 0
      %1986 = vmatpush1.bf16.msra.mxu0 0
      %1987 = vmatprep.subr.bf16.mxu0 0
      %1988 = vmatpush1.bf16.msra.mxu0 0
      %1989 = vmatprep.subr.bf16.mxu0 0
      %1990 = vmatpush1.bf16.msra.mxu0 0
      %1991 = vmatprep.subr.bf16.mxu0 0
      %1992 = vmatpush1.bf16.msra.mxu0 %v1975
      %1993 = vmatprep.subr.bf16.mxu0 0
      %1994 = vmatpush2.bf16.msra.mxu0 0
      %1995 = vmatprep.subr.bf16.mxu0 0
      %1996 = vmatpush2.bf16.msra.mxu0 0
      %1997 = vmatprep.subr.bf16.mxu0 0
      %1998 = vmatpush2.bf16.msra.mxu0 0
      %1999 = vmatprep.subr.bf16.mxu0 0
      %2000 = vmatpush2.bf16.msra.mxu0 0
      %2001 = vmatprep.subr.bf16.mxu0 0
      %2002 = vmatpush2.bf16.msra.mxu0 0
      %2003 = vmatprep.subr.bf16.mxu0 0
      %2004 = vmatpush2.bf16.msra.mxu0 0
      %2005 = vmatprep.subr.bf16.mxu0 0
      %2006 = vmatpush2.bf16.msra.mxu0 0
      %2007 = vmatprep.subr.bf16.mxu0 0
      %2008 = vmatpush2.bf16.msra.mxu0 0
      %2009 = vmatprep.mubr.bf16.mxu0 0
      %2010 = vmatmul.mubr.bf16.gmra.mxu0 %v1972
      %v2011 = vpop.f32.mrf.mxu0
      %v2012 = vadd.f32 0.0, %v2011
      %v2013 = vpop.f32.mrf.mxu0
      %v2014 = vpop.f32.mrf.mxu0
      %v2015 = vpop.f32.mrf.mxu0
      %2016 = vdwg.mxu0
      %2017 = vrot.lane.b32.xlu0 %v1789, 96
      %v2018 = vpop.permute.xlu0 %2017
      %2019 = vrot.lane.b32.xlu0 %v1789, 32
      %v2020 = vpop.permute.xlu0 %2019
      %v2022 = vsel %vm1317, %v2018, 0
      %v2025 = vsel %vm1317, %v2020, 0
      %2027 = vmatprep.subr.bf16.mxu0 0
      %2028 = vmatpush1.bf16.xpose.msra.mxu0 0
      %2029 = vmatprep.subr.bf16.mxu0 0
      %2030 = vmatpush1.bf16.xpose.msra.mxu0 0
      %2031 = vmatprep.subr.bf16.mxu0 0
      %2032 = vmatpush1.bf16.xpose.msra.mxu0 0
      %2033 = vmatprep.subr.bf16.mxu0 0
      %2034 = vmatpush1.bf16.xpose.msra.mxu0 0
      %2035 = vmatprep.subr.bf16.mxu0 0
      %2036 = vmatpush1.bf16.xpose.msra.mxu0 0
      %2037 = vmatprep.subr.bf16.mxu0 0
      %2038 = vmatpush1.bf16.xpose.msra.mxu0 0
      %2039 = vmatprep.subr.bf16.mxu0 0
      %2040 = vmatpush1.bf16.xpose.msra.mxu0 0
      %2041 = vmatprep.subr.bf16.mxu0 0
      %2042 = vmatpush1.bf16.xpose.msra.mxu0 %v2025
      %2043 = vmatprep.subr.bf16.mxu0 0
      %2044 = vmatpush2.bf16.xpose.msra.mxu0 0
      %2045 = vmatprep.subr.bf16.mxu0 0
      %2046 = vmatpush2.bf16.xpose.msra.mxu0 0
      %2047 = vmatprep.subr.bf16.mxu0 0
      %2048 = vmatpush2.bf16.xpose.msra.mxu0 0
      %2049 = vmatprep.subr.bf16.mxu0 0
      %2050 = vmatpush2.bf16.xpose.msra.mxu0 0
      %2051 = vmatprep.subr.bf16.mxu0 0
      %2052 = vmatpush2.bf16.xpose.msra.mxu0 0
      %2053 = vmatprep.subr.bf16.mxu0 0
      %2054 = vmatpush2.bf16.xpose.msra.mxu0 0
      %2055 = vmatprep.subr.bf16.mxu0 0
      %2056 = vmatpush2.bf16.xpose.msra.mxu0 0
      %2057 = vmatprep.subr.bf16.mxu0 0
      %2058 = vmatpush2.bf16.xpose.msra.mxu0 0
      %2059 = vmatprep.mubr.bf16.mxu0 0
      %2060 = vmatmul.mubr.bf16.gmra.mxu0 %v2022
      %v2061 = vpop.f32.mrf.mxu0
      %v2062 = vadd.f32 0.0, %v2061
      %v2063 = vpop.f32.mrf.mxu0
      %v2064 = vpop.f32.mrf.mxu0
      %v2065 = vpop.f32.mrf.mxu0
      %2066 = vdwg.mxu0
      %v2067 = vmul.f32 %v2062, 0.25
      %v2068 = vsel %vm1365, %v2067, -inf
      %2069 = vmax.xlane.f32.xlu0 %v2068
      %v2070 = vpop.xlane.xlu0 %2069
      %v2071 = vsub.f32 %v2067, %v2070
      %v2072 = vmul.f32 %v2071, 1.442695
      %v2073 = vpow.pop %v2072
      %v2074 = vsel %vm1365, %v2073, 0.0
      %2075 = vadd.xlane.f32.xlu0 %v2074
      %v2076 = vpop.xlane.xlu0 %2075
      %v2077 = vrcp.pop %v2076
      %v2078 = vmul.f32 %v2073, %v2077
      %v2079 = vpack.c.bf16 %v2078, %v2078
      %2080 = vrot.lane.b32.xlu0 %v1859, 96
      %v2081 = vpop.permute.xlu0 %2080
      %v2083 = vsel %vm1379, %v2079, 0
      %v2086 = vand.u32 %v2081, %v1386
      %2088 = vmatprep.subr.bf16.mxu0 0
      %2089 = vmatpush1.bf16.msra.mxu0 0
      %2090 = vmatprep.subr.bf16.mxu0 0
      %2091 = vmatpush1.bf16.msra.mxu0 0
      %2092 = vmatprep.subr.bf16.mxu0 0
      %2093 = vmatpush1.bf16.msra.mxu0 0
      %2094 = vmatprep.subr.bf16.mxu0 0
      %2095 = vmatpush1.bf16.msra.mxu0 0
      %2096 = vmatprep.subr.bf16.mxu0 0
      %2097 = vmatpush1.bf16.msra.mxu0 0
      %2098 = vmatprep.subr.bf16.mxu0 0
      %2099 = vmatpush1.bf16.msra.mxu0 0
      %2100 = vmatprep.subr.bf16.mxu0 0
      %2101 = vmatpush1.bf16.msra.mxu0 0
      %2102 = vmatprep.subr.bf16.mxu0 0
      %2103 = vmatpush1.bf16.msra.mxu0 %v2086
      %2104 = vmatprep.subr.bf16.mxu0 0
      %2105 = vmatpush2.bf16.msra.mxu0 0
      %2106 = vmatprep.subr.bf16.mxu0 0
      %2107 = vmatpush2.bf16.msra.mxu0 0
      %2108 = vmatprep.subr.bf16.mxu0 0
      %2109 = vmatpush2.bf16.msra.mxu0 0
      %2110 = vmatprep.subr.bf16.mxu0 0
      %2111 = vmatpush2.bf16.msra.mxu0 0
      %2112 = vmatprep.subr.bf16.mxu0 0
      %2113 = vmatpush2.bf16.msra.mxu0 0
      %2114 = vmatprep.subr.bf16.mxu0 0
      %2115 = vmatpush2.bf16.msra.mxu0 0
      %2116 = vmatprep.subr.bf16.mxu0 0
      %2117 = vmatpush2.bf16.msra.mxu0 0
      %2118 = vmatprep.subr.bf16.mxu0 0
      %2119 = vmatpush2.bf16.msra.mxu0 0
      %2120 = vmatprep.mubr.bf16.mxu0 0
      %2121 = vmatmul.mubr.bf16.gmra.mxu0 %v2083
      %v2122 = vpop.f32.mrf.mxu0
      %v2123 = vadd.f32 0.0, %v2122
      %v2124 = vpop.f32.mrf.mxu0
      %v2125 = vpop.f32.mrf.mxu0
      %v2126 = vpop.f32.mrf.mxu0
      %2127 = vdwg.mxu0
      %2128 = vrot.lane.b32.xlu0 %v1789, 80
      %v2129 = vpop.permute.xlu0 %2128
      %2130 = vrot.lane.b32.xlu0 %v1789, 16
      %v2131 = vpop.permute.xlu0 %2130
      %v2133 = vsel %vm1317, %v2129, 0
      %v2136 = vsel %vm1317, %v2131, 0
      %2138 = vmatprep.subr.bf16.mxu0 0
      %2139 = vmatpush1.bf16.xpose.msra.mxu0 0
      %2140 = vmatprep.subr.bf16.mxu0 0
      %2141 = vmatpush1.bf16.xpose.msra.mxu0 0
      %2142 = vmatprep.subr.bf16.mxu0 0
      %2143 = vmatpush1.bf16.xpose.msra.mxu0 0
      %2144 = vmatprep.subr.bf16.mxu0 0
      %2145 = vmatpush1.bf16.xpose.msra.mxu0 0
      %2146 = vmatprep.subr.bf16.mxu0 0
      %2147 = vmatpush1.bf16.xpose.msra.mxu0 0
      %2148 = vmatprep.subr.bf16.mxu0 0
      %2149 = vmatpush1.bf16.xpose.msra.mxu0 0
      %2150 = vmatprep.subr.bf16.mxu0 0
      %2151 = vmatpush1.bf16.xpose.msra.mxu0 0
      %2152 = vmatprep.subr.bf16.mxu0 0
      %2153 = vmatpush1.bf16.xpose.msra.mxu0 %v2136
      %2154 = vmatprep.subr.bf16.mxu0 0
      %2155 = vmatpush2.bf16.xpose.msra.mxu0 0
      %2156 = vmatprep.subr.bf16.mxu0 0
      %2157 = vmatpush2.bf16.xpose.msra.mxu0 0
      %2158 = vmatprep.subr.bf16.mxu0 0
      %2159 = vmatpush2.bf16.xpose.msra.mxu0 0
      %2160 = vmatprep.subr.bf16.mxu0 0
      %2161 = vmatpush2.bf16.xpose.msra.mxu0 0
      %2162 = vmatprep.subr.bf16.mxu0 0
      %2163 = vmatpush2.bf16.xpose.msra.mxu0 0
      %2164 = vmatprep.subr.bf16.mxu0 0
      %2165 = vmatpush2.bf16.xpose.msra.mxu0 0
      %2166 = vmatprep.subr.bf16.mxu0 0
      %2167 = vmatpush2.bf16.xpose.msra.mxu0 0
      %2168 = vmatprep.subr.bf16.mxu0 0
      %2169 = vmatpush2.bf16.xpose.msra.mxu0 0
      %2170 = vmatprep.mubr.bf16.mxu0 0
      %2171 = vmatmul.mubr.bf16.gmra.mxu0 %v2133
      %v2172 = vpop.f32.mrf.mxu0
      %v2173 = vadd.f32 0.0, %v2172
      %v2174 = vpop.f32.mrf.mxu0
      %v2175 = vpop.f32.mrf.mxu0
      %v2176 = vpop.f32.mrf.mxu0
      %2177 = vdwg.mxu0
      %v2178 = vmul.f32 %v2173, 0.25
      %v2179 = vsel %vm1365, %v2178, -inf
      %2180 = vmax.xlane.f32.xlu0 %v2179
      %v2181 = vpop.xlane.xlu0 %2180
      %v2182 = vsub.f32 %v2178, %v2181
      %v2183 = vmul.f32 %v2182, 1.442695
      %v2184 = vpow.pop %v2183
      %v2185 = vsel %vm1365, %v2184, 0.0
      %2186 = vadd.xlane.f32.xlu0 %v2185
      %v2187 = vpop.xlane.xlu0 %2186
      %v2188 = vrcp.pop %v2187
      %v2189 = vmul.f32 %v2184, %v2188
      %v2190 = vpack.c.bf16 %v2189, %v2189
      %2191 = vrot.lane.b32.xlu0 %v1859, 80
      %v2192 = vpop.permute.xlu0 %2191
      %v2194 = vsel %vm1379, %v2190, 0
      %v2197 = vand.u32 %v2192, %v1386
      %2199 = vmatprep.subr.bf16.mxu0 0
      %2200 = vmatpush1.bf16.msra.mxu0 0
      %2201 = vmatprep.subr.bf16.mxu0 0
      %2202 = vmatpush1.bf16.msra.mxu0 0
      %2203 = vmatprep.subr.bf16.mxu0 0
      %2204 = vmatpush1.bf16.msra.mxu0 0
      %2205 = vmatprep.subr.bf16.mxu0 0
      %2206 = vmatpush1.bf16.msra.mxu0 0
      %2207 = vmatprep.subr.bf16.mxu0 0
      %2208 = vmatpush1.bf16.msra.mxu0 0
      %2209 = vmatprep.subr.bf16.mxu0 0
      %2210 = vmatpush1.bf16.msra.mxu0 0
      %2211 = vmatprep.subr.bf16.mxu0 0
      %2212 = vmatpush1.bf16.msra.mxu0 0
      %2213 = vmatprep.subr.bf16.mxu0 0
      %2214 = vmatpush1.bf16.msra.mxu0 %v2197
      %2215 = vmatprep.subr.bf16.mxu0 0
      %2216 = vmatpush2.bf16.msra.mxu0 0
      %2217 = vmatprep.subr.bf16.mxu0 0
      %2218 = vmatpush2.bf16.msra.mxu0 0
      %2219 = vmatprep.subr.bf16.mxu0 0
      %2220 = vmatpush2.bf16.msra.mxu0 0
      %2221 = vmatprep.subr.bf16.mxu0 0
      %2222 = vmatpush2.bf16.msra.mxu0 0
      %2223 = vmatprep.subr.bf16.mxu0 0
      %2224 = vmatpush2.bf16.msra.mxu0 0
      %2225 = vmatprep.subr.bf16.mxu0 0
      %2226 = vmatpush2.bf16.msra.mxu0 0
      %2227 = vmatprep.subr.bf16.mxu0 0
      %2228 = vmatpush2.bf16.msra.mxu0 0
      %2229 = vmatprep.subr.bf16.mxu0 0
      %2230 = vmatpush2.bf16.msra.mxu0 0
      %2231 = vmatprep.mubr.bf16.mxu0 0
      %2232 = vmatmul.mubr.bf16.gmra.mxu0 %v2194
      %v2233 = vpop.f32.mrf.mxu0
      %v2234 = vadd.f32 0.0, %v2233
      %v2235 = vpop.f32.mrf.mxu0
      %v2236 = vpop.f32.mrf.mxu0
      %v2237 = vpop.f32.mrf.mxu0
      %2238 = vdwg.mxu0
      %2240 = vrot.lane.b32.xlu0 %v2012, 16
      %v2241 = vpop.permute.xlu0 %2240
      %2244 = vrot.lane.b32.xlu0 %v2123, 32
      %v2245 = vpop.permute.xlu0 %2244
      %2248 = vrot.lane.b32.xlu0 %v2234, 48
      %v2249 = vpop.permute.xlu0 %2248
      %v2251 = vsel %vm1317, %v1901, %v2241
      %v2252 = vsel %vm1777, %v2251, %v2245
      %v2253 = vsel %vm1779, %v2252, %v2249
      %v2255 = vrot.slane %v2253, 3
      %vm2257 = vcmask 1044480
      %v2258 = vsel %vm2257, %v1780, %v2255
      %v2259 = vld [vmem:[%s928] sm:$0xf]
      %v2260 = vld [vmem:[%s928 + $0x4] sm:$0xf]
      %v2261 = vld [vmem:[%s928 + $0x8] sm:$0xf]
      %v2262 = vld [vmem:[%s928 + $0xc] sm:$0xf]
      %v2263 = vld [vmem:[%s928 + $0x10] sm:$0xf]
      %v2264 = vld [vmem:[%s928 + $0x14] sm:$0xf]
      %v2265 = vld [vmem:[%s928 + $0x18] sm:$0xf]
      %v2266 = vld [vmem:[%s928 + $0x1c] sm:$0xf]
      %v2267 = vpack.c.bf16 %v2255, %v2258
      %v2268 = vld [vmem:[%s931] sm:$0x1]
      %v2270 = vlaneseq
      %v2271 = vshrl.u32 %v2270, 7
      %v2272 = vsub.s32 0, %v2271
      %v2273 = vrot.slane %v2268, %v2272
      %v2283 = vunpack.c.l.b16 %v2259
      %v2284 = vunpack.c.l.b16 %v2260
      %v2285 = vunpack.c.l.b16 %v2261
      %v2286 = vunpack.c.l.b16 %v2262
      %v2287 = vunpack.c.l.b16 %v2263
      %v2288 = vunpack.c.l.b16 %v2264
      %v2289 = vunpack.c.l.b16 %v2265
      %v2290 = vunpack.c.l.b16 %v2266
      %v2291 = vpack.c.b16 %v2284, %v2283
      %v2292 = vpack.c.b16 %v2286, %v2285
      %v2293 = vpack.c.b16 %v2288, %v2287
      %v2294 = vpack.c.b16 %v2290, %v2289
      %v2300 = vsel %vm1159, %v2267, 0
      %2302 = vmatprep.subr.bf16.mxu0 0
      %2303 = vmatpush1.bf16.msra.mxu0 0
      %2304 = vmatprep.subr.bf16.mxu0 0
      %2305 = vmatpush1.bf16.msra.mxu0 0
      %2306 = vmatprep.subr.bf16.mxu0 0
      %2307 = vmatpush1.bf16.msra.mxu0 0
      %2308 = vmatprep.subr.bf16.mxu0 0
      %2309 = vmatpush1.bf16.msra.mxu0 0
      %2310 = vmatprep.subr.bf16.mxu0 0
      %2311 = vmatpush1.bf16.msra.mxu0 %v2294
      %2312 = vmatprep.subr.bf16.mxu0 0
      %2313 = vmatpush1.bf16.msra.mxu0 %v2293
      %2314 = vmatprep.subr.bf16.mxu0 0
      %2315 = vmatpush1.bf16.msra.mxu0 %v2292
      %2316 = vmatprep.subr.bf16.mxu0 0
      %2317 = vmatpush1.bf16.msra.mxu0 %v2291
      %2318 = vmatprep.subr.bf16.mxu0 0
      %2319 = vmatpush2.bf16.msra.mxu0 0
      %2320 = vmatprep.subr.bf16.mxu0 0
      %2321 = vmatpush2.bf16.msra.mxu0 0
      %2322 = vmatprep.subr.bf16.mxu0 0
      %2323 = vmatpush2.bf16.msra.mxu0 0
      %2324 = vmatprep.subr.bf16.mxu0 0
      %2325 = vmatpush2.bf16.msra.mxu0 0
      %2326 = vmatprep.subr.bf16.mxu0 0
      %2327 = vmatpush2.bf16.msra.mxu0 0
      %2328 = vmatprep.subr.bf16.mxu0 0
      %2329 = vmatpush2.bf16.msra.mxu0 0
      %2330 = vmatprep.subr.bf16.mxu0 0
      %2331 = vmatpush2.bf16.msra.mxu0 0
      %2332 = vmatprep.subr.bf16.mxu0 0
      %2333 = vmatpush2.bf16.msra.mxu0 0
      %2334 = vmatprep.mubr.bf16.mxu0 0
      %2335 = vmatmul.mubr.bf16.gmra.mxu0 %v2300
      %v2336 = vpop.f32.mrf.mxu0
      %v2337 = vadd.f32 %v2273, %v2336
      %v2338 = vpop.f32.mrf.mxu0
      %v2339 = vpop.f32.mrf.mxu0
      %v2340 = vadd.f32 %v2273, %v2339
      %v2341 = vpop.f32.mrf.mxu0
      %2342 = vdwg.mxu0
      %v2343 = vadd.f32 %v1157, %v2337
      %v2344 = vadd.f32 %v1158, %v2340
      %v2345 = vsel %vm1159, %v2343, 0.0
      %2346 = vadd.xlane.f32.xlu0 %v2345
      %v2347 = vpop.xlane.xlu0 %2346
      %v2348 = vsel %vm1163, %v2344, 0.0
      %2349 = vadd.xlane.f32.xlu0 %v2348
      %v2350 = vpop.xlane.xlu0 %2349
      %v2351 = vmul.f32 %v2347, %v1167
      %v2352 = vmul.f32 %v2350, %v1167
      %v2353 = vsub.f32 %v2343, %v2351
      %v2354 = vsub.f32 %v2344, %v2352
      %v2355 = vmul.f32 %v2353, %v2353
      %v2356 = vmul.f32 %v2354, %v2354
      %v2357 = vsel %vm1159, %v2355, 0.0
      %2358 = vadd.xlane.f32.xlu0 %v2357
      %v2359 = vpop.xlane.xlu0 %2358
      %v2360 = vsel %vm1163, %v2356, 0.0
      %2361 = vadd.xlane.f32.xlu0 %v2360
      %v2362 = vpop.xlane.xlu0 %2361
      %v2363 = vmul.f32 %v2359, %v1167
      %v2364 = vmul.f32 %v2362, %v1167
      %v2365 = vadd.f32 %v2363, 1e-05
      %v2366 = vadd.f32 %v2364, 1e-05
      %v2367 = vrsqrt.pop %v2365
      %v2368 = vrsqrt.pop %v2366
      %v2369 = vmul.f32 %v2353, %v2367
      %v2370 = vmul.f32 %v2354, %v2368
      %v2371 = vld [vmem:[%s934] sm:$0x1]
      %v2373 = vlaneseq
      %v2374 = vshrl.u32 %v2373, 7
      %v2375 = vsub.s32 0, %v2374
      %v2376 = vrot.slane %v2371, %v2375
      %v2378 = vmul.f32 %v2369, %v2376
      %v2379 = vmul.f32 %v2370, %v2376
      %v2380 = vld [vmem:[%s937] sm:$0x1]
      %v2382 = vlaneseq
      %v2383 = vshrl.u32 %v2382, 7
      %v2384 = vsub.s32 0, %v2383
      %v2385 = vrot.slane %v2380, %v2384
      %v2387 = vadd.f32 %v2378, %v2385
      %v2388 = vadd.f32 %v2379, %v2385
      %v2389 = vld [vmem:[%s942] sm:$0xff]
      %v2390 = vld [vmem:[%s942 + $0x8] sm:$0xff]
      %v2391 = vld [vmem:[%s942 + $0x10] sm:$0xff]
      %v2392 = vld [vmem:[%s942 + $0x18] sm:$0xff]
      %v2393 = vld [vmem:[%s942 + $0x20] sm:$0xff]
      %v2394 = vld [vmem:[%s942 + $0x28] sm:$0xff]
      %v2395 = vld [vmem:[%s942 + $0x30] sm:$0xff]
      %v2396 = vld [vmem:[%s942 + $0x38] sm:$0xff]
      %v2397 = vpack.c.bf16 %v2388, %v2387
      %v2398 = vld [vmem:[%s946] sm:$0x3]
      %v2400 = vlaneseq
      %v2401 = vshrl.u32 %v2400, 7
      %v2402 = vsub.s32 0, %v2401
      %v2403 = vrot.slane %v2398, %v2402
      %v2404 = vlaneseq
      %v2405 = vshrl.u32 %v2404, 7
      %v2406 = vsub.s32 1, %v2405
      %v2407 = vrot.slane %v2398, %v2406
      %v2418 = vunpack.c.l.b16 %v2389
      %v2419 = vunpack.c.h.b16 %v2389
      %v2420 = vunpack.c.l.b16 %v2390
      %v2421 = vunpack.c.h.b16 %v2390
      %v2422 = vunpack.c.l.b16 %v2391
      %v2423 = vunpack.c.h.b16 %v2391
      %v2424 = vunpack.c.l.b16 %v2392
      %v2425 = vunpack.c.h.b16 %v2392
      %v2426 = vunpack.c.l.b16 %v2393
      %v2427 = vunpack.c.h.b16 %v2393
      %v2428 = vunpack.c.l.b16 %v2394
      %v2429 = vunpack.c.h.b16 %v2394
      %v2430 = vunpack.c.l.b16 %v2395
      %v2431 = vunpack.c.h.b16 %v2395
      %v2432 = vunpack.c.l.b16 %v2396
      %v2433 = vunpack.c.h.b16 %v2396
      %v2434 = vpack.c.b16 %v2420, %v2418
      %v2435 = vpack.c.b16 %v2421, %v2419
      %v2436 = vpack.c.b16 %v2424, %v2422
      %v2437 = vpack.c.b16 %v2425, %v2423
      %v2438 = vpack.c.b16 %v2428, %v2426
      %v2439 = vpack.c.b16 %v2429, %v2427
      %v2440 = vpack.c.b16 %v2432, %v2430
      %v2441 = vpack.c.b16 %v2433, %v2431
      %v2451 = vsel %vm1159, %v2397, 0
      %2453 = vmatprep.subr.bf16.mxu0 0
      %2454 = vmatpush1.bf16.msra.mxu0 0
      %2455 = vmatprep.subr.bf16.mxu0 0
      %2456 = vmatpush1.bf16.msra.mxu0 0
      %2457 = vmatprep.subr.bf16.mxu0 0
      %2458 = vmatpush1.bf16.msra.mxu0 0
      %2459 = vmatprep.subr.bf16.mxu0 0
      %2460 = vmatpush1.bf16.msra.mxu0 0
      %2461 = vmatprep.subr.bf16.mxu0 %v2441
      %2462 = vmatpush1.bf16.msra.mxu0 %v2440
      %2463 = vmatprep.subr.bf16.mxu0 %v2439
      %2464 = vmatpush1.bf16.msra.mxu0 %v2438
      %2465 = vmatprep.subr.bf16.mxu0 %v2437
      %2466 = vmatpush1.bf16.msra.mxu0 %v2436
      %2467 = vmatprep.subr.bf16.mxu0 %v2435
      %2468 = vmatpush1.bf16.msra.mxu0 %v2434
      %2469 = vmatprep.subr.bf16.mxu0 0
      %2470 = vmatpush2.bf16.msra.mxu0 0
      %2471 = vmatprep.subr.bf16.mxu0 0
      %2472 = vmatpush2.bf16.msra.mxu0 0
      %2473 = vmatprep.subr.bf16.mxu0 0
      %2474 = vmatpush2.bf16.msra.mxu0 0
      %2475 = vmatprep.subr.bf16.mxu0 0
      %2476 = vmatpush2.bf16.msra.mxu0 0
      %2477 = vmatprep.subr.bf16.mxu0 0
      %2478 = vmatpush2.bf16.msra.mxu0 0
      %2479 = vmatprep.subr.bf16.mxu0 0
      %2480 = vmatpush2.bf16.msra.mxu0 0
      %2481 = vmatprep.subr.bf16.mxu0 0
      %2482 = vmatpush2.bf16.msra.mxu0 0
      %2483 = vmatprep.subr.bf16.mxu0 0
      %2484 = vmatpush2.bf16.msra.mxu0 0
      %2485 = vmatprep.mubr.bf16.mxu0 0
      %2486 = vmatmul.mubr.bf16.gmra.mxu0 %v2451
      %v2487 = vpop.f32.mrf.mxu0
      %v2488 = vadd.f32 %v2403, %v2487
      %v2489 = vpop.f32.mrf.mxu0
      %v2490 = vadd.f32 %v2407, %v2489
      %v2491 = vpop.f32.mrf.mxu0
      %v2492 = vadd.f32 %v2403, %v2491
      %v2493 = vpop.f32.mrf.mxu0
      %v2494 = vadd.f32 %v2407, %v2493
      %2495 = vdwg.mxu0
      %v2496 = vmul.f32 %v2488, %v2488
      %v2497 = vmul.f32 %v2490, %v2490
      %v2498 = vmul.f32 %v2492, %v2492
      %v2499 = vmul.f32 %v2494, %v2494
      %v2500 = vmul.f32 %v2488, %v2496
      %v2501 = vmul.f32 %v2490, %v2497
      %v2502 = vmul.f32 %v2492, %v2498
      %v2503 = vmul.f32 %v2494, %v2499
      %v2504 = vmul.f32 %v2500, 0.044715
      %v2505 = vmul.f32 %v2501, 0.044715
      %v2506 = vmul.f32 %v2502, 0.044715
      %v2507 = vmul.f32 %v2503, 0.044715
      %v2508 = vadd.f32 %v2488, %v2504
      %v2509 = vadd.f32 %v2490, %v2505
      %v2510 = vadd.f32 %v2492, %v2506
      %v2511 = vadd.f32 %v2494, %v2507
      %v2512 = vmul.f32 %v2508, 0.7978846
      %v2513 = vmul.f32 %v2509, 0.7978846
      %v2514 = vmul.f32 %v2510, 0.7978846
      %v2515 = vmul.f32 %v2511, 0.7978846
      %v2516 = vtanh.pop %v2512
      %v2517 = vtanh.pop %v2513
      %v2518 = vtanh.pop %v2514
      %v2519 = vtanh.pop %v2515
      %v2520 = vadd.f32 %v2516, 1.0
      %v2521 = vadd.f32 %v2517, 1.0
      %v2522 = vadd.f32 %v2518, 1.0
      %v2523 = vadd.f32 %v2519, 1.0
      %v2524 = vmul.f32 %v2520, 0.5
      %v2525 = vmul.f32 %v2521, 0.5
      %v2526 = vmul.f32 %v2522, 0.5
      %v2527 = vmul.f32 %v2523, 0.5
      %v2528 = vmul.f32 %v2488, %v2524
      %v2529 = vmul.f32 %v2490, %v2525
      %v2530 = vmul.f32 %v2492, %v2526
      %v2531 = vmul.f32 %v2494, %v2527
      %v2532 = vld [vmem:[%s951] sm:$0xf]
      %v2533 = vld [vmem:[%s951 + $0x4] sm:$0xf]
      %v2534 = vld [vmem:[%s951 + $0x8] sm:$0xf]
      %v2535 = vld [vmem:[%s951 + $0xc] sm:$0xf]
      %v2536 = vld [vmem:[%s951 + $0x10] sm:$0xf]
      %v2537 = vld [vmem:[%s951 + $0x14] sm:$0xf]
      %v2538 = vld [vmem:[%s951 + $0x18] sm:$0xf]
      %v2539 = vld [vmem:[%s951 + $0x1c] sm:$0xf]
      %v2540 = vld [vmem:[%s951 + $0x20] sm:$0xf]
      %v2541 = vld [vmem:[%s951 + $0x24] sm:$0xf]
      %v2542 = vld [vmem:[%s951 + $0x28] sm:$0xf]
      %v2543 = vld [vmem:[%s951 + $0x2c] sm:$0xf]
      %v2544 = vld [vmem:[%s951 + $0x30] sm:$0xf]
      %v2545 = vld [vmem:[%s951 + $0x34] sm:$0xf]
      %v2546 = vld [vmem:[%s951 + $0x38] sm:$0xf]
      %v2547 = vld [vmem:[%s951 + $0x3c] sm:$0xf]
      %v2548 = vld [vmem:[%s951 + $0x40] sm:$0xf]
      %v2549 = vld [vmem:[%s951 + $0x44] sm:$0xf]
      %v2550 = vld [vmem:[%s951 + $0x48] sm:$0xf]
      %v2551 = vld [vmem:[%s951 + $0x4c] sm:$0xf]
      %v2552 = vld [vmem:[%s951 + $0x50] sm:$0xf]
      %v2553 = vld [vmem:[%s951 + $0x54] sm:$0xf]
      %v2554 = vld [vmem:[%s951 + $0x58] sm:$0xf]
      %v2555 = vld [vmem:[%s951 + $0x5c] sm:$0xf]
      %v2556 = vld [vmem:[%s951 + $0x60] sm:$0xf]
      %v2557 = vld [vmem:[%s951 + $0x64] sm:$0xf]
      %v2558 = vld [vmem:[%s951 + $0x68] sm:$0xf]
      %v2559 = vld [vmem:[%s951 + $0x6c] sm:$0xf]
      %v2560 = vld [vmem:[%s951 + $0x70] sm:$0xf]
      %v2561 = vld [vmem:[%s951 + $0x74] sm:$0xf]
      %v2562 = vld [vmem:[%s951 + $0x78] sm:$0xf]
      %v2563 = vld [vmem:[%s951 + $0x7c] sm:$0xf]
      %v2564 = vpack.c.bf16 %v2530, %v2528
      %v2565 = vpack.c.bf16 %v2531, %v2529
      %v2598 = vunpack.c.l.b16 %v2532
      %v2599 = vunpack.c.l.b16 %v2533
      %v2600 = vunpack.c.l.b16 %v2534
      %v2601 = vunpack.c.l.b16 %v2535
      %v2602 = vunpack.c.l.b16 %v2536
      %v2603 = vunpack.c.l.b16 %v2537
      %v2604 = vunpack.c.l.b16 %v2538
      %v2605 = vunpack.c.l.b16 %v2539
      %v2606 = vunpack.c.l.b16 %v2540
      %v2607 = vunpack.c.l.b16 %v2541
      %v2608 = vunpack.c.l.b16 %v2542
      %v2609 = vunpack.c.l.b16 %v2543
      %v2610 = vunpack.c.l.b16 %v2544
      %v2611 = vunpack.c.l.b16 %v2545
      %v2612 = vunpack.c.l.b16 %v2546
      %v2613 = vunpack.c.l.b16 %v2547
      %v2614 = vunpack.c.l.b16 %v2548
      %v2615 = vunpack.c.l.b16 %v2549
      %v2616 = vunpack.c.l.b16 %v2550
      %v2617 = vunpack.c.l.b16 %v2551
      %v2618 = vunpack.c.l.b16 %v2552
      %v2619 = vunpack.c.l.b16 %v2553
      %v2620 = vunpack.c.l.b16 %v2554
      %v2621 = vunpack.c.l.b16 %v2555
      %v2622 = vunpack.c.l.b16 %v2556
      %v2623 = vunpack.c.l.b16 %v2557
      %v2624 = vunpack.c.l.b16 %v2558
      %v2625 = vunpack.c.l.b16 %v2559
      %v2626 = vunpack.c.l.b16 %v2560
      %v2627 = vunpack.c.l.b16 %v2561
      %v2628 = vunpack.c.l.b16 %v2562
      %v2629 = vunpack.c.l.b16 %v2563
      %v2630 = vpack.c.b16 %v2599, %v2598
      %v2631 = vpack.c.b16 %v2601, %v2600
      %v2632 = vpack.c.b16 %v2603, %v2602
      %v2633 = vpack.c.b16 %v2605, %v2604
      %v2634 = vpack.c.b16 %v2607, %v2606
      %v2635 = vpack.c.b16 %v2609, %v2608
      %v2636 = vpack.c.b16 %v2611, %v2610
      %v2637 = vpack.c.b16 %v2613, %v2612
      %v2638 = vpack.c.b16 %v2615, %v2614
      %v2639 = vpack.c.b16 %v2617, %v2616
      %v2640 = vpack.c.b16 %v2619, %v2618
      %v2641 = vpack.c.b16 %v2621, %v2620
      %v2642 = vpack.c.b16 %v2623, %v2622
      %v2643 = vpack.c.b16 %v2625, %v2624
      %v2644 = vpack.c.b16 %v2627, %v2626
      %v2645 = vpack.c.b16 %v2629, %v2628
      %2662 = vmatprep.subr.bf16.mxu0 0
      %2663 = vmatpush1.bf16.msra.mxu0 %v2637
      %2664 = vmatprep.subr.bf16.mxu0 0
      %2665 = vmatpush1.bf16.msra.mxu0 %v2636
      %2666 = vmatprep.subr.bf16.mxu0 0
      %2667 = vmatpush1.bf16.msra.mxu0 %v2635
      %2668 = vmatprep.subr.bf16.mxu0 0
      %2669 = vmatpush1.bf16.msra.mxu0 %v2634
      %2670 = vmatprep.subr.bf16.mxu0 0
      %2671 = vmatpush1.bf16.msra.mxu0 %v2633
      %2672 = vmatprep.subr.bf16.mxu0 0
      %2673 = vmatpush1.bf16.msra.mxu0 %v2632
      %2674 = vmatprep.subr.bf16.mxu0 0
      %2675 = vmatpush1.bf16.msra.mxu0 %v2631
      %2676 = vmatprep.subr.bf16.mxu0 0
      %2677 = vmatpush1.bf16.msra.mxu0 %v2630
      %2678 = vmatprep.subr.bf16.mxu0 0
      %2679 = vmatpush2.bf16.msra.mxu0 %v2645
      %2680 = vmatprep.subr.bf16.mxu0 0
      %2681 = vmatpush2.bf16.msra.mxu0 %v2644
      %2682 = vmatprep.subr.bf16.mxu0 0
      %2683 = vmatpush2.bf16.msra.mxu0 %v2643
      %2684 = vmatprep.subr.bf16.mxu0 0
      %2685 = vmatpush2.bf16.msra.mxu0 %v2642
      %2686 = vmatprep.subr.bf16.mxu0 0
      %2687 = vmatpush2.bf16.msra.mxu0 %v2641
      %2688 = vmatprep.subr.bf16.mxu0 0
      %2689 = vmatpush2.bf16.msra.mxu0 %v2640
      %2690 = vmatprep.subr.bf16.mxu0 0
      %2691 = vmatpush2.bf16.msra.mxu0 %v2639
      %2692 = vmatprep.subr.bf16.mxu0 0
      %2693 = vmatpush2.bf16.msra.mxu0 %v2638
      %2694 = vmatprep.mubr.bf16.mxu0 %v2565
      %2695 = vmatmul.mubr.bf16.gmra.mxu0 %v2564
      %v2696 = vpop.f32.mrf.mxu0
      %v2697 = vadd.f32 0.0, %v2696
      %v2698 = vpop.f32.mrf.mxu0
      %v2699 = vpop.f32.mrf.mxu0
      %v2700 = vadd.f32 0.0, %v2699
      %v2701 = vpop.f32.mrf.mxu0
      %2702 = vdwg.mxu0
      %v2703 = vadd.f32 %v2343, %v2697
      %v2704 = vadd.f32 %v2344, %v2700
      %v2705 = vld [vmem:[%s954] sm:$0x1]
      %v2707 = vlaneseq
      %v2708 = vshrl.u32 %v2707, 7
      %v2709 = vsub.s32 0, %v2708
      %v2710 = vrot.slane %v2705, %v2709
      %v2712 = vadd.f32 %v2703, %v2710
      %v2713 = vadd.f32 %v2704, %v2710
      %2714 = vst.msk [vmem:[#allocation2] sm:$0xff] %vm1159, %v2712
      %2715 = vst.msk [vmem:[#allocation2 + $0x8] sm:$0x3] %vm1163, %v2713
      %p2716 = scmp.eq.s32.totalorder %s37, 1
      // Predicated region
      $region129: #{openclip_man_forward.3} parent=123 // pred_check
        %p2717 = pneg %p2716
      $region130: #{openclip_man_forward.3} parent=123 // pred_check_branch
        %2719 = sbr.rel (%p2717) target = $region132
      $region131: #{openclip_man_forward.3} parent=123 // pred_region
        %v2720 = vsel %vm1159, %v2712, 0.0
        %2721 = vadd.xlane.f32.xlu0 %v2720
        %v2722 = vpop.xlane.xlu0 %2721
        %v2723 = vsel %vm1163, %v2713, 0.0
        %2724 = vadd.xlane.f32.xlu0 %v2723
        %v2725 = vpop.xlane.xlu0 %2724
        %v2726 = vmul.f32 %v2722, %v1167
        %v2727 = vmul.f32 %v2725, %v1167
        %v2728 = vsub.f32 %v2712, %v2726
        %v2729 = vsub.f32 %v2713, %v2727
        %v2730 = vmul.f32 %v2728, %v2728
        %v2731 = vmul.f32 %v2729, %v2729
        %v2732 = vsel %vm1159, %v2730, 0.0
        %2733 = vadd.xlane.f32.xlu0 %v2732
        %v2734 = vpop.xlane.xlu0 %2733
        %v2735 = vsel %vm1163, %v2731, 0.0
        %2736 = vadd.xlane.f32.xlu0 %v2735
        %v2737 = vpop.xlane.xlu0 %2736
        %v2738 = vmul.f32 %v2734, %v1167
        %v2739 = vmul.f32 %v2737, %v1167
        %v2740 = vadd.f32 %v2738, 1e-05
        %v2741 = vadd.f32 %v2739, 1e-05
        %v2742 = vrsqrt.pop %v2740
        %v2743 = vrsqrt.pop %v2741
        %v2744 = vmul.f32 %v2728, %v2742
        %v2745 = vmul.f32 %v2729, %v2743
        %v2746 = vld [vmem:[%s17] sm:$0x1]
        %v2748 = vlaneseq
        %v2749 = vshrl.u32 %v2748, 7
        %v2750 = vsub.s32 0, %v2749
        %v2751 = vrot.slane %v2746, %v2750
        %v2753 = vmul.f32 %v2744, %v2751
        %v2754 = vmul.f32 %v2745, %v2751
        %v2755 = vld [vmem:[%s18] sm:$0x1]
        %v2757 = vlaneseq
        %v2758 = vshrl.u32 %v2757, 7
        %v2759 = vsub.s32 0, %v2758
        %v2760 = vrot.slane %v2755, %v2759
        %v2762 = vadd.f32 %v2753, %v2760
        %v2763 = vadd.f32 %v2754, %v2760
        %v2764 = vld [vmem:[%s19] sm:$0xf]
        %v2765 = vld [vmem:[%s19 + $0x4] sm:$0xf]
        %v2766 = vld [vmem:[%s19 + $0x8] sm:$0xf]
        %v2767 = vld [vmem:[%s19 + $0xc] sm:$0xf]
        %v2768 = vld [vmem:[%s19 + $0x10] sm:$0xf]
        %v2769 = vld [vmem:[%s19 + $0x14] sm:$0xf]
        %v2770 = vld [vmem:[%s19 + $0x18] sm:$0xf]
        %v2771 = vld [vmem:[%s19 + $0x1c] sm:$0xf]
        %v2772 = vpack.c.bf16 %v2763, %v2762
        %v2781 = vunpack.c.l.b16 %v2764
        %v2782 = vunpack.c.l.b16 %v2765
        %v2783 = vunpack.c.l.b16 %v2766
        %v2784 = vunpack.c.l.b16 %v2767
        %v2785 = vunpack.c.l.b16 %v2768
        %v2786 = vunpack.c.l.b16 %v2769
        %v2787 = vunpack.c.l.b16 %v2770
        %v2788 = vunpack.c.l.b16 %v2771
        %v2789 = vpack.c.b16 %v2782, %v2781
        %v2790 = vpack.c.b16 %v2784, %v2783
        %v2791 = vpack.c.b16 %v2786, %v2785
        %v2792 = vpack.c.b16 %v2788, %v2787
        %v2798 = vsel %vm1159, %v2772, 0
        %2800 = vmatprep.subr.bf16.mxu0 0
        %2801 = vmatpush1.bf16.msra.mxu0 0
        %2802 = vmatprep.subr.bf16.mxu0 0
        %2803 = vmatpush1.bf16.msra.mxu0 0
        %2804 = vmatprep.subr.bf16.mxu0 0
        %2805 = vmatpush1.bf16.msra.mxu0 0
        %2806 = vmatprep.subr.bf16.mxu0 0
        %2807 = vmatpush1.bf16.msra.mxu0 0
        %2808 = vmatprep.subr.bf16.mxu0 0
        %2809 = vmatpush1.bf16.msra.mxu0 %v2792
        %2810 = vmatprep.subr.bf16.mxu0 0
        %2811 = vmatpush1.bf16.msra.mxu0 %v2791
        %2812 = vmatprep.subr.bf16.mxu0 0
        %2813 = vmatpush1.bf16.msra.mxu0 %v2790
        %2814 = vmatprep.subr.bf16.mxu0 0
        %2815 = vmatpush1.bf16.msra.mxu0 %v2789
        %2816 = vmatprep.subr.bf16.mxu0 0
        %2817 = vmatpush2.bf16.msra.mxu0 0
        %2818 = vmatprep.subr.bf16.mxu0 0
        %2819 = vmatpush2.bf16.msra.mxu0 0
        %2820 = vmatprep.subr.bf16.mxu0 0
        %2821 = vmatpush2.bf16.msra.mxu0 0
        %2822 = vmatprep.subr.bf16.mxu0 0
        %2823 = vmatpush2.bf16.msra.mxu0 0
        %2824 = vmatprep.subr.bf16.mxu0 0
        %2825 = vmatpush2.bf16.msra.mxu0 0
        %2826 = vmatprep.subr.bf16.mxu0 0
        %2827 = vmatpush2.bf16.msra.mxu0 0
        %2828 = vmatprep.subr.bf16.mxu0 0
        %2829 = vmatpush2.bf16.msra.mxu0 0
        %2830 = vmatprep.subr.bf16.mxu0 0
        %2831 = vmatpush2.bf16.msra.mxu0 0
        %2832 = vmatprep.mubr.bf16.mxu0 0
        %2833 = vmatmul.mubr.bf16.gmra.mxu0 %v2798
        %v2834 = vpop.f32.mrf.mxu0
        %v2835 = vadd.f32 0.0, %v2834
        %v2836 = vpop.f32.mrf.mxu0
        %v2837 = vpop.f32.mrf.mxu0
        %v2838 = vadd.f32 0.0, %v2837
        %v2839 = vpop.f32.mrf.mxu0
        %2840 = vdwg.mxu0
        %v2841 = vld [vmem:[%s20] sm:$0xff]
        %v2842 = vld [vmem:[%s20 + $0x8] sm:$0xff]
        %v2843 = vld [vmem:[%s20 + $0x10] sm:$0xff]
        %v2844 = vld [vmem:[%s20 + $0x18] sm:$0xff]
        %v2845 = vld [vmem:[%s20 + $0x20] sm:$0xff]
        %v2846 = vld [vmem:[%s20 + $0x28] sm:$0xff]
        %v2847 = vld [vmem:[%s20 + $0x30] sm:$0xff]
        %v2848 = vld [vmem:[%s20 + $0x38] sm:$0xff]
        %v2849 = vld [vmem:[%s20 + $0x40] sm:$0xff]
        %v2850 = vld [vmem:[%s20 + $0x48] sm:$0xff]
        %v2851 = vld [vmem:[%s20 + $0x50] sm:$0xff]
        %v2852 = vld [vmem:[%s20 + $0x58] sm:$0xff]
        %v2853 = vld [vmem:[%s20 + $0x60] sm:$0xff]
        %v2854 = vld [vmem:[%s20 + $0x68] sm:$0xff]
        %v2855 = vld [vmem:[%s20 + $0x70] sm:$0xff]
        %v2856 = vld [vmem:[%s20 + $0x78] sm:$0xff]
        %v2857 = vpack.c.bf16 %v2838, %v2835
        %v2858 = vld [vmem:[%s21] sm:$0xf]
        %v2860 = vlaneseq
        %v2861 = vshrl.u32 %v2860, 7
        %v2862 = vsub.s32 0, %v2861
        %v2863 = vrot.slane %v2858, %v2862
        %v2864 = vlaneseq
        %v2865 = vshrl.u32 %v2864, 7
        %v2866 = vsub.s32 1, %v2865
        %v2867 = vrot.slane %v2858, %v2866
        %v2868 = vlaneseq
        %v2869 = vshrl.u32 %v2868, 7
        %v2870 = vsub.s32 2, %v2869
        %v2871 = vrot.slane %v2858, %v2870
        %v2872 = vlaneseq
        %v2873 = vshrl.u32 %v2872, 7
        %v2874 = vsub.s32 3, %v2873
        %v2875 = vrot.slane %v2858, %v2874
        %v2896 = vunpack.c.l.b16 %v2841
        %v2897 = vunpack.c.h.b16 %v2841
        %v2898 = vunpack.c.l.b16 %v2842
        %v2899 = vunpack.c.h.b16 %v2842
        %v2900 = vunpack.c.l.b16 %v2843
        %v2901 = vunpack.c.h.b16 %v2843
        %v2902 = vunpack.c.l.b16 %v2844
        %v2903 = vunpack.c.h.b16 %v2844
        %v2904 = vunpack.c.l.b16 %v2845
        %v2905 = vunpack.c.h.b16 %v2845
        %v2906 = vunpack.c.l.b16 %v2846
        %v2907 = vunpack.c.h.b16 %v2846
        %v2908 = vunpack.c.l.b16 %v2847
        %v2909 = vunpack.c.h.b16 %v2847
        %v2910 = vunpack.c.l.b16 %v2848
        %v2911 = vunpack.c.h.b16 %v2848
        %v2912 = vunpack.c.l.b16 %v2849
        %v2913 = vunpack.c.h.b16 %v2849
        %v2914 = vunpack.c.l.b16 %v2850
        %v2915 = vunpack.c.h.b16 %v2850
        %v2916 = vunpack.c.l.b16 %v2851
        %v2917 = vunpack.c.h.b16 %v2851
        %v2918 = vunpack.c.l.b16 %v2852
        %v2919 = vunpack.c.h.b16 %v2852
        %v2920 = vunpack.c.l.b16 %v2853
        %v2921 = vunpack.c.h.b16 %v2853
        %v2922 = vunpack.c.l.b16 %v2854
        %v2923 = vunpack.c.h.b16 %v2854
        %v2924 = vunpack.c.l.b16 %v2855
        %v2925 = vunpack.c.h.b16 %v2855
        %v2926 = vunpack.c.l.b16 %v2856
        %v2927 = vunpack.c.h.b16 %v2856
        %v2928 = vpack.c.b16 %v2900, %v2896
        %v2929 = vpack.c.b16 %v2901, %v2897
        %v2930 = vpack.c.b16 %v2902, %v2898
        %v2931 = vpack.c.b16 %v2903, %v2899
        %v2932 = vpack.c.b16 %v2908, %v2904
        %v2933 = vpack.c.b16 %v2909, %v2905
        %v2934 = vpack.c.b16 %v2910, %v2906
        %v2935 = vpack.c.b16 %v2911, %v2907
        %v2936 = vpack.c.b16 %v2916, %v2912
        %v2937 = vpack.c.b16 %v2917, %v2913
        %v2938 = vpack.c.b16 %v2918, %v2914
        %v2939 = vpack.c.b16 %v2919, %v2915
        %v2940 = vpack.c.b16 %v2924, %v2920
        %v2941 = vpack.c.b16 %v2925, %v2921
        %v2942 = vpack.c.b16 %v2926, %v2922
        %v2943 = vpack.c.b16 %v2927, %v2923
        %v2961 = vsel %vm1159, %v2857, 0
        %2963 = vmatprep.subr.bf16.mxu0 0
        %2964 = vmatpush1.bf16.msra.mxu0 0
        %2965 = vmatprep.subr.bf16.mxu0 0
        %2966 = vmatpush1.bf16.msra.mxu0 0
        %2967 = vmatprep.subr.bf16.mxu0 0
        %2968 = vmatpush1.bf16.msra.mxu0 0
        %2969 = vmatprep.subr.bf16.mxu0 0
        %2970 = vmatpush1.bf16.msra.mxu0 0
        %2971 = vmatprep.subr.bf16.mxu0 %v2941
        %2972 = vmatpush1.bf16.msra.mxu0 %v2940
        %2973 = vmatprep.subr.bf16.mxu0 %v2937
        %2974 = vmatpush1.bf16.msra.mxu0 %v2936
        %2975 = vmatprep.subr.bf16.mxu0 %v2933
        %2976 = vmatpush1.bf16.msra.mxu0 %v2932
        %2977 = vmatprep.subr.bf16.mxu0 %v2929
        %2978 = vmatpush1.bf16.msra.mxu0 %v2928
        %2979 = vmatprep.subr.bf16.mxu0 0
        %2980 = vmatpush2.bf16.msra.mxu0 0
        %2981 = vmatprep.subr.bf16.mxu0 0
        %2982 = vmatpush2.bf16.msra.mxu0 0
        %2983 = vmatprep.subr.bf16.mxu0 0
        %2984 = vmatpush2.bf16.msra.mxu0 0
        %2985 = vmatprep.subr.bf16.mxu0 0
        %2986 = vmatpush2.bf16.msra.mxu0 0
        %2987 = vmatprep.subr.bf16.mxu0 0
        %2988 = vmatpush2.bf16.msra.mxu0 0
        %2989 = vmatprep.subr.bf16.mxu0 0
        %2990 = vmatpush2.bf16.msra.mxu0 0
        %2991 = vmatprep.subr.bf16.mxu0 0
        %2992 = vmatpush2.bf16.msra.mxu0 0
        %2993 = vmatprep.subr.bf16.mxu0 0
        %2994 = vmatpush2.bf16.msra.mxu0 0
        %2995 = vmatprep.mubr.bf16.mxu0 0
        %2996 = vmatmul.mubr.bf16.gmra.mxu0 %v2961
        %v2997 = vpop.f32.mrf.mxu0
        %v2998 = vadd.f32 %v2863, %v2997
        %v2999 = vpop.f32.mrf.mxu0
        %v3000 = vadd.f32 %v2867, %v2999
        %v3001 = vpop.f32.mrf.mxu0
        %v3002 = vadd.f32 %v2863, %v3001
        %v3003 = vpop.f32.mrf.mxu0
        %v3004 = vadd.f32 %v2867, %v3003
        %3005 = vdwg.mxu0
        %3006 = vmatprep.subr.bf16.mxu0 0
        %3007 = vmatpush1.bf16.msra.mxu0 0
        %3008 = vmatprep.subr.bf16.mxu0 0
        %3009 = vmatpush1.bf16.msra.mxu0 0
        %3010 = vmatprep.subr.bf16.mxu0 0
        %3011 = vmatpush1.bf16.msra.mxu0 0
        %3012 = vmatprep.subr.bf16.mxu0 0
        %3013 = vmatpush1.bf16.msra.mxu0 0
        %3014 = vmatprep.subr.bf16.mxu0 %v2943
        %3015 = vmatpush1.bf16.msra.mxu0 %v2942
        %3016 = vmatprep.subr.bf16.mxu0 %v2939
        %3017 = vmatpush1.bf16.msra.mxu0 %v2938
        %3018 = vmatprep.subr.bf16.mxu0 %v2935
        %3019 = vmatpush1.bf16.msra.mxu0 %v2934
        %3020 = vmatprep.subr.bf16.mxu0 %v2931
        %3021 = vmatpush1.bf16.msra.mxu0 %v2930
        %3022 = vmatprep.subr.bf16.mxu0 0
        %3023 = vmatpush2.bf16.msra.mxu0 0
        %3024 = vmatprep.subr.bf16.mxu0 0
        %3025 = vmatpush2.bf16.msra.mxu0 0
        %3026 = vmatprep.subr.bf16.mxu0 0
        %3027 = vmatpush2.bf16.msra.mxu0 0
        %3028 = vmatprep.subr.bf16.mxu0 0
        %3029 = vmatpush2.bf16.msra.mxu0 0
        %3030 = vmatprep.subr.bf16.mxu0 0
        %3031 = vmatpush2.bf16.msra.mxu0 0
        %3032 = vmatprep.subr.bf16.mxu0 0
        %3033 = vmatpush2.bf16.msra.mxu0 0
        %3034 = vmatprep.subr.bf16.mxu0 0
        %3035 = vmatpush2.bf16.msra.mxu0 0
        %3036 = vmatprep.subr.bf16.mxu0 0
        %3037 = vmatpush2.bf16.msra.mxu0 0
        %3038 = vmatprep.mubr.bf16.mxu0 0
        %3039 = vmatmul.mubr.bf16.gmra.mxu0 %v2961
        %v3040 = vpop.f32.mrf.mxu0
        %v3041 = vadd.f32 %v2871, %v3040
        %v3042 = vpop.f32.mrf.mxu0
        %v3043 = vadd.f32 %v2875, %v3042
        %v3044 = vpop.f32.mrf.mxu0
        %v3045 = vadd.f32 %v2871, %v3044
        %v3046 = vpop.f32.mrf.mxu0
        %v3047 = vadd.f32 %v2875, %v3046
        %3048 = vdwg.mxu0
        %v3049 = vmax.f32 %v2998, 0.0
        %v3050 = vmax.f32 %v3000, 0.0
        %v3051 = vmax.f32 %v3041, 0.0
        %v3052 = vmax.f32 %v3043, 0.0
        %v3053 = vmax.f32 %v3002, 0.0
        %v3054 = vmax.f32 %v3004, 0.0
        %v3055 = vmax.f32 %v3045, 0.0
        %v3056 = vmax.f32 %v3047, 0.0
        %v3057 = vmul.f32 %v3049, %v3049
        %v3058 = vmul.f32 %v3050, %v3050
        %v3059 = vmul.f32 %v3051, %v3051
        %v3060 = vmul.f32 %v3052, %v3052
        %v3061 = vmul.f32 %v3053, %v3053
        %v3062 = vmul.f32 %v3054, %v3054
        %v3063 = vmul.f32 %v3055, %v3055
        %v3064 = vmul.f32 %v3056, %v3056
        %v3065 = vadd.f32 %v3057, %v3058
        %v3066 = vadd.f32 %v3065, %v3059
        %v3067 = vadd.f32 %v3066, %v3060
        %3068 = vadd.xlane.f32.xlu0 %v3067
        %v3069 = vpop.xlane.xlu0 %3068
        %v3070 = vsel %vm1383, %v3061, 0.0
        %v3071 = vsel %vm1383, %v3062, 0.0
        %v3072 = vadd.f32 %v3070, %v3071
        %v3073 = vsel %vm1383, %v3063, 0.0
        %v3074 = vadd.f32 %v3072, %v3073
        %v3075 = vsel %vm1383, %v3064, 0.0
        %v3076 = vadd.f32 %v3074, %v3075
        %3077 = vadd.xlane.f32.xlu0 %v3076
        %v3078 = vpop.xlane.xlu0 %3077
        %v3079 = vrcp.pop 512.0
        %v3080 = vmul.f32 %v3069, %v3079
        %v3081 = vmul.f32 %v3078, %v3079
        %v3082 = vld [vmem:[%s22] sm:$0xff]
        %v3083 = vld [vmem:[%s22 + $0x8] sm:$0xff]
        %v3084 = vld [vmem:[%s22 + $0x10] sm:$0xff]
        %v3085 = vld [vmem:[%s22 + $0x18] sm:$0xff]
        %v3086 = vld [vmem:[%s22 + $0x20] sm:$0xff]
        %v3087 = vld [vmem:[%s22 + $0x28] sm:$0xff]
        %v3088 = vld [vmem:[%s22 + $0x30] sm:$0xff]
        %v3089 = vld [vmem:[%s22 + $0x38] sm:$0xff]
        %v3090 = vld [vmem:[%s22 + $0x40] sm:$0xff]
        %v3091 = vld [vmem:[%s22 + $0x48] sm:$0xff]
        %v3092 = vld [vmem:[%s22 + $0x50] sm:$0xff]
        %v3093 = vld [vmem:[%s22 + $0x58] sm:$0xff]
        %v3094 = vld [vmem:[%s22 + $0x60] sm:$0xff]
        %v3095 = vld [vmem:[%s22 + $0x68] sm:$0xff]
        %v3096 = vld [vmem:[%s22 + $0x70] sm:$0xff]
        %v3097 = vld [vmem:[%s22 + $0x78] sm:$0xff]
        %v3098 = vld [vmem:[%s22 + $0x80] sm:$0xff]
        %v3099 = vld [vmem:[%s22 + $0x88] sm:$0xff]
        %v3100 = vld [vmem:[%s22 + $0x90] sm:$0xff]
        %v3101 = vld [vmem:[%s22 + $0x98] sm:$0xff]
        %v3102 = vld [vmem:[%s22 + $0xa0] sm:$0xff]
        %v3103 = vld [vmem:[%s22 + $0xa8] sm:$0xff]
        %v3104 = vld [vmem:[%s22 + $0xb0] sm:$0xff]
        %v3105 = vld [vmem:[%s22 + $0xb8] sm:$0xff]
        %v3106 = vld [vmem:[%s22 + $0xc0] sm:$0xff]
        %v3107 = vld [vmem:[%s22 + $0xc8] sm:$0xff]
        %v3108 = vld [vmem:[%s22 + $0xd0] sm:$0xff]
        %v3109 = vld [vmem:[%s22 + $0xd8] sm:$0xff]
        %v3110 = vld [vmem:[%s22 + $0xe0] sm:$0xff]
        %v3111 = vld [vmem:[%s22 + $0xe8] sm:$0xff]
        %v3112 = vld [vmem:[%s22 + $0xf0] sm:$0xff]
        %v3113 = vld [vmem:[%s22 + $0xf8] sm:$0xff]
        %v3114 = vld [vmem:[%s22 + $0x100] sm:$0xff]
        %v3115 = vld [vmem:[%s22 + $0x108] sm:$0xff]
        %v3116 = vld [vmem:[%s22 + $0x110] sm:$0xff]
        %v3117 = vld [vmem:[%s22 + $0x118] sm:$0xff]
        %v3118 = vld [vmem:[%s22 + $0x120] sm:$0xff]
        %v3119 = vld [vmem:[%s22 + $0x128] sm:$0xff]
        %v3120 = vld [vmem:[%s22 + $0x130] sm:$0xff]
        %v3121 = vld [vmem:[%s22 + $0x138] sm:$0xff]
        %v3122 = vld [vmem:[%s22 + $0x140] sm:$0xff]
        %v3123 = vld [vmem:[%s22 + $0x148] sm:$0xff]
        %v3124 = vld [vmem:[%s22 + $0x150] sm:$0xff]
        %v3125 = vld [vmem:[%s22 + $0x158] sm:$0xff]
        %v3126 = vld [vmem:[%s22 + $0x160] sm:$0xff]
        %v3127 = vld [vmem:[%s22 + $0x168] sm:$0xff]
        %v3128 = vld [vmem:[%s22 + $0x170] sm:$0xff]
        %v3129 = vld [vmem:[%s22 + $0x178] sm:$0xff]
        %v3130 = vld [vmem:[%s22 + $0x180] sm:$0xff]
        %v3131 = vld [vmem:[%s22 + $0x188] sm:$0xff]
        %v3132 = vld [vmem:[%s22 + $0x190] sm:$0xff]
        %v3133 = vld [vmem:[%s22 + $0x198] sm:$0xff]
        %v3134 = vld [vmem:[%s22 + $0x1a0] sm:$0xff]
        %v3135 = vld [vmem:[%s22 + $0x1a8] sm:$0xff]
        %v3136 = vld [vmem:[%s22 + $0x1b0] sm:$0xff]
        %v3137 = vld [vmem:[%s22 + $0x1b8] sm:$0xff]
        %v3138 = vld [vmem:[%s22 + $0x1c0] sm:$0xff]
        %v3139 = vld [vmem:[%s22 + $0x1c8] sm:$0xff]
        %v3140 = vld [vmem:[%s22 + $0x1d0] sm:$0xff]
        %v3141 = vld [vmem:[%s22 + $0x1d8] sm:$0xff]
        %v3142 = vld [vmem:[%s22 + $0x1e0] sm:$0xff]
        %v3143 = vld [vmem:[%s22 + $0x1e8] sm:$0xff]
        %v3144 = vld [vmem:[%s22 + $0x1f0] sm:$0xff]
        %v3145 = vld [vmem:[%s22 + $0x1f8] sm:$0xff]
        %v3146 = vpack.c.bf16 %v3053, %v3049
        %v3147 = vpack.c.bf16 %v3054, %v3050
        %v3148 = vpack.c.bf16 %v3055, %v3051
        %v3149 = vpack.c.bf16 %v3056, %v3052
        %v3150 = vld [vmem:[%s23] sm:$0x3]
        %v3152 = vlaneseq
        %v3153 = vshrl.u32 %v3152, 7
        %v3154 = vsub.s32 0, %v3153
        %v3155 = vrot.slane %v3150, %v3154
        %v3156 = vlaneseq
        %v3157 = vshrl.u32 %v3156, 7
        %v3158 = vsub.s32 1, %v3157
        %v3159 = vrot.slane %v3150, %v3158
        %v3226 = vunpack.c.l.b16 %v3082
        %v3227 = vunpack.c.h.b16 %v3082
        %v3228 = vunpack.c.l.b16 %v3083
        %v3229 = vunpack.c.h.b16 %v3083
        %v3230 = vunpack.c.l.b16 %v3084
        %v3231 = vunpack.c.h.b16 %v3084
        %v3232 = vunpack.c.l.b16 %v3085
        %v3233 = vunpack.c.h.b16 %v3085
        %v3234 = vunpack.c.l.b16 %v3086
        %v3235 = vunpack.c.h.b16 %v3086
        %v3236 = vunpack.c.l.b16 %v3087
        %v3237 = vunpack.c.h.b16 %v3087
        %v3238 = vunpack.c.l.b16 %v3088
        %v3239 = vunpack.c.h.b16 %v3088
        %v3240 = vunpack.c.l.b16 %v3089
        %v3241 = vunpack.c.h.b16 %v3089
        %v3242 = vunpack.c.l.b16 %v3090
        %v3243 = vunpack.c.h.b16 %v3090
        %v3244 = vunpack.c.l.b16 %v3091
        %v3245 = vunpack.c.h.b16 %v3091
        %v3246 = vunpack.c.l.b16 %v3092
        %v3247 = vunpack.c.h.b16 %v3092
        %v3248 = vunpack.c.l.b16 %v3093
        %v3249 = vunpack.c.h.b16 %v3093
        %v3250 = vunpack.c.l.b16 %v3094
        %v3251 = vunpack.c.h.b16 %v3094
        %v3252 = vunpack.c.l.b16 %v3095
        %v3253 = vunpack.c.h.b16 %v3095
        %v3254 = vunpack.c.l.b16 %v3096
        %v3255 = vunpack.c.h.b16 %v3096
        %v3256 = vunpack.c.l.b16 %v3097
        %v3257 = vunpack.c.h.b16 %v3097
        %v3258 = vunpack.c.l.b16 %v3098
        %v3259 = vunpack.c.h.b16 %v3098
        %v3260 = vunpack.c.l.b16 %v3099
        %v3261 = vunpack.c.h.b16 %v3099
        %v3262 = vunpack.c.l.b16 %v3100
        %v3263 = vunpack.c.h.b16 %v3100
        %v3264 = vunpack.c.l.b16 %v3101
        %v3265 = vunpack.c.h.b16 %v3101
        %v3266 = vunpack.c.l.b16 %v3102
        %v3267 = vunpack.c.h.b16 %v3102
        %v3268 = vunpack.c.l.b16 %v3103
        %v3269 = vunpack.c.h.b16 %v3103
        %v3270 = vunpack.c.l.b16 %v3104
        %v3271 = vunpack.c.h.b16 %v3104
        %v3272 = vunpack.c.l.b16 %v3105
        %v3273 = vunpack.c.h.b16 %v3105
        %v3274 = vunpack.c.l.b16 %v3106
        %v3275 = vunpack.c.h.b16 %v3106
        %v3276 = vunpack.c.l.b16 %v3107
        %v3277 = vunpack.c.h.b16 %v3107
        %v3278 = vunpack.c.l.b16 %v3108
        %v3279 = vunpack.c.h.b16 %v3108
        %v3280 = vunpack.c.l.b16 %v3109
        %v3281 = vunpack.c.h.b16 %v3109
        %v3282 = vunpack.c.l.b16 %v3110
        %v3283 = vunpack.c.h.b16 %v3110
        %v3284 = vunpack.c.l.b16 %v3111
        %v3285 = vunpack.c.h.b16 %v3111
        %v3286 = vunpack.c.l.b16 %v3112
        %v3287 = vunpack.c.h.b16 %v3112
        %v3288 = vunpack.c.l.b16 %v3113
        %v3289 = vunpack.c.h.b16 %v3113
        %v3290 = vunpack.c.l.b16 %v3114
        %v3291 = vunpack.c.h.b16 %v3114
        %v3292 = vunpack.c.l.b16 %v3115
        %v3293 = vunpack.c.h.b16 %v3115
        %v3294 = vunpack.c.l.b16 %v3116
        %v3295 = vunpack.c.h.b16 %v3116
        %v3296 = vunpack.c.l.b16 %v3117
        %v3297 = vunpack.c.h.b16 %v3117
        %v3298 = vunpack.c.l.b16 %v3118
        %v3299 = vunpack.c.h.b16 %v3118
        %v3300 = vunpack.c.l.b16 %v3119
        %v3301 = vunpack.c.h.b16 %v3119
        %v3302 = vunpack.c.l.b16 %v3120
        %v3303 = vunpack.c.h.b16 %v3120
        %v3304 = vunpack.c.l.b16 %v3121
        %v3305 = vunpack.c.h.b16 %v3121
        %v3306 = vunpack.c.l.b16 %v3122
        %v3307 = vunpack.c.h.b16 %v3122
        %v3308 = vunpack.c.l.b16 %v3123
        %v3309 = vunpack.c.h.b16 %v3123
        %v3310 = vunpack.c.l.b16 %v3124
        %v3311 = vunpack.c.h.b16 %v3124
        %v3312 = vunpack.c.l.b16 %v3125
        %v3313 = vunpack.c.h.b16 %v3125
        %v3314 = vunpack.c.l.b16 %v3126
        %v3315 = vunpack.c.h.b16 %v3126
        %v3316 = vunpack.c.l.b16 %v3127
        %v3317 = vunpack.c.h.b16 %v3127
        %v3318 = vunpack.c.l.b16 %v3128
        %v3319 = vunpack.c.h.b16 %v3128
        %v3320 = vunpack.c.l.b16 %v3129
        %v3321 = vunpack.c.h.b16 %v3129
        %v3322 = vunpack.c.l.b16 %v3130
        %v3323 = vunpack.c.h.b16 %v3130
        %v3324 = vunpack.c.l.b16 %v3131
        %v3325 = vunpack.c.h.b16 %v3131
        %v3326 = vunpack.c.l.b16 %v3132
        %v3327 = vunpack.c.h.b16 %v3132
        %v3328 = vunpack.c.l.b16 %v3133
        %v3329 = vunpack.c.h.b16 %v3133
        %v3330 = vunpack.c.l.b16 %v3134
        %v3331 = vunpack.c.h.b16 %v3134
        %v3332 = vunpack.c.l.b16 %v3135
        %v3333 = vunpack.c.h.b16 %v3135
        %v3334 = vunpack.c.l.b16 %v3136
        %v3335 = vunpack.c.h.b16 %v3136
        %v3336 = vunpack.c.l.b16 %v3137
        %v3337 = vunpack.c.h.b16 %v3137
        %v3338 = vunpack.c.l.b16 %v3138
        %v3339 = vunpack.c.h.b16 %v3138
        %v3340 = vunpack.c.l.b16 %v3139
        %v3341 = vunpack.c.h.b16 %v3139
        %v3342 = vunpack.c.l.b16 %v3140
        %v3343 = vunpack.c.h.b16 %v3140
        %v3344 = vunpack.c.l.b16 %v3141
        %v3345 = vunpack.c.h.b16 %v3141
        %v3346 = vunpack.c.l.b16 %v3142
        %v3347 = vunpack.c.h.b16 %v3142
        %v3348 = vunpack.c.l.b16 %v3143
        %v3349 = vunpack.c.h.b16 %v3143
        %v3350 = vunpack.c.l.b16 %v3144
        %v3351 = vunpack.c.h.b16 %v3144
        %v3352 = vunpack.c.l.b16 %v3145
        %v3353 = vunpack.c.h.b16 %v3145
        %v3354 = vpack.c.b16 %v3228, %v3226
        %v3355 = vpack.c.b16 %v3229, %v3227
        %v3356 = vpack.c.b16 %v3232, %v3230
        %v3357 = vpack.c.b16 %v3233, %v3231
        %v3358 = vpack.c.b16 %v3236, %v3234
        %v3359 = vpack.c.b16 %v3237, %v3235
        %v3360 = vpack.c.b16 %v3240, %v3238
        %v3361 = vpack.c.b16 %v3241, %v3239
        %v3362 = vpack.c.b16 %v3244, %v3242
        %v3363 = vpack.c.b16 %v3245, %v3243
        %v3364 = vpack.c.b16 %v3248, %v3246
        %v3365 = vpack.c.b16 %v3249, %v3247
        %v3366 = vpack.c.b16 %v3252, %v3250
        %v3367 = vpack.c.b16 %v3253, %v3251
        %v3368 = vpack.c.b16 %v3256, %v3254
        %v3369 = vpack.c.b16 %v3257, %v3255
        %v3370 = vpack.c.b16 %v3260, %v3258
        %v3371 = vpack.c.b16 %v3261, %v3259
        %v3372 = vpack.c.b16 %v3264, %v3262
        %v3373 = vpack.c.b16 %v3265, %v3263
        %v3374 = vpack.c.b16 %v3268, %v3266
        %v3375 = vpack.c.b16 %v3269, %v3267
        %v3376 = vpack.c.b16 %v3272, %v3270
        %v3377 = vpack.c.b16 %v3273, %v3271
        %v3378 = vpack.c.b16 %v3276, %v3274
        %v3379 = vpack.c.b16 %v3277, %v3275
        %v3380 = vpack.c.b16 %v3280, %v3278
        %v3381 = vpack.c.b16 %v3281, %v3279
        %v3382 = vpack.c.b16 %v3284, %v3282
        %v3383 = vpack.c.b16 %v3285, %v3283
        %v3384 = vpack.c.b16 %v3288, %v3286
        %v3385 = vpack.c.b16 %v3289, %v3287
        %v3386 = vpack.c.b16 %v3292, %v3290
        %v3387 = vpack.c.b16 %v3293, %v3291
        %v3388 = vpack.c.b16 %v3296, %v3294
        %v3389 = vpack.c.b16 %v3297, %v3295
        %v3390 = vpack.c.b16 %v3300, %v3298
        %v3391 = vpack.c.b16 %v3301, %v3299
        %v3392 = vpack.c.b16 %v3304, %v3302
        %v3393 = vpack.c.b16 %v3305, %v3303
        %v3394 = vpack.c.b16 %v3308, %v3306
        %v3395 = vpack.c.b16 %v3309, %v3307
        %v3396 = vpack.c.b16 %v3312, %v3310
        %v3397 = vpack.c.b16 %v3313, %v3311
        %v3398 = vpack.c.b16 %v3316, %v3314
        %v3399 = vpack.c.b16 %v3317, %v3315
        %v3400 = vpack.c.b16 %v3320, %v3318
        %v3401 = vpack.c.b16 %v3321, %v3319
        %v3402 = vpack.c.b16 %v3324, %v3322
        %v3403 = vpack.c.b16 %v3325, %v3323
        %v3404 = vpack.c.b16 %v3328, %v3326
        %v3405 = vpack.c.b16 %v3329, %v3327
        %v3406 = vpack.c.b16 %v3332, %v3330
        %v3407 = vpack.c.b16 %v3333, %v3331
        %v3408 = vpack.c.b16 %v3336, %v3334
        %v3409 = vpack.c.b16 %v3337, %v3335
        %v3410 = vpack.c.b16 %v3340, %v3338
        %v3411 = vpack.c.b16 %v3341, %v3339
        %v3412 = vpack.c.b16 %v3344, %v3342
        %v3413 = vpack.c.b16 %v3345, %v3343
        %v3414 = vpack.c.b16 %v3348, %v3346
        %v3415 = vpack.c.b16 %v3349, %v3347
        %v3416 = vpack.c.b16 %v3352, %v3350
        %v3417 = vpack.c.b16 %v3353, %v3351
        %3482 = vmatprep.subr.bf16.mxu0 %v3369
        %3483 = vmatpush1.bf16.msra.mxu0 %v3368
        %3484 = vmatprep.subr.bf16.mxu0 %v3367
        %3485 = vmatpush1.bf16.msra.mxu0 %v3366
        %3486 = vmatprep.subr.bf16.mxu0 %v3365
        %3487 = vmatpush1.bf16.msra.mxu0 %v3364
        %3488 = vmatprep.subr.bf16.mxu0 %v3363
        %3489 = vmatpush1.bf16.msra.mxu0 %v3362
        %3490 = vmatprep.subr.bf16.mxu0 %v3361
        %3491 = vmatpush1.bf16.msra.mxu0 %v3360
        %3492 = vmatprep.subr.bf16.mxu0 %v3359
        %3493 = vmatpush1.bf16.msra.mxu0 %v3358
        %3494 = vmatprep.subr.bf16.mxu0 %v3357
        %3495 = vmatpush1.bf16.msra.mxu0 %v3356
        %3496 = vmatprep.subr.bf16.mxu0 %v3355
        %3497 = vmatpush1.bf16.msra.mxu0 %v3354
        %3498 = vmatprep.subr.bf16.mxu0 %v3385
        %3499 = vmatpush2.bf16.msra.mxu0 %v3384
        %3500 = vmatprep.subr.bf16.mxu0 %v3383
        %3501 = vmatpush2.bf16.msra.mxu0 %v3382
        %3502 = vmatprep.subr.bf16.mxu0 %v3381
        %3503 = vmatpush2.bf16.msra.mxu0 %v3380
        %3504 = vmatprep.subr.bf16.mxu0 %v3379
        %3505 = vmatpush2.bf16.msra.mxu0 %v3378
        %3506 = vmatprep.subr.bf16.mxu0 %v3377
        %3507 = vmatpush2.bf16.msra.mxu0 %v3376
        %3508 = vmatprep.subr.bf16.mxu0 %v3375
        %3509 = vmatpush2.bf16.msra.mxu0 %v3374
        %3510 = vmatprep.subr.bf16.mxu0 %v3373
        %3511 = vmatpush2.bf16.msra.mxu0 %v3372
        %3512 = vmatprep.subr.bf16.mxu0 %v3371
        %3513 = vmatpush2.bf16.msra.mxu0 %v3370
        %3514 = vmatprep.mubr.bf16.mxu0 %v3147
        %3515 = vmatmul.mubr.bf16.gmra.mxu0 %v3146
        %v3516 = vpop.f32.mrf.mxu0
        %v3517 = vadd.f32 %v3155, %v3516
        %v3518 = vpop.f32.mrf.mxu0
        %v3519 = vadd.f32 %v3159, %v3518
        %v3520 = vpop.f32.mrf.mxu0
        %v3521 = vadd.f32 %v3155, %v3520
        %v3522 = vpop.f32.mrf.mxu0
        %v3523 = vadd.f32 %v3159, %v3522
        %3524 = vdwg.mxu0
        %3525 = vmatprep.subr.bf16.mxu0 %v3401
        %3526 = vmatpush1.bf16.msra.mxu0 %v3400
        %3527 = vmatprep.subr.bf16.mxu0 %v3399
        %3528 = vmatpush1.bf16.msra.mxu0 %v3398
        %3529 = vmatprep.subr.bf16.mxu0 %v3397
        %3530 = vmatpush1.bf16.msra.mxu0 %v3396
        %3531 = vmatprep.subr.bf16.mxu0 %v3395
        %3532 = vmatpush1.bf16.msra.mxu0 %v3394
        %3533 = vmatprep.subr.bf16.mxu0 %v3393
        %3534 = vmatpush1.bf16.msra.mxu0 %v3392
        %3535 = vmatprep.subr.bf16.mxu0 %v3391
        %3536 = vmatpush1.bf16.msra.mxu0 %v3390
        %3537 = vmatprep.subr.bf16.mxu0 %v3389
        %3538 = vmatpush1.bf16.msra.mxu0 %v3388
        %3539 = vmatprep.subr.bf16.mxu0 %v3387
        %3540 = vmatpush1.bf16.msra.mxu0 %v3386
        %3541 = vmatprep.subr.bf16.mxu0 %v3417
        %3542 = vmatpush2.bf16.msra.mxu0 %v3416
        %3543 = vmatprep.subr.bf16.mxu0 %v3415
        %3544 = vmatpush2.bf16.msra.mxu0 %v3414
        %3545 = vmatprep.subr.bf16.mxu0 %v3413
        %3546 = vmatpush2.bf16.msra.mxu0 %v3412
        %3547 = vmatprep.subr.bf16.mxu0 %v3411
        %3548 = vmatpush2.bf16.msra.mxu0 %v3410
        %3549 = vmatprep.subr.bf16.mxu0 %v3409
        %3550 = vmatpush2.bf16.msra.mxu0 %v3408
        %3551 = vmatprep.subr.bf16.mxu0 %v3407
        %3552 = vmatpush2.bf16.msra.mxu0 %v3406
        %3553 = vmatprep.subr.bf16.mxu0 %v3405
        %3554 = vmatpush2.bf16.msra.mxu0 %v3404
        %3555 = vmatprep.subr.bf16.mxu0 %v3403
        %3556 = vmatpush2.bf16.msra.mxu0 %v3402
        %3557 = vmatprep.mubr.bf16.mxu0 %v3149
        %3558 = vmatmul.mubr.bf16.gmra.mxu0 %v3148
        %v3559 = vpop.f32.mrf.mxu0
        %v3560 = vadd.f32 %v3517, %v3559
        %v3561 = vpop.f32.mrf.mxu0
        %v3562 = vadd.f32 %v3519, %v3561
        %v3563 = vpop.f32.mrf.mxu0
        %v3564 = vadd.f32 %v3521, %v3563
        %v3565 = vpop.f32.mrf.mxu0
        %v3566 = vadd.f32 %v3523, %v3565
        %3567 = vdwg.mxu0
        %v3568 = vmax.f32 %v3560, 0.0
        %v3569 = vmax.f32 %v3562, 0.0
        %v3570 = vmax.f32 %v3564, 0.0
        %v3571 = vmax.f32 %v3566, 0.0
        %v3572 = vmul.f32 %v3568, %v3568
        %v3573 = vmul.f32 %v3569, %v3569
        %v3574 = vmul.f32 %v3570, %v3570
        %v3575 = vmul.f32 %v3571, %v3571
        %v3576 = vadd.f32 %v3572, %v3573
        %3577 = vadd.xlane.f32.xlu0 %v3576
        %v3578 = vpop.xlane.xlu0 %3577
        %v3579 = vsel %vm1383, %v3574, 0.0
        %v3580 = vsel %vm1383, %v3575, 0.0
        %v3581 = vadd.f32 %v3579, %v3580
        %3582 = vadd.xlane.f32.xlu0 %v3581
        %v3583 = vpop.xlane.xlu0 %3582
        %v3584 = vrcp.pop 256.0
        %v3585 = vmul.f32 %v3578, %v3584
        %v3586 = vmul.f32 %v3583, %v3584
        %v3587 = vld [vmem:[%s24] sm:$0xf]
        %v3588 = vld [vmem:[%s24 + $0x4] sm:$0xf]
        %v3589 = vld [vmem:[%s24 + $0x8] sm:$0xf]
        %v3590 = vld [vmem:[%s24 + $0xc] sm:$0xf]
        %v3591 = vld [vmem:[%s24 + $0x10] sm:$0xf]
        %v3592 = vld [vmem:[%s24 + $0x14] sm:$0xf]
        %v3593 = vld [vmem:[%s24 + $0x18] sm:$0xf]
        %v3594 = vld [vmem:[%s24 + $0x1c] sm:$0xf]
        %v3595 = vld [vmem:[%s24 + $0x20] sm:$0xf]
        %v3596 = vld [vmem:[%s24 + $0x24] sm:$0xf]
        %v3597 = vld [vmem:[%s24 + $0x28] sm:$0xf]
        %v3598 = vld [vmem:[%s24 + $0x2c] sm:$0xf]
        %v3599 = vld [vmem:[%s24 + $0x30] sm:$0xf]
        %v3600 = vld [vmem:[%s24 + $0x34] sm:$0xf]
        %v3601 = vld [vmem:[%s24 + $0x38] sm:$0xf]
        %v3602 = vld [vmem:[%s24 + $0x3c] sm:$0xf]
        %v3603 = vld [vmem:[%s24 + $0x40] sm:$0xf]
        %v3604 = vld [vmem:[%s24 + $0x44] sm:$0xf]
        %v3605 = vld [vmem:[%s24 + $0x48] sm:$0xf]
        %v3606 = vld [vmem:[%s24 + $0x4c] sm:$0xf]
        %v3607 = vld [vmem:[%s24 + $0x50] sm:$0xf]
        %v3608 = vld [vmem:[%s24 + $0x54] sm:$0xf]
        %v3609 = vld [vmem:[%s24 + $0x58] sm:$0xf]
        %v3610 = vld [vmem:[%s24 + $0x5c] sm:$0xf]
        %v3611 = vld [vmem:[%s24 + $0x60] sm:$0xf]
        %v3612 = vld [vmem:[%s24 + $0x64] sm:$0xf]
        %v3613 = vld [vmem:[%s24 + $0x68] sm:$0xf]
        %v3614 = vld [vmem:[%s24 + $0x6c] sm:$0xf]
        %v3615 = vld [vmem:[%s24 + $0x70] sm:$0xf]
        %v3616 = vld [vmem:[%s24 + $0x74] sm:$0xf]
        %v3617 = vld [vmem:[%s24 + $0x78] sm:$0xf]
        %v3618 = vld [vmem:[%s24 + $0x7c] sm:$0xf]
        %v3619 = vpack.c.bf16 %v3570, %v3568
        %v3620 = vpack.c.bf16 %v3571, %v3569
        %v3621 = vld [vmem:[%s25] sm:$0x1]
        %v3623 = vlaneseq
        %v3624 = vshrl.u32 %v3623, 7
        %v3625 = vsub.s32 0, %v3624
        %v3626 = vrot.slane %v3621, %v3625
        %v3660 = vunpack.c.l.b16 %v3587
        %v3661 = vunpack.c.l.b16 %v3588
        %v3662 = vunpack.c.l.b16 %v3589
        %v3663 = vunpack.c.l.b16 %v3590
        %v3664 = vunpack.c.l.b16 %v3591
        %v3665 = vunpack.c.l.b16 %v3592
        %v3666 = vunpack.c.l.b16 %v3593
        %v3667 = vunpack.c.l.b16 %v3594
        %v3668 = vunpack.c.l.b16 %v3595
        %v3669 = vunpack.c.l.b16 %v3596
        %v3670 = vunpack.c.l.b16 %v3597
        %v3671 = vunpack.c.l.b16 %v3598
        %v3672 = vunpack.c.l.b16 %v3599
        %v3673 = vunpack.c.l.b16 %v3600
        %v3674 = vunpack.c.l.b16 %v3601
        %v3675 = vunpack.c.l.b16 %v3602
        %v3676 = vunpack.c.l.b16 %v3603
        %v3677 = vunpack.c.l.b16 %v3604
        %v3678 = vunpack.c.l.b16 %v3605
        %v3679 = vunpack.c.l.b16 %v3606
        %v3680 = vunpack.c.l.b16 %v3607
        %v3681 = vunpack.c.l.b16 %v3608
        %v3682 = vunpack.c.l.b16 %v3609
        %v3683 = vunpack.c.l.b16 %v3610
        %v3684 = vunpack.c.l.b16 %v3611
        %v3685 = vunpack.c.l.b16 %v3612
        %v3686 = vunpack.c.l.b16 %v3613
        %v3687 = vunpack.c.l.b16 %v3614
        %v3688 = vunpack.c.l.b16 %v3615
        %v3689 = vunpack.c.l.b16 %v3616
        %v3690 = vunpack.c.l.b16 %v3617
        %v3691 = vunpack.c.l.b16 %v3618
        %v3692 = vpack.c.b16 %v3661, %v3660
        %v3693 = vpack.c.b16 %v3663, %v3662
        %v3694 = vpack.c.b16 %v3665, %v3664
        %v3695 = vpack.c.b16 %v3667, %v3666
        %v3696 = vpack.c.b16 %v3669, %v3668
        %v3697 = vpack.c.b16 %v3671, %v3670
        %v3698 = vpack.c.b16 %v3673, %v3672
        %v3699 = vpack.c.b16 %v3675, %v3674
        %v3700 = vpack.c.b16 %v3677, %v3676
        %v3701 = vpack.c.b16 %v3679, %v3678
        %v3702 = vpack.c.b16 %v3681, %v3680
        %v3703 = vpack.c.b16 %v3683, %v3682
        %v3704 = vpack.c.b16 %v3685, %v3684
        %v3705 = vpack.c.b16 %v3687, %v3686
        %v3706 = vpack.c.b16 %v3689, %v3688
        %v3707 = vpack.c.b16 %v3691, %v3690
        %3724 = vmatprep.subr.bf16.mxu0 0
        %3725 = vmatpush1.bf16.msra.mxu0 %v3699
        %3726 = vmatprep.subr.bf16.mxu0 0
        %3727 = vmatpush1.bf16.msra.mxu0 %v3698
        %3728 = vmatprep.subr.bf16.mxu0 0
        %3729 = vmatpush1.bf16.msra.mxu0 %v3697
        %3730 = vmatprep.subr.bf16.mxu0 0
        %3731 = vmatpush1.bf16.msra.mxu0 %v3696
        %3732 = vmatprep.subr.bf16.mxu0 0
        %3733 = vmatpush1.bf16.msra.mxu0 %v3695
        %3734 = vmatprep.subr.bf16.mxu0 0
        %3735 = vmatpush1.bf16.msra.mxu0 %v3694
        %3736 = vmatprep.subr.bf16.mxu0 0
        %3737 = vmatpush1.bf16.msra.mxu0 %v3693
        %3738 = vmatprep.subr.bf16.mxu0 0
        %3739 = vmatpush1.bf16.msra.mxu0 %v3692
        %3740 = vmatprep.subr.bf16.mxu0 0
        %3741 = vmatpush2.bf16.msra.mxu0 %v3707
        %3742 = vmatprep.subr.bf16.mxu0 0
        %3743 = vmatpush2.bf16.msra.mxu0 %v3706
        %3744 = vmatprep.subr.bf16.mxu0 0
        %3745 = vmatpush2.bf16.msra.mxu0 %v3705
        %3746 = vmatprep.subr.bf16.mxu0 0
        %3747 = vmatpush2.bf16.msra.mxu0 %v3704
        %3748 = vmatprep.subr.bf16.mxu0 0
        %3749 = vmatpush2.bf16.msra.mxu0 %v3703
        %3750 = vmatprep.subr.bf16.mxu0 0
        %3751 = vmatpush2.bf16.msra.mxu0 %v3702
        %3752 = vmatprep.subr.bf16.mxu0 0
        %3753 = vmatpush2.bf16.msra.mxu0 %v3701
        %3754 = vmatprep.subr.bf16.mxu0 0
        %3755 = vmatpush2.bf16.msra.mxu0 %v3700
        %3756 = vmatprep.mubr.bf16.mxu0 %v3620
        %3757 = vmatmul.mubr.bf16.gmra.mxu0 %v3619
        %v3758 = vpop.f32.mrf.mxu0
        %v3759 = vadd.f32 %v3626, %v3758
        %v3760 = vpop.f32.mrf.mxu0
        %v3761 = vpop.f32.mrf.mxu0
        %v3762 = vadd.f32 %v3626, %v3761
        %v3763 = vpop.f32.mrf.mxu0
        %3764 = vdwg.mxu0
        %vm3765 = vcmask 80896
        %v3766 = vsel %vm3765, %v3759, %v3080
        %v3767 = vsel %vm3765, %v3762, %v3081
        %vm3768 = vcmask 89088
        %v3769 = vsel %vm3768, %v3766, %v3585
        %v3770 = vsel %vm3768, %v3767, %v3586
        %vm3771 = vcmask 97280
        %v3772 = vsel %vm3771, %v3769, 0.0
        %v3773 = vsel %vm3771, %v3770, 0.0
        %3774 = vst [vmem:[%s26] sm:$0xff] %v3772
        %3775 = vst [vmem:[%s26 + $0x8] sm:$0x3] %v3773
      $region132: #{openclip_man_forward.3} parent=123 // pred_fallthru
        _
      // Predicated region
      $region133: #{openclip_man_forward.3} parent=123 // pred_check
        %p3776 = pneg %p656
      $region134: #{openclip_man_forward.3} parent=123 // pred_check_branch
        %3778 = sbr.rel (%p3776) target = $region136
      $region135: #{openclip_man_forward.3} parent=123 // pred_region
        _
      $region136: #{openclip_man_forward.3} parent=123 // pred_fallthru
        _
      // Predicated region
      $region137: #{openclip_man_forward.3} parent=123 // pred_check
        %p3779 = pneg %p656
      $region138: #{openclip_man_forward.3} parent=123 // pred_check_branch
        %3781 = sbr.rel (%p3779) target = $region140
      $region139: #{openclip_man_forward.3} parent=123 // pred_region
        _
      $region140: #{openclip_man_forward.3} parent=123 // pred_fallthru
        _
    $region124: #{openclip_man_forward.3} parent=5 // pred_fallthru
      _
    %p3782 = scmp.le.s32.totalorder 2, %s32
    // Predicated region
    $region141: #{openclip_man_forward.3} parent=5 // pred_check
      %p3783 = pneg %p3782
    $region142: #{openclip_man_forward.3} parent=5 // pred_check_branch
      %3785 = sbr.rel (%p3783) target = $region144
    $region143: #{openclip_man_forward.3} parent=5 // pred_region
      %s3786 = ssub.s32 %s32, 2
    $region144: #{openclip_man_forward.3} parent=5 // pred_fallthru
      _
  $region6: #{openclip_man_forward.3} parent=0 // loop_footer
    %s36 = sadd.s32 1, %s32
  $region7: #{openclip_man_forward.3} parent=0 // loop_footer_branch
    %31 = sbr.rel target = $region3
  $region8: #{openclip_man_forward.3} parent=0 // loop_exit
    _

</llo_original>
